<compile_context>
chip_gen: v7x
topology: tpu7x:2x2x1
jax: 0.10.0
libtpu: 0.0.40
codegen_flags: <defaults>
</compile_context>

<pallas_src>
import jax
import jax.numpy as jnp
from jax.experimental import pallas as pl
from jax.experimental.pallas import tpu as pltpu

IN_F = 429
H1, H2, H3 = 1024, 512, 128
OUT_F = 39

OUT_P = 128     # 39 padded up to a full 128-lane register (lane-dense output)
TB_MAX = 1024   # max batch tile (rows); see VMEM budget in _vmem_limit_bytes()

# Grid-invariant weights/biases only need one VMEM buffer (fetched once, never refetched).
try:
    _SINGLE_BUFFER = {"pipeline_mode": pl.Buffered(1)}
    pl.BlockSpec((8, 128), lambda i: (0, 0), **_SINGLE_BUFFER)
    _WEIGHTS_SINGLE_BUFFERED = True
except Exception:  # pragma: no cover - older JAX: default double buffering (2x weight VMEM)
    _SINGLE_BUFFER = {}
    _WEIGHTS_SINGLE_BUFFERED = False


def _round_up(n, m):
    return ((n + m - 1) // m) * m


def _num_tensorcores_per_chip():
    """2 TensorCores only on v7x; v5e/v6e have 1. Defaults to 1 if undetectable."""
    try:
        kind = jax.devices()[0].device_kind.lower()
    except Exception:  # pragma: no cover
        return 1
    return 2 if ("v7" in kind or "7x" in kind) else 1


_NUM_TC = _num_tensorcores_per_chip()


def _pick_batch_tile(batch, num_tc):
    """Largest tile <= TB_MAX. On v7x keep >= num_tc (ideally even) grid steps so the
    'parallel' batch axis feeds both TensorCores; on v5e/v6e never shrink the tile."""
    if num_tc <= 1 or batch <= 8 * num_tc:
        # Single TC (or tiny batch): one tile covering the batch (full-extent block if
        # batch <= TB_MAX, so no sublane-alignment requirement), else TB_MAX-row tiles.
        return min(TB_MAX, batch)
    tb = min(TB_MAX, _round_up(pl.cdiv(batch, num_tc), 8))
    steps = pl.cdiv(batch, tb)
    if steps % num_tc != 0:  # prefer an even step count so neither TC idles at the end
        tb = max(8, _round_up(pl.cdiv(batch, steps + 1), 8))
    return tb


def _vmem_limit_bytes(tb):
    """Actual footprint + headroom (instead of a blanket 64 MiB == all of v7x VMEM)."""
    weight_elems = IN_F * H1 + H1 * H2 + H2 * H3 + H3 * OUT_P
    weights = 2 * weight_elems * (1 if _WEIGHTS_SINGLE_BUFFERED else 2)  # bf16
    biases = 4 * (H1 + H2 + H3 + OUT_P) * 2
    x_tiles = tb * IN_F * 4 * 2                         # f32 input, double-buffered
    out_tiles = tb * OUT_P * 2 * 2                      # bf16 output, double-buffered
    inter = tb * (H1 + H2 + H3 + OUT_P) * (4 + 2)       # f32 accum + bf16 copies
    total = weights + biases + x_tiles + out_tiles + inter
    return max(32 << 20, min(int(total * 1.5) + (4 << 20), 100 << 20))


def _mlp_kernel(x_ref, w1_ref, b1_ref, w2_ref, b2_ref,
                w3_ref, b3_ref, w4_ref, b4_ref, o_ref):
    # bf16 operands on the MXU, f32 accumulation. Dropout = identity (eval mode).
    x = x_ref[...].astype(jnp.bfloat16)                               # [TB, 429]
    h = jnp.dot(x, w1_ref[...], preferred_element_type=jnp.float32)
    h = jnp.maximum(h + b1_ref[...], 0.0).astype(jnp.bfloat16)
    h = jnp.dot(h, w2_ref[...], preferred_element_type=jnp.float32)
    h = jnp.maximum(h + b2_ref[...], 0.0).astype(jnp.bfloat16)
    h = jnp.dot(h, w3_ref[...], preferred_element_type=jnp.float32)
    h = jnp.maximum(h + b3_ref[...], 0.0).astype(jnp.bfloat16)
    o = jnp.dot(h, w4_ref[...], preferred_element_type=jnp.float32) + b4_ref[...]
    o_ref[...] = o.astype(o_ref.dtype)                                # [TB, OUT_P] bf16


def prepare_params(params):
    """One-time prep: cast weights to bf16; pad only the 39-wide output dim to 128."""
    w1, b1, w2, b2, w3, b3, w4, b4 = params
    bf = jnp.bfloat16
    w1p = w1.astype(bf)                                               # (429, 1024) unpadded
    w2p = w2.astype(bf)
    w3p = w3.astype(bf)
    w4p = jnp.zeros((H3, OUT_P), bf).at[:, :OUT_F].set(w4.astype(bf))
    b1p = b1.astype(jnp.float32).reshape(1, H1)
    b2p = b2.astype(jnp.float32).reshape(1, H2)
    b3p = b3.astype(jnp.float32).reshape(1, H3)
    b4p = jnp.zeros((1, OUT_P), jnp.float32).at[:, :OUT_F].set(b4)
    return (w1p, b1p, w2p, b2p, w3p, b3p, w4p, b4p)


@jax.jit
def classifier_forward(x, prepped):
    """x: [B, 429] float32, prepped = prepare_params(params) -> logits [B, 39] f32."""
    w1p, b1p, w2p, b2p, w3p, b3p, w4p, b4p = prepped
    B = x.shape[0]
    tb = _pick_batch_tile(B, _NUM_TC)
    grid = (pl.cdiv(B, tb),)

    def const(shape):  # grid-invariant operand, single-buffered, DMA'd once
        return pl.BlockSpec(shape, lambda i: (0, 0), **_SINGLE_BUFFER)

    weight_elems = IN_F * H1 + H1 * H2 + H2 * H3 + H3 * OUT_P
    cost = pl.CostEstimate(
        flops=2 * B * weight_elems,
        transcendentals=0,
        bytes_accessed=(B * IN_F * 4 + B * OUT_P * 2
                        + 2 * weight_elems + 4 * (H1 + H2 + H3 + OUT_P)),
    )

    out = pl.pallas_call(
        _mlp_kernel,
        out_shape=jax.ShapeDtypeStruct((B, OUT_P), jnp.bfloat16),
        grid_spec=pltpu.PrefetchScalarGridSpec(
            num_scalar_prefetch=0,
            grid=grid,
            in_specs=[
                pl.BlockSpec((tb, IN_F), lambda i: (i, 0)),   # raw f32 x tile (streamed)
                const((IN_F, H1)), const((1, H1)),            # W1, b1 (resident)
                const((H1, H2)),   const((1, H2)),            # W2, b2
                const((H2, H3)),   const((1, H3)),            # W3, b3
                const((H3, OUT_P)), const((1, OUT_P)),        # W4, b4
            ],
            out_specs=pl.BlockSpec((tb, OUT_P), lambda i: (i, 0)),
        ),
        compiler_params=pltpu.CompilerParams(
            dimension_semantics=("parallel",),
            vmem_limit_bytes=_vmem_limit_bytes(tb)),
        cost_estimate=cost,
    )(x, w1p, b1p, w2p, b2p, w3p, b3p, w4p, b4p)

    return out[:, :OUT_F].astype(jnp.float32)


def init_params(key):
    """Deterministic init matching nn.Linear default (U(-1/sqrt(fan_in), +))."""
    def linear(key, fan_in, fan_out):
        kw, kb = jax.random.split(key)
        bound = 1.0 / jnp.sqrt(fan_in)
        w = jax.random.uniform(kw, (fan_in, fan_out), jnp.float32, -bound, bound)
        b = jax.random.uniform(kb, (fan_out,), jnp.float32, -bound, bound)
        return w, b

    k1, k2, k3, k4 = jax.random.split(key, 4)
    w1, b1 = linear(k1, IN_F, H1)
    w2, b2 = linear(k2, H1, H2)
    w3, b3 = linear(k3, H2, H3)
    w4, b4 = linear(k4, H3, OUT_F)
    return (w1, b1, w2, b2, w3, b3, w4, b4)


def _reference_f32(x, params):
    w1, b1, w2, b2, w3, b3, w4, b4 = params
    h = jnp.maximum(x @ w1 + b1, 0.0)
    h = jnp.maximum(h @ w2 + b2, 0.0)
    h = jnp.maximum(h @ w3 + b3, 0.0)
    return h @ w4 + b4


def _reference_bf16(x, params):
    """Pure-JAX reference matching the kernel's bf16-operand / f32-accumulate math
    (including the bf16 output writeback)."""
    w1, b1, w2, b2, w3, b3, w4, b4 = params
    bf, f32 = jnp.bfloat16, jnp.float32
    h = x.astype(bf)
    h = jnp.maximum(jnp.dot(h, w1.astype(bf), preferred_element_type=f32) + b1, 0.0).astype(bf)
    h = jnp.maximum(jnp.dot(h, w2.astype(bf), preferred_element_type=f32) + b2, 0.0).astype(bf)
    h = jnp.maximum(jnp.dot(h, w3.astype(bf), preferred_element_type=f32) + b3, 0.0).astype(bf)
    o = jnp.dot(h, w4.astype(bf), preferred_element_type=f32) + b4
    return o.astype(bf).astype(f32)


if __name__ == "__main__":
    key = jax.random.PRNGKey(0)
    kx, kp = jax.random.split(key)

    params = init_params(kp)
    prepped = prepare_params(params)

    # Small correctness check (batch = 2, single full-extent tile).
    x_small = jax.random.normal(kx, (2, IN_F), jnp.float32)
    out_small = jax.block_until_ready(classifier_forward(x_small, prepped))
    assert out_small.shape == (2, OUT_F), out_small.shape
    assert jnp.allclose(out_small, _reference_bf16(x_small, params),
                        atol=5e-3, rtol=5e-3), "mismatch vs bf16 reference (small)"
    assert jnp.allclose(out_small, _reference_f32(x_small, params),
                        atol=3e-2, rtol=3e-2), "mismatch vs f32 reference (small)"

    # Larger batch: exercises multi-step grid / partial final tile / resident weights.
    x_big = jax.random.normal(kx, (2000, IN_F), jnp.float32)
    out_big = jax.block_until_ready(classifier_forward(x_big, prepped))
    assert out_big.shape == (2000, OUT_F), out_big.shape
    assert jnp.allclose(out_big, _reference_bf16(x_big, params),
                        atol=5e-3, rtol=5e-3), "mismatch vs bf16 reference (big)"

    print("KERNEL_OK")
</pallas_src>

<mosaic_0001>
module attributes {stable_mosaic.version = 11 : i64} {
  func.func @_mlp_kernel(%arg0: i32, %arg1: memref<2x429xf32, #tpu.memory_space<vmem>>, %arg2: memref<429x1024xbf16, #tpu.memory_space<vmem>>, %arg3: memref<1x1024xf32, #tpu.memory_space<vmem>>, %arg4: memref<1024x512xbf16, #tpu.memory_space<vmem>>, %arg5: memref<1x512xf32, #tpu.memory_space<vmem>>, %arg6: memref<512x128xbf16, #tpu.memory_space<vmem>>, %arg7: memref<1x128xf32, #tpu.memory_space<vmem>>, %arg8: memref<128x128xbf16, #tpu.memory_space<vmem>>, %arg9: memref<1x128xf32, #tpu.memory_space<vmem>>, %arg10: memref<2x128xbf16, #tpu.memory_space<vmem>>) attributes {dimension_semantics = [#tpu.dimension_semantics<parallel>], iteration_bounds = array<i64: 1>, scalar_prefetch = 0 : i64, scratch_operands = 0 : i64, tpu.core_type = #tpu.core_type<tc>, window_params = [{transform_indices = @transform_0, window_bounds = array<i64: 2, 429>}, {pipeline_mode = #tpu.pipeline_mode<synchronous>, transform_indices = @transform_1, window_bounds = array<i64: 429, 1024>}, {pipeline_mode = #tpu.pipeline_mode<synchronous>, transform_indices = @transform_2, window_bounds = array<i64: 1, 1024>}, {pipeline_mode = #tpu.pipeline_mode<synchronous>, transform_indices = @transform_3, window_bounds = array<i64: 1024, 512>}, {pipeline_mode = #tpu.pipeline_mode<synchronous>, transform_indices = @transform_4, window_bounds = array<i64: 1, 512>}, {pipeline_mode = #tpu.pipeline_mode<synchronous>, transform_indices = @transform_5, window_bounds = array<i64: 512, 128>}, {pipeline_mode = #tpu.pipeline_mode<synchronous>, transform_indices = @transform_6, window_bounds = array<i64: 1, 128>}, {pipeline_mode = #tpu.pipeline_mode<synchronous>, transform_indices = @transform_7, window_bounds = array<i64: 128, 128>}, {pipeline_mode = #tpu.pipeline_mode<synchronous>, transform_indices = @transform_8, window_bounds = array<i64: 1, 128>}, {transform_indices = @transform_9, window_bounds = array<i64: 2, 128>}]} {
    %c0 = arith.constant 0 : index
    %c0_0 = arith.constant 0 : index
    %0 = vector.load %arg1[%c0, %c0_0] : memref<2x429xf32, #tpu.memory_space<vmem>>, vector<2x429xf32>
    %1 = arith.truncf %0 : vector<2x429xf32> to vector<2x429xbf16>
    %c0_1 = arith.constant 0 : index
    %c0_2 = arith.constant 0 : index
    %2 = vector.load %arg2[%c0_1, %c0_2] : memref<429x1024xbf16, #tpu.memory_space<vmem>>, vector<429x1024xbf16>
    %cst = arith.constant dense<0.000000e+00> : vector<2x1024xf32>
    %3 = tpu.matmul %1, %2, %cst {dimension_numbers = #tpu.dot_dimension_numbers<[1], [0], [0], [1], [0, 0, 1, 1], [], []>} : vector<2x429xbf16>, vector<429x1024xbf16>, vector<2x1024xf32> -> vector<2x1024xf32>
    %c0_3 = arith.constant 0 : index
    %c0_4 = arith.constant 0 : index
    %4 = vector.load %arg3[%c0_3, %c0_4] : memref<1x1024xf32, #tpu.memory_space<vmem>>, vector<1x1024xf32>
    %5 = vector.broadcast %4 : vector<1x1024xf32> to vector<2x1024xf32>
    %6 = arith.addf %3, %5 : vector<2x1024xf32>
    %cst_5 = arith.constant 0.000000e+00 : f32
    %7 = vector.broadcast %cst_5 : f32 to vector<2x1024xf32>
    %8 = arith.maximumf %6, %7 : vector<2x1024xf32>
    %9 = arith.truncf %8 : vector<2x1024xf32> to vector<2x1024xbf16>
    %c0_6 = arith.constant 0 : index
    %c0_7 = arith.constant 0 : index
    %10 = vector.load %arg4[%c0_6, %c0_7] : memref<1024x512xbf16, #tpu.memory_space<vmem>>, vector<1024x512xbf16>
    %cst_8 = arith.constant dense<0.000000e+00> : vector<2x512xf32>
    %11 = tpu.matmul %9, %10, %cst_8 {dimension_numbers = #tpu.dot_dimension_numbers<[1], [0], [0], [1], [0, 0, 1, 1], [], []>} : vector<2x1024xbf16>, vector<1024x512xbf16>, vector<2x512xf32> -> vector<2x512xf32>
    %c0_9 = arith.constant 0 : index
    %c0_10 = arith.constant 0 : index
    %12 = vector.load %arg5[%c0_9, %c0_10] : memref<1x512xf32, #tpu.memory_space<vmem>>, vector<1x512xf32>
    %13 = vector.broadcast %12 : vector<1x512xf32> to vector<2x512xf32>
    %14 = arith.addf %11, %13 : vector<2x512xf32>
    %cst_11 = arith.constant 0.000000e+00 : f32
    %15 = vector.broadcast %cst_11 : f32 to vector<2x512xf32>
    %16 = arith.maximumf %14, %15 : vector<2x512xf32>
    %17 = arith.truncf %16 : vector<2x512xf32> to vector<2x512xbf16>
    %c0_12 = arith.constant 0 : index
    %c0_13 = arith.constant 0 : index
    %18 = vector.load %arg6[%c0_12, %c0_13] : memref<512x128xbf16, #tpu.memory_space<vmem>>, vector<512x128xbf16>
    %cst_14 = arith.constant dense<0.000000e+00> : vector<2x128xf32>
    %19 = tpu.matmul %17, %18, %cst_14 {dimension_numbers = #tpu.dot_dimension_numbers<[1], [0], [0], [1], [0, 0, 1, 1], [], []>} : vector<2x512xbf16>, vector<512x128xbf16>, vector<2x128xf32> -> vector<2x128xf32>
    %c0_15 = arith.constant 0 : index
    %c0_16 = arith.constant 0 : index
    %20 = vector.load %arg7[%c0_15, %c0_16] : memref<1x128xf32, #tpu.memory_space<vmem>>, vector<1x128xf32>
    %21 = vector.broadcast %20 : vector<1x128xf32> to vector<2x128xf32>
    %22 = arith.addf %19, %21 : vector<2x128xf32>
    %cst_17 = arith.constant 0.000000e+00 : f32
    %23 = vector.broadcast %cst_17 : f32 to vector<2x128xf32>
    %24 = arith.maximumf %22, %23 : vector<2x128xf32>
    %25 = arith.truncf %24 : vector<2x128xf32> to vector<2x128xbf16>
    %c0_18 = arith.constant 0 : index
    %c0_19 = arith.constant 0 : index
    %26 = vector.load %arg8[%c0_18, %c0_19] : memref<128x128xbf16, #tpu.memory_space<vmem>>, vector<128x128xbf16>
    %cst_20 = arith.constant dense<0.000000e+00> : vector<2x128xf32>
    %27 = tpu.matmul %25, %26, %cst_20 {dimension_numbers = #tpu.dot_dimension_numbers<[1], [0], [0], [1], [0, 0, 1, 1], [], []>} : vector<2x128xbf16>, vector<128x128xbf16>, vector<2x128xf32> -> vector<2x128xf32>
    %c0_21 = arith.constant 0 : index
    %c0_22 = arith.constant 0 : index
    %28 = vector.load %arg9[%c0_21, %c0_22] : memref<1x128xf32, #tpu.memory_space<vmem>>, vector<1x128xf32>
    %29 = vector.broadcast %28 : vector<1x128xf32> to vector<2x128xf32>
    %30 = arith.addf %27, %29 : vector<2x128xf32>
    %31 = arith.truncf %30 : vector<2x128xf32> to vector<2x128xbf16>
    %c0_23 = arith.constant 0 : index
    %c0_24 = arith.constant 0 : index
    %32 = vector.load %arg10[%c0_23, %c0_24] : memref<2x128xbf16, #tpu.memory_space<vmem>>, vector<2x128xbf16>
    tpu.vector_store %arg10[%c0_23, %c0_24], %31 {strides = array<i32>} : memref<2x128xbf16, #tpu.memory_space<vmem>>, vector<2x128xbf16>,
    return
  }
  func.func @transform_0(%arg0: i32) -> (i32, i32) {
    %c0_i32 = arith.constant 0 : i32
    %c0_i32_0 = arith.constant 0 : i32
    return %arg0, %c0_i32 : i32, i32
  }
  func.func @transform_1(%arg0: i32) -> (i32, i32) {
    %c0_i32 = arith.constant 0 : i32
    %c0_i32_0 = arith.constant 0 : i32
    %c0_i32_1 = arith.constant 0 : i32
    return %c0_i32, %c0_i32_0 : i32, i32
  }
  func.func @transform_2(%arg0: i32) -> (i32, i32) {
    %c0_i32 = arith.constant 0 : i32
    %c0_i32_0 = arith.constant 0 : i32
    %c0_i32_1 = arith.constant 0 : i32
    return %c0_i32, %c0_i32_0 : i32, i32
  }
  func.func @transform_3(%arg0: i32) -> (i32, i32) {
    %c0_i32 = arith.constant 0 : i32
    %c0_i32_0 = arith.constant 0 : i32
    %c0_i32_1 = arith.constant 0 : i32
    return %c0_i32, %c0_i32_0 : i32, i32
  }
  func.func @transform_4(%arg0: i32) -> (i32, i32) {
    %c0_i32 = arith.constant 0 : i32
    %c0_i32_0 = arith.constant 0 : i32
    %c0_i32_1 = arith.constant 0 : i32
    return %c0_i32, %c0_i32_0 : i32, i32
  }
  func.func @transform_5(%arg0: i32) -> (i32, i32) {
    %c0_i32 = arith.constant 0 : i32
    %c0_i32_0 = arith.constant 0 : i32
    %c0_i32_1 = arith.constant 0 : i32
    return %c0_i32, %c0_i32_0 : i32, i32
  }
  func.func @transform_6(%arg0: i32) -> (i32, i32) {
    %c0_i32 = arith.constant 0 : i32
    %c0_i32_0 = arith.constant 0 : i32
    %c0_i32_1 = arith.constant 0 : i32
    return %c0_i32, %c0_i32_0 : i32, i32
  }
  func.func @transform_7(%arg0: i32) -> (i32, i32) {
    %c0_i32 = arith.constant 0 : i32
    %c0_i32_0 = arith.constant 0 : i32
    %c0_i32_1 = arith.constant 0 : i32
    return %c0_i32, %c0_i32_0 : i32, i32
  }
  func.func @transform_8(%arg0: i32) -> (i32, i32) {
    %c0_i32 = arith.constant 0 : i32
    %c0_i32_0 = arith.constant 0 : i32
    %c0_i32_1 = arith.constant 0 : i32
    return %c0_i32, %c0_i32_0 : i32, i32
  }
  func.func @transform_9(%arg0: i32) -> (i32, i32) {
    %c0_i32 = arith.constant 0 : i32
    %c0_i32_0 = arith.constant 0 : i32
    return %arg0, %c0_i32 : i32, i32
  }
}

</mosaic_0001>

<llo_original>
// kernel: classifier_forward.1
$region0: #{classifier_forward.1}
  #allocation0 [shape = 'u32[]', space=smem, size = 0x4, offset = 0x4, fixed_abs, tag = 'smem constant byte address 0x4 - core index']
  #allocation1 [shape = 'u32[144,128]{1,0:T(1,128)}', space=vmem, size = 0x12000, scoped, tag = 'internal scratch']
  %s0 = inlined_call_operand.hbm [shape: f32[2,429], index: 0, kind: input, shape index: {}]
  %s1 = inlined_call_operand.hbm [shape: bf16[429,1024], index: 1, kind: input, shape index: {}]
  %s2 = inlined_call_operand.hbm [shape: f32[1,1024], index: 2, kind: input, shape index: {}]
  %s3 = inlined_call_operand.hbm [shape: bf16[1024,512], index: 3, kind: input, shape index: {}]
  %s4 = inlined_call_operand.vmem [shape: f32[1,512], index: 4, kind: input, shape index: {}]
  %s5 = inlined_call_operand.hbm [shape: bf16[512,128], index: 5, kind: input, shape index: {}]
  %s6 = inlined_call_operand.vmem [shape: f32[1,128], index: 6, kind: input, shape index: {}]
  %s7 = inlined_call_operand.hbm [shape: bf16[128,128], index: 7, kind: input, shape index: {}]
  %s8 = inlined_call_operand.vmem [shape: f32[1,128], index: 8, kind: input, shape index: {}]
  %s9 = inlined_call_operand.vmem [shape: bf16[2,128], index: 9, kind: output, shape index: {}]
  %s10 = sld [smem:[#allocation0]]
  $region70: #{classifier_forward.1} parent=0
    _
  %s12 = ssub.s32 1, %s10
  %s13 = scalar_select 0, %s12, %s10
  $region1: #{classifier_forward.1} parent=0
    #allocation2 [shape = 'u8[4096]{0}', space=vmem, size = 0x1000, scoped, tag = 'input window, operand 0, single buffered']
    #allocation3 [shape = 's32[1]{0}', space=sflag, size = 0x4, scoped, tag = 'scoped memory for classifier_forward.1']
    #allocation4 [shape = 'u8[884736]{0}', space=vmem, size = 0xd8000, scoped, tag = 'input window, operand 1, single buffered']
    #allocation5 [shape = 's32[1]{0}', space=sflag, size = 0x4, scoped, tag = 'scoped memory for classifier_forward.1']
    #allocation6 [shape = 'u8[4096]{0}', space=vmem, size = 0x1000, scoped, tag = 'input window, operand 2, single buffered']
    #allocation7 [shape = 'u8[1048576]{0}', space=vmem, size = 0x100000, scoped, tag = 'input window, operand 3, single buffered']
    #allocation8 [shape = 's32[1]{0}', space=sflag, size = 0x4, scoped, tag = 'scoped memory for classifier_forward.1']
    #allocation9 [shape = 'u8[131072]{0}', space=vmem, size = 0x20000, scoped, tag = 'input window, operand 5, single buffered']
    #allocation10 [shape = 'u8[32768]{0}', space=vmem, size = 0x8000, scoped, tag = 'input window, operand 7, single buffered']
    #allocation11 [shape = 's32[1]{0}', space=sflag, size = 0x4, scoped, tag = 'scoped memory for classifier_forward.1']
    %14 = vsyncpa [#allocation3], 0
    %15 = vsyncpa [#allocation5], 0
    %16 = vsyncpa [#allocation8], 0
    %17 = vsyncpa [#allocation11], 0
    // Predicated region
    $region2: #{classifier_forward.1} parent=1 // pred_check
      _
    $region3: #{classifier_forward.1} parent=1 // pred_check_branch
      %19 = sbr.rel (0) target = $region5
    $region4: #{classifier_forward.1} parent=1 // pred_region
      %s21 = ssub.s32 128, 128
      %22 = vsyncadd [#allocation3], %s21
      %s24 = sshll.u32 [#allocation2], 4
      %s25 = int_to_ptr.vmem [resolvable:$true] %s24
      %27 = dma.hbm_to_vmem [thread:$0]  %s0, 128, %s25, [#allocation3]
    $region5: #{classifier_forward.1} parent=1 // pred_fallthru
      _
    // Predicated region
    $region6: #{classifier_forward.1} parent=1 // pred_check
      _
    $region7: #{classifier_forward.1} parent=1 // pred_check_branch
      %29 = sbr.rel (0) target = $region9
    $region8: #{classifier_forward.1} parent=1 // pred_region
      %s31 = ssub.s32 27648, 27648
      %32 = vsyncadd [#allocation5], %s31
      %s33 = sshll.u32 [#allocation4], 4
      %s34 = int_to_ptr.vmem [resolvable:$true] %s33
      %39 = dma.hbm_to_vmem [thread:$0]  %s1, 27648, %s34, [#allocation5], 512, 512, 32
    $region9: #{classifier_forward.1} parent=1 // pred_fallthru
      _
    // Predicated region
    $region10: #{classifier_forward.1} parent=1 // pred_check
      _
    $region11: #{classifier_forward.1} parent=1 // pred_check_branch
      %41 = sbr.rel (0) target = $region13
    $region12: #{classifier_forward.1} parent=1 // pred_region
      %s43 = ssub.s32 128, 128
      %44 = vsyncadd [#allocation5], %s43
      %s46 = sshll.u32 [#allocation6], 4
      %s47 = int_to_ptr.vmem [resolvable:$true] %s46
      %49 = dma.hbm_to_vmem [thread:$0]  %s2, 128, %s47, [#allocation5]
    $region13: #{classifier_forward.1} parent=1 // pred_fallthru
      _
    // Predicated region
    $region14: #{classifier_forward.1} parent=1 // pred_check
      _
    $region15: #{classifier_forward.1} parent=1 // pred_check_branch
      %51 = sbr.rel (0) target = $region17
    $region16: #{classifier_forward.1} parent=1 // pred_region
      %s53 = ssub.s32 32768, 32768
      %54 = vsyncadd [#allocation8], %s53
      %s55 = sshll.u32 [#allocation7], 4
      %s56 = int_to_ptr.vmem [resolvable:$true] %s55
      %61 = dma.hbm_to_vmem [thread:$0]  %s3, 32768, %s56, [#allocation8], 256, 256, 16
    $region17: #{classifier_forward.1} parent=1 // pred_fallthru
      _
    // Predicated region
    $region18: #{classifier_forward.1} parent=1 // pred_check
      _
    $region19: #{classifier_forward.1} parent=1 // pred_check_branch
      %63 = sbr.rel (0) target = $region21
    $region20: #{classifier_forward.1} parent=1 // pred_region
      _
    $region21: #{classifier_forward.1} parent=1 // pred_fallthru
      _
    // Predicated region
    $region22: #{classifier_forward.1} parent=1 // pred_check
      _
    $region23: #{classifier_forward.1} parent=1 // pred_check_branch
      %65 = sbr.rel (0) target = $region25
    $region24: #{classifier_forward.1} parent=1 // pred_region
      %s67 = ssub.s32 4096, 4096
      %68 = vsyncadd [#allocation8], %s67
      %s69 = sshll.u32 [#allocation9], 4
      %s70 = int_to_ptr.vmem [resolvable:$true] %s69
      %75 = dma.hbm_to_vmem [thread:$0]  %s5, 4096, %s70, [#allocation8], 64, 64, 4
    $region25: #{classifier_forward.1} parent=1 // pred_fallthru
      _
    // Predicated region
    $region26: #{classifier_forward.1} parent=1 // pred_check
      _
    $region27: #{classifier_forward.1} parent=1 // pred_check_branch
      %77 = sbr.rel (0) target = $region29
    $region28: #{classifier_forward.1} parent=1 // pred_region
      _
    $region29: #{classifier_forward.1} parent=1 // pred_fallthru
      _
    // Predicated region
    $region30: #{classifier_forward.1} parent=1 // pred_check
      _
    $region31: #{classifier_forward.1} parent=1 // pred_check_branch
      %79 = sbr.rel (0) target = $region33
    $region32: #{classifier_forward.1} parent=1 // pred_region
      %s81 = ssub.s32 1024, 1024
      %82 = vsyncadd [#allocation11], %s81
      %s83 = sshll.u32 [#allocation10], 4
      %s84 = int_to_ptr.vmem [resolvable:$true] %s83
      %89 = dma.hbm_to_vmem [thread:$0]  %s7, 1024, %s84, [#allocation11], 64, 64, 4
    $region33: #{classifier_forward.1} parent=1 // pred_fallthru
      _
    // Predicated region
    $region34: #{classifier_forward.1} parent=1 // pred_check
      _
    $region35: #{classifier_forward.1} parent=1 // pred_check_branch
      %91 = sbr.rel (0) target = $region37
    $region36: #{classifier_forward.1} parent=1 // pred_region
      _
    $region37: #{classifier_forward.1} parent=1 // pred_fallthru
      _
    // Predicated region
    $region38: #{classifier_forward.1} parent=1 // pred_check
      _
    $region39: #{classifier_forward.1} parent=1 // pred_check_branch
      %93 = sbr.rel (0) target = $region41
    $region40: #{classifier_forward.1} parent=1 // pred_region
      %94 = dma.done [#allocation3], 128
    $region41: #{classifier_forward.1} parent=1 // pred_fallthru
      _
    // Predicated region
    $region42: #{classifier_forward.1} parent=1 // pred_check
      _
    $region43: #{classifier_forward.1} parent=1 // pred_check_branch
      %96 = sbr.rel (0) target = $region45
    $region44: #{classifier_forward.1} parent=1 // pred_region
      %97 = dma.done [#allocation5], 27648
    $region45: #{classifier_forward.1} parent=1 // pred_fallthru
      _
    // Predicated region
    $region46: #{classifier_forward.1} parent=1 // pred_check
      _
    $region47: #{classifier_forward.1} parent=1 // pred_check_branch
      %99 = sbr.rel (0) target = $region49
    $region48: #{classifier_forward.1} parent=1 // pred_region
      %100 = dma.done [#allocation5], 128
    $region49: #{classifier_forward.1} parent=1 // pred_fallthru
      _
    // Predicated region
    $region50: #{classifier_forward.1} parent=1 // pred_check
      _
    $region51: #{classifier_forward.1} parent=1 // pred_check_branch
      %102 = sbr.rel (0) target = $region53
    $region52: #{classifier_forward.1} parent=1 // pred_region
      %103 = dma.done [#allocation8], 32768
    $region53: #{classifier_forward.1} parent=1 // pred_fallthru
      _
    // Predicated region
    $region54: #{classifier_forward.1} parent=1 // pred_check
      _
    $region55: #{classifier_forward.1} parent=1 // pred_check_branch
      %105 = sbr.rel (0) target = $region57
    $region56: #{classifier_forward.1} parent=1 // pred_region
      %106 = dma.done [#allocation8], 4096
    $region57: #{classifier_forward.1} parent=1 // pred_fallthru
      _
    // Predicated region
    $region58: #{classifier_forward.1} parent=1 // pred_check
      _
    $region59: #{classifier_forward.1} parent=1 // pred_check_branch
      %108 = sbr.rel (0) target = $region61
    $region60: #{classifier_forward.1} parent=1 // pred_region
      %109 = dma.done [#allocation11], 1024
    $region61: #{classifier_forward.1} parent=1 // pred_fallthru
      _
    %v111 = vld [vmem:[#allocation2] sm:$0xff]
    %v113 = vcombine.high %v111, %v111
    %v115 = vunpack.c.l.s4 1983009808
    %v116 = vunpack.c.0.s8 %v115
    %v117 = vlaneseq
    %v118 = vshrl.u32 %v117, 7
    %v119 = vsub.s32 %v116, %v118
    %v120 = vrot.slane %v111, %v119
    %v122 = vunpack.c.l.s4 1983009808
    %v123 = vunpack.c.0.s8 %v122
    %v124 = vlaneseq
    %v125 = vshrl.u32 %v124, 7
    %v126 = vsub.s32 %v123, %v125
    %v127 = vrot.slane %v113, %v126
    %v128 = vcombine.high %v120, %v120
    %v129 = vcombine.high %v127, %v127
    %v134 = vpack.c.bf16 %v120, %v120
    %v135 = vpack.c.bf16 %v128, %v128
    %v136 = vpack.c.bf16 %v127, %v127
    %v137 = vpack.c.bf16 %v129, %v129
    %v138 = vld [vmem:[#allocation4] sm:$0xff]
    %v139 = vld [vmem:[#allocation4 + $0x8] sm:$0xff]
    %v140 = vld [vmem:[#allocation4 + $0x10] sm:$0xff]
    %v141 = vld [vmem:[#allocation4 + $0x18] sm:$0xff]
    %v142 = vld [vmem:[#allocation4 + $0x20] sm:$0xff]
    %v143 = vld [vmem:[#allocation4 + $0x28] sm:$0xff]
    %v144 = vld [vmem:[#allocation4 + $0x30] sm:$0xff]
    %v145 = vld [vmem:[#allocation4 + $0x38] sm:$0xff]
    %v146 = vld [vmem:[#allocation4 + $0x40] sm:$0xff]
    %v147 = vld [vmem:[#allocation4 + $0x48] sm:$0xff]
    %v148 = vld [vmem:[#allocation4 + $0x50] sm:$0xff]
    %v149 = vld [vmem:[#allocation4 + $0x58] sm:$0xff]
    %v150 = vld [vmem:[#allocation4 + $0x60] sm:$0xff]
    %v151 = vld [vmem:[#allocation4 + $0x68] sm:$0xff]
    %v152 = vld [vmem:[#allocation4 + $0x70] sm:$0xff]
    %v153 = vld [vmem:[#allocation4 + $0x78] sm:$0xff]
    %v154 = vld [vmem:[#allocation4 + $0x80] sm:$0xff]
    %v155 = vld [vmem:[#allocation4 + $0x88] sm:$0xff]
    %v156 = vld [vmem:[#allocation4 + $0x90] sm:$0xff]
    %v157 = vld [vmem:[#allocation4 + $0x98] sm:$0xff]
    %v158 = vld [vmem:[#allocation4 + $0xa0] sm:$0xff]
    %v159 = vld [vmem:[#allocation4 + $0xa8] sm:$0xff]
    %v160 = vld [vmem:[#allocation4 + $0xb0] sm:$0xff]
    %v161 = vld [vmem:[#allocation4 + $0xb8] sm:$0xff]
    %v162 = vld [vmem:[#allocation4 + $0xc0] sm:$0xff]
    %v163 = vld [vmem:[#allocation4 + $0xc8] sm:$0xff]
    %v164 = vld [vmem:[#allocation4 + $0xd0] sm:$0xff]
    %v165 = vld [vmem:[#allocation4 + $0xd8] sm:$0xff]
    %v166 = vld [vmem:[#allocation4 + $0xe0] sm:$0xff]
    %v167 = vld [vmem:[#allocation4 + $0xe8] sm:$0xff]
    %v168 = vld [vmem:[#allocation4 + $0xf0] sm:$0xff]
    %v169 = vld [vmem:[#allocation4 + $0xf8] sm:$0xff]
    %v170 = vld [vmem:[#allocation4 + $0x100] sm:$0xff]
    %v171 = vld [vmem:[#allocation4 + $0x108] sm:$0xff]
    %v172 = vld [vmem:[#allocation4 + $0x110] sm:$0xff]
    %v173 = vld [vmem:[#allocation4 + $0x118] sm:$0xff]
    %v174 = vld [vmem:[#allocation4 + $0x120] sm:$0xff]
    %v175 = vld [vmem:[#allocation4 + $0x128] sm:$0xff]
    %v176 = vld [vmem:[#allocation4 + $0x130] sm:$0xff]
    %v177 = vld [vmem:[#allocation4 + $0x138] sm:$0xff]
    %v178 = vld [vmem:[#allocation4 + $0x140] sm:$0xff]
    %v179 = vld [vmem:[#allocation4 + $0x148] sm:$0xff]
    %v180 = vld [vmem:[#allocation4 + $0x150] sm:$0xff]
    %v181 = vld [vmem:[#allocation4 + $0x158] sm:$0xff]
    %v182 = vld [vmem:[#allocation4 + $0x160] sm:$0xff]
    %v183 = vld [vmem:[#allocation4 + $0x168] sm:$0xff]
    %v184 = vld [vmem:[#allocation4 + $0x170] sm:$0xff]
    %v185 = vld [vmem:[#allocation4 + $0x178] sm:$0xff]
    %v186 = vld [vmem:[#allocation4 + $0x180] sm:$0xff]
    %v187 = vld [vmem:[#allocation4 + $0x188] sm:$0xff]
    %v188 = vld [vmem:[#allocation4 + $0x190] sm:$0xff]
    %v189 = vld [vmem:[#allocation4 + $0x198] sm:$0xff]
    %v190 = vld [vmem:[#allocation4 + $0x1a0] sm:$0xff]
    %v191 = vld [vmem:[#allocation4 + $0x1a8] sm:$0xff]
    %v192 = vld [vmem:[#allocation4 + $0x1b0] sm:$0xff]
    %v193 = vld [vmem:[#allocation4 + $0x1b8] sm:$0xff]
    %v194 = vld [vmem:[#allocation4 + $0x1c0] sm:$0xff]
    %v195 = vld [vmem:[#allocation4 + $0x1c8] sm:$0xff]
    %v196 = vld [vmem:[#allocation4 + $0x1d0] sm:$0xff]
    %v197 = vld [vmem:[#allocation4 + $0x1d8] sm:$0xff]
    %v198 = vld [vmem:[#allocation4 + $0x1e0] sm:$0xff]
    %v199 = vld [vmem:[#allocation4 + $0x1e8] sm:$0xff]
    %v200 = vld [vmem:[#allocation4 + $0x1f0] sm:$0xff]
    %v201 = vld [vmem:[#allocation4 + $0x1f8] sm:$0xff]
    %v202 = vld [vmem:[#allocation4 + $0x200] sm:$0xff]
    %v203 = vld [vmem:[#allocation4 + $0x208] sm:$0xff]
    %v204 = vld [vmem:[#allocation4 + $0x210] sm:$0xff]
    %v205 = vld [vmem:[#allocation4 + $0x218] sm:$0xff]
    %v206 = vld [vmem:[#allocation4 + $0x220] sm:$0xff]
    %v207 = vld [vmem:[#allocation4 + $0x228] sm:$0xff]
    %v208 = vld [vmem:[#allocation4 + $0x230] sm:$0xff]
    %v209 = vld [vmem:[#allocation4 + $0x238] sm:$0xff]
    %v210 = vld [vmem:[#allocation4 + $0x240] sm:$0xff]
    %v211 = vld [vmem:[#allocation4 + $0x248] sm:$0xff]
    %v212 = vld [vmem:[#allocation4 + $0x250] sm:$0xff]
    %v213 = vld [vmem:[#allocation4 + $0x258] sm:$0xff]
    %v214 = vld [vmem:[#allocation4 + $0x260] sm:$0xff]
    %v215 = vld [vmem:[#allocation4 + $0x268] sm:$0xff]
    %v216 = vld [vmem:[#allocation4 + $0x270] sm:$0xff]
    %v217 = vld [vmem:[#allocation4 + $0x278] sm:$0xff]
    %v218 = vld [vmem:[#allocation4 + $0x280] sm:$0xff]
    %v219 = vld [vmem:[#allocation4 + $0x288] sm:$0xff]
    %v220 = vld [vmem:[#allocation4 + $0x290] sm:$0xff]
    %v221 = vld [vmem:[#allocation4 + $0x298] sm:$0xff]
    %v222 = vld [vmem:[#allocation4 + $0x2a0] sm:$0xff]
    %v223 = vld [vmem:[#allocation4 + $0x2a8] sm:$0xff]
    %v224 = vld [vmem:[#allocation4 + $0x2b0] sm:$0xff]
    %v225 = vld [vmem:[#allocation4 + $0x2b8] sm:$0xff]
    %v226 = vld [vmem:[#allocation4 + $0x2c0] sm:$0xff]
    %v227 = vld [vmem:[#allocation4 + $0x2c8] sm:$0xff]
    %v228 = vld [vmem:[#allocation4 + $0x2d0] sm:$0xff]
    %v229 = vld [vmem:[#allocation4 + $0x2d8] sm:$0xff]
    %v230 = vld [vmem:[#allocation4 + $0x2e0] sm:$0xff]
    %v231 = vld [vmem:[#allocation4 + $0x2e8] sm:$0xff]
    %v232 = vld [vmem:[#allocation4 + $0x2f0] sm:$0xff]
    %v233 = vld [vmem:[#allocation4 + $0x2f8] sm:$0xff]
    %v234 = vld [vmem:[#allocation4 + $0x300] sm:$0xff]
    %v235 = vld [vmem:[#allocation4 + $0x308] sm:$0xff]
    %v236 = vld [vmem:[#allocation4 + $0x310] sm:$0xff]
    %v237 = vld [vmem:[#allocation4 + $0x318] sm:$0xff]
    %v238 = vld [vmem:[#allocation4 + $0x320] sm:$0xff]
    %v239 = vld [vmem:[#allocation4 + $0x328] sm:$0xff]
    %v240 = vld [vmem:[#allocation4 + $0x330] sm:$0xff]
    %v241 = vld [vmem:[#allocation4 + $0x338] sm:$0xff]
    %v242 = vld [vmem:[#allocation4 + $0x340] sm:$0xff]
    %v243 = vld [vmem:[#allocation4 + $0x348] sm:$0xff]
    %v244 = vld [vmem:[#allocation4 + $0x350] sm:$0xff]
    %v245 = vld [vmem:[#allocation4 + $0x358] sm:$0xff]
    %v246 = vld [vmem:[#allocation4 + $0x360] sm:$0xff]
    %v247 = vld [vmem:[#allocation4 + $0x368] sm:$0xff]
    %v248 = vld [vmem:[#allocation4 + $0x370] sm:$0xff]
    %v249 = vld [vmem:[#allocation4 + $0x378] sm:$0xff]
    %v250 = vld [vmem:[#allocation4 + $0x380] sm:$0xff]
    %v251 = vld [vmem:[#allocation4 + $0x388] sm:$0xff]
    %v252 = vld [vmem:[#allocation4 + $0x390] sm:$0xff]
    %v253 = vld [vmem:[#allocation4 + $0x398] sm:$0xff]
    %v254 = vld [vmem:[#allocation4 + $0x3a0] sm:$0xff]
    %v255 = vld [vmem:[#allocation4 + $0x3a8] sm:$0xff]
    %v256 = vld [vmem:[#allocation4 + $0x3b0] sm:$0xff]
    %v257 = vld [vmem:[#allocation4 + $0x3b8] sm:$0xff]
    %v258 = vld [vmem:[#allocation4 + $0x3c0] sm:$0xff]
    %v259 = vld [vmem:[#allocation4 + $0x3c8] sm:$0xff]
    %v260 = vld [vmem:[#allocation4 + $0x3d0] sm:$0xff]
    %v261 = vld [vmem:[#allocation4 + $0x3d8] sm:$0xff]
    %v262 = vld [vmem:[#allocation4 + $0x3e0] sm:$0xff]
    %v263 = vld [vmem:[#allocation4 + $0x3e8] sm:$0xff]
    %v264 = vld [vmem:[#allocation4 + $0x3f0] sm:$0xff]
    %v265 = vld [vmem:[#allocation4 + $0x3f8] sm:$0xff]
    %v266 = vld [vmem:[#allocation4 + $0x400] sm:$0xff]
    %v267 = vld [vmem:[#allocation4 + $0x408] sm:$0xff]
    %v268 = vld [vmem:[#allocation4 + $0x410] sm:$0xff]
    %v269 = vld [vmem:[#allocation4 + $0x418] sm:$0xff]
    %v270 = vld [vmem:[#allocation4 + $0x420] sm:$0xff]
    %v271 = vld [vmem:[#allocation4 + $0x428] sm:$0xff]
    %v272 = vld [vmem:[#allocation4 + $0x430] sm:$0xff]
    %v273 = vld [vmem:[#allocation4 + $0x438] sm:$0xff]
    %v274 = vld [vmem:[#allocation4 + $0x440] sm:$0xff]
    %v275 = vld [vmem:[#allocation4 + $0x448] sm:$0xff]
    %v276 = vld [vmem:[#allocation4 + $0x450] sm:$0xff]
    %v277 = vld [vmem:[#allocation4 + $0x458] sm:$0xff]
    %v278 = vld [vmem:[#allocation4 + $0x460] sm:$0xff]
    %v279 = vld [vmem:[#allocation4 + $0x468] sm:$0xff]
    %v280 = vld [vmem:[#allocation4 + $0x470] sm:$0xff]
    %v281 = vld [vmem:[#allocation4 + $0x478] sm:$0xff]
    %v282 = vld [vmem:[#allocation4 + $0x480] sm:$0xff]
    %v283 = vld [vmem:[#allocation4 + $0x488] sm:$0xff]
    %v284 = vld [vmem:[#allocation4 + $0x490] sm:$0xff]
    %v285 = vld [vmem:[#allocation4 + $0x498] sm:$0xff]
    %v286 = vld [vmem:[#allocation4 + $0x4a0] sm:$0xff]
    %v287 = vld [vmem:[#allocation4 + $0x4a8] sm:$0xff]
    %v288 = vld [vmem:[#allocation4 + $0x4b0] sm:$0xff]
    %v289 = vld [vmem:[#allocation4 + $0x4b8] sm:$0xff]
    %v290 = vld [vmem:[#allocation4 + $0x4c0] sm:$0xff]
    %v291 = vld [vmem:[#allocation4 + $0x4c8] sm:$0xff]
    %v292 = vld [vmem:[#allocation4 + $0x4d0] sm:$0xff]
    %v293 = vld [vmem:[#allocation4 + $0x4d8] sm:$0xff]
    %v294 = vld [vmem:[#allocation4 + $0x4e0] sm:$0xff]
    %v295 = vld [vmem:[#allocation4 + $0x4e8] sm:$0xff]
    %v296 = vld [vmem:[#allocation4 + $0x4f0] sm:$0xff]
    %v297 = vld [vmem:[#allocation4 + $0x4f8] sm:$0xff]
    %v298 = vld [vmem:[#allocation4 + $0x500] sm:$0xff]
    %v299 = vld [vmem:[#allocation4 + $0x508] sm:$0xff]
    %v300 = vld [vmem:[#allocation4 + $0x510] sm:$0xff]
    %v301 = vld [vmem:[#allocation4 + $0x518] sm:$0xff]
    %v302 = vld [vmem:[#allocation4 + $0x520] sm:$0xff]
    %v303 = vld [vmem:[#allocation4 + $0x528] sm:$0xff]
    %v304 = vld [vmem:[#allocation4 + $0x530] sm:$0xff]
    %v305 = vld [vmem:[#allocation4 + $0x538] sm:$0xff]
    %v306 = vld [vmem:[#allocation4 + $0x540] sm:$0xff]
    %v307 = vld [vmem:[#allocation4 + $0x548] sm:$0xff]
    %v308 = vld [vmem:[#allocation4 + $0x550] sm:$0xff]
    %v309 = vld [vmem:[#allocation4 + $0x558] sm:$0xff]
    %v310 = vld [vmem:[#allocation4 + $0x560] sm:$0xff]
    %v311 = vld [vmem:[#allocation4 + $0x568] sm:$0xff]
    %v312 = vld [vmem:[#allocation4 + $0x570] sm:$0xff]
    %v313 = vld [vmem:[#allocation4 + $0x578] sm:$0xff]
    %v314 = vld [vmem:[#allocation4 + $0x580] sm:$0xff]
    %v315 = vld [vmem:[#allocation4 + $0x588] sm:$0xff]
    %v316 = vld [vmem:[#allocation4 + $0x590] sm:$0xff]
    %v317 = vld [vmem:[#allocation4 + $0x598] sm:$0xff]
    %v318 = vld [vmem:[#allocation4 + $0x5a0] sm:$0xff]
    %v319 = vld [vmem:[#allocation4 + $0x5a8] sm:$0xff]
    %v320 = vld [vmem:[#allocation4 + $0x5b0] sm:$0xff]
    %v321 = vld [vmem:[#allocation4 + $0x5b8] sm:$0xff]
    %v322 = vld [vmem:[#allocation4 + $0x5c0] sm:$0xff]
    %v323 = vld [vmem:[#allocation4 + $0x5c8] sm:$0xff]
    %v324 = vld [vmem:[#allocation4 + $0x5d0] sm:$0xff]
    %v325 = vld [vmem:[#allocation4 + $0x5d8] sm:$0xff]
    %v326 = vld [vmem:[#allocation4 + $0x5e0] sm:$0xff]
    %v327 = vld [vmem:[#allocation4 + $0x5e8] sm:$0xff]
    %v328 = vld [vmem:[#allocation4 + $0x5f0] sm:$0xff]
    %v329 = vld [vmem:[#allocation4 + $0x5f8] sm:$0xff]
    %v330 = vld [vmem:[#allocation4 + $0x600] sm:$0xff]
    %v331 = vld [vmem:[#allocation4 + $0x608] sm:$0xff]
    %v332 = vld [vmem:[#allocation4 + $0x610] sm:$0xff]
    %v333 = vld [vmem:[#allocation4 + $0x618] sm:$0xff]
    %v334 = vld [vmem:[#allocation4 + $0x620] sm:$0xff]
    %v335 = vld [vmem:[#allocation4 + $0x628] sm:$0xff]
    %v336 = vld [vmem:[#allocation4 + $0x630] sm:$0xff]
    %v337 = vld [vmem:[#allocation4 + $0x638] sm:$0xff]
    %v338 = vld [vmem:[#allocation4 + $0x640] sm:$0xff]
    %v339 = vld [vmem:[#allocation4 + $0x648] sm:$0xff]
    %v340 = vld [vmem:[#allocation4 + $0x650] sm:$0xff]
    %v341 = vld [vmem:[#allocation4 + $0x658] sm:$0xff]
    %v342 = vld [vmem:[#allocation4 + $0x660] sm:$0xff]
    %v343 = vld [vmem:[#allocation4 + $0x668] sm:$0xff]
    %v344 = vld [vmem:[#allocation4 + $0x670] sm:$0xff]
    %v345 = vld [vmem:[#allocation4 + $0x678] sm:$0xff]
    %v346 = vld [vmem:[#allocation4 + $0x680] sm:$0xff]
    %v347 = vld [vmem:[#allocation4 + $0x688] sm:$0xff]
    %v348 = vld [vmem:[#allocation4 + $0x690] sm:$0xff]
    %v349 = vld [vmem:[#allocation4 + $0x698] sm:$0xff]
    %v350 = vld [vmem:[#allocation4 + $0x6a0] sm:$0x77]
    %v351 = vld [vmem:[#allocation4 + $0x6a8] sm:$0x77]
    %v352 = vld [vmem:[#allocation4 + $0x6b0] sm:$0x77]
    %v353 = vld [vmem:[#allocation4 + $0x6b8] sm:$0x77]
    %v354 = vld [vmem:[#allocation6] sm:$0xff]
    %v356 = vlaneseq
    %v357 = vshrl.u32 %v356, 7
    %v358 = vsub.s32 0, %v357
    %v359 = vrot.slane %v354, %v358
    %v360 = vlaneseq
    %v361 = vshrl.u32 %v360, 7
    %v362 = vsub.s32 1, %v361
    %v363 = vrot.slane %v354, %v362
    %v364 = vlaneseq
    %v365 = vshrl.u32 %v364, 7
    %v366 = vsub.s32 2, %v365
    %v367 = vrot.slane %v354, %v366
    %v368 = vlaneseq
    %v369 = vshrl.u32 %v368, 7
    %v370 = vsub.s32 3, %v369
    %v371 = vrot.slane %v354, %v370
    %v372 = vlaneseq
    %v373 = vshrl.u32 %v372, 7
    %v374 = vsub.s32 4, %v373
    %v375 = vrot.slane %v354, %v374
    %v376 = vlaneseq
    %v377 = vshrl.u32 %v376, 7
    %v378 = vsub.s32 5, %v377
    %v379 = vrot.slane %v354, %v378
    %v380 = vlaneseq
    %v381 = vshrl.u32 %v380, 7
    %v382 = vsub.s32 6, %v381
    %v383 = vrot.slane %v354, %v382
    %v384 = vlaneseq
    %v385 = vshrl.u32 %v384, 7
    %v386 = vsub.s32 7, %v385
    %v387 = vrot.slane %v354, %v386
    %v612 = vunpack.c.l.b16 %v138
    %v613 = vunpack.c.h.b16 %v138
    %v614 = vunpack.c.l.b16 %v139
    %v615 = vunpack.c.h.b16 %v139
    %v616 = vunpack.c.l.b16 %v140
    %v617 = vunpack.c.h.b16 %v140
    %v618 = vunpack.c.l.b16 %v141
    %v619 = vunpack.c.h.b16 %v141
    %v620 = vunpack.c.l.b16 %v142
    %v621 = vunpack.c.h.b16 %v142
    %v622 = vunpack.c.l.b16 %v143
    %v623 = vunpack.c.h.b16 %v143
    %v624 = vunpack.c.l.b16 %v144
    %v625 = vunpack.c.h.b16 %v144
    %v626 = vunpack.c.l.b16 %v145
    %v627 = vunpack.c.h.b16 %v145
    %v628 = vunpack.c.l.b16 %v146
    %v629 = vunpack.c.h.b16 %v146
    %v630 = vunpack.c.l.b16 %v147
    %v631 = vunpack.c.h.b16 %v147
    %v632 = vunpack.c.l.b16 %v148
    %v633 = vunpack.c.h.b16 %v148
    %v634 = vunpack.c.l.b16 %v149
    %v635 = vunpack.c.h.b16 %v149
    %v636 = vunpack.c.l.b16 %v150
    %v637 = vunpack.c.h.b16 %v150
    %v638 = vunpack.c.l.b16 %v151
    %v639 = vunpack.c.h.b16 %v151
    %v640 = vunpack.c.l.b16 %v152
    %v641 = vunpack.c.h.b16 %v152
    %v642 = vunpack.c.l.b16 %v153
    %v643 = vunpack.c.h.b16 %v153
    %v644 = vunpack.c.l.b16 %v154
    %v645 = vunpack.c.h.b16 %v154
    %v646 = vunpack.c.l.b16 %v155
    %v647 = vunpack.c.h.b16 %v155
    %v648 = vunpack.c.l.b16 %v156
    %v649 = vunpack.c.h.b16 %v156
    %v650 = vunpack.c.l.b16 %v157
    %v651 = vunpack.c.h.b16 %v157
    %v652 = vunpack.c.l.b16 %v158
    %v653 = vunpack.c.h.b16 %v158
    %v654 = vunpack.c.l.b16 %v159
    %v655 = vunpack.c.h.b16 %v159
    %v656 = vunpack.c.l.b16 %v160
    %v657 = vunpack.c.h.b16 %v160
    %v658 = vunpack.c.l.b16 %v161
    %v659 = vunpack.c.h.b16 %v161
    %v660 = vunpack.c.l.b16 %v162
    %v661 = vunpack.c.h.b16 %v162
    %v662 = vunpack.c.l.b16 %v163
    %v663 = vunpack.c.h.b16 %v163
    %v664 = vunpack.c.l.b16 %v164
    %v665 = vunpack.c.h.b16 %v164
    %v666 = vunpack.c.l.b16 %v165
    %v667 = vunpack.c.h.b16 %v165
    %v668 = vunpack.c.l.b16 %v166
    %v669 = vunpack.c.h.b16 %v166
    %v670 = vunpack.c.l.b16 %v167
    %v671 = vunpack.c.h.b16 %v167
    %v672 = vunpack.c.l.b16 %v168
    %v673 = vunpack.c.h.b16 %v168
    %v674 = vunpack.c.l.b16 %v169
    %v675 = vunpack.c.h.b16 %v169
    %v676 = vunpack.c.l.b16 %v170
    %v677 = vunpack.c.h.b16 %v170
    %v678 = vunpack.c.l.b16 %v171
    %v679 = vunpack.c.h.b16 %v171
    %v680 = vunpack.c.l.b16 %v172
    %v681 = vunpack.c.h.b16 %v172
    %v682 = vunpack.c.l.b16 %v173
    %v683 = vunpack.c.h.b16 %v173
    %v684 = vunpack.c.l.b16 %v174
    %v685 = vunpack.c.h.b16 %v174
    %v686 = vunpack.c.l.b16 %v175
    %v687 = vunpack.c.h.b16 %v175
    %v688 = vunpack.c.l.b16 %v176
    %v689 = vunpack.c.h.b16 %v176
    %v690 = vunpack.c.l.b16 %v177
    %v691 = vunpack.c.h.b16 %v177
    %v692 = vunpack.c.l.b16 %v178
    %v693 = vunpack.c.h.b16 %v178
    %v694 = vunpack.c.l.b16 %v179
    %v695 = vunpack.c.h.b16 %v179
    %v696 = vunpack.c.l.b16 %v180
    %v697 = vunpack.c.h.b16 %v180
    %v698 = vunpack.c.l.b16 %v181
    %v699 = vunpack.c.h.b16 %v181
    %v700 = vunpack.c.l.b16 %v182
    %v701 = vunpack.c.h.b16 %v182
    %v702 = vunpack.c.l.b16 %v183
    %v703 = vunpack.c.h.b16 %v183
    %v704 = vunpack.c.l.b16 %v184
    %v705 = vunpack.c.h.b16 %v184
    %v706 = vunpack.c.l.b16 %v185
    %v707 = vunpack.c.h.b16 %v185
    %v708 = vunpack.c.l.b16 %v186
    %v709 = vunpack.c.h.b16 %v186
    %v710 = vunpack.c.l.b16 %v187
    %v711 = vunpack.c.h.b16 %v187
    %v712 = vunpack.c.l.b16 %v188
    %v713 = vunpack.c.h.b16 %v188
    %v714 = vunpack.c.l.b16 %v189
    %v715 = vunpack.c.h.b16 %v189
    %v716 = vunpack.c.l.b16 %v190
    %v717 = vunpack.c.h.b16 %v190
    %v718 = vunpack.c.l.b16 %v191
    %v719 = vunpack.c.h.b16 %v191
    %v720 = vunpack.c.l.b16 %v192
    %v721 = vunpack.c.h.b16 %v192
    %v722 = vunpack.c.l.b16 %v193
    %v723 = vunpack.c.h.b16 %v193
    %v724 = vunpack.c.l.b16 %v194
    %v725 = vunpack.c.h.b16 %v194
    %v726 = vunpack.c.l.b16 %v195
    %v727 = vunpack.c.h.b16 %v195
    %v728 = vunpack.c.l.b16 %v196
    %v729 = vunpack.c.h.b16 %v196
    %v730 = vunpack.c.l.b16 %v197
    %v731 = vunpack.c.h.b16 %v197
    %v732 = vunpack.c.l.b16 %v198
    %v733 = vunpack.c.h.b16 %v198
    %v734 = vunpack.c.l.b16 %v199
    %v735 = vunpack.c.h.b16 %v199
    %v736 = vunpack.c.l.b16 %v200
    %v737 = vunpack.c.h.b16 %v200
    %v738 = vunpack.c.l.b16 %v201
    %v739 = vunpack.c.h.b16 %v201
    %v740 = vunpack.c.l.b16 %v202
    %v741 = vunpack.c.h.b16 %v202
    %v742 = vunpack.c.l.b16 %v203
    %v743 = vunpack.c.h.b16 %v203
    %v744 = vunpack.c.l.b16 %v204
    %v745 = vunpack.c.h.b16 %v204
    %v746 = vunpack.c.l.b16 %v205
    %v747 = vunpack.c.h.b16 %v205
    %v748 = vunpack.c.l.b16 %v206
    %v749 = vunpack.c.h.b16 %v206
    %v750 = vunpack.c.l.b16 %v207
    %v751 = vunpack.c.h.b16 %v207
    %v752 = vunpack.c.l.b16 %v208
    %v753 = vunpack.c.h.b16 %v208
    %v754 = vunpack.c.l.b16 %v209
    %v755 = vunpack.c.h.b16 %v209
    %v756 = vunpack.c.l.b16 %v210
    %v757 = vunpack.c.h.b16 %v210
    %v758 = vunpack.c.l.b16 %v211
    %v759 = vunpack.c.h.b16 %v211
    %v760 = vunpack.c.l.b16 %v212
    %v761 = vunpack.c.h.b16 %v212
    %v762 = vunpack.c.l.b16 %v213
    %v763 = vunpack.c.h.b16 %v213
    %v764 = vunpack.c.l.b16 %v214
    %v765 = vunpack.c.h.b16 %v214
    %v766 = vunpack.c.l.b16 %v215
    %v767 = vunpack.c.h.b16 %v215
    %v768 = vunpack.c.l.b16 %v216
    %v769 = vunpack.c.h.b16 %v216
    %v770 = vunpack.c.l.b16 %v217
    %v771 = vunpack.c.h.b16 %v217
    %v772 = vunpack.c.l.b16 %v218
    %v773 = vunpack.c.h.b16 %v218
    %v774 = vunpack.c.l.b16 %v219
    %v775 = vunpack.c.h.b16 %v219
    %v776 = vunpack.c.l.b16 %v220
    %v777 = vunpack.c.h.b16 %v220
    %v778 = vunpack.c.l.b16 %v221
    %v779 = vunpack.c.h.b16 %v221
    %v780 = vunpack.c.l.b16 %v222
    %v781 = vunpack.c.h.b16 %v222
    %v782 = vunpack.c.l.b16 %v223
    %v783 = vunpack.c.h.b16 %v223
    %v784 = vunpack.c.l.b16 %v224
    %v785 = vunpack.c.h.b16 %v224
    %v786 = vunpack.c.l.b16 %v225
    %v787 = vunpack.c.h.b16 %v225
    %v788 = vunpack.c.l.b16 %v226
    %v789 = vunpack.c.h.b16 %v226
    %v790 = vunpack.c.l.b16 %v227
    %v791 = vunpack.c.h.b16 %v227
    %v792 = vunpack.c.l.b16 %v228
    %v793 = vunpack.c.h.b16 %v228
    %v794 = vunpack.c.l.b16 %v229
    %v795 = vunpack.c.h.b16 %v229
    %v796 = vunpack.c.l.b16 %v230
    %v797 = vunpack.c.h.b16 %v230
    %v798 = vunpack.c.l.b16 %v231
    %v799 = vunpack.c.h.b16 %v231
    %v800 = vunpack.c.l.b16 %v232
    %v801 = vunpack.c.h.b16 %v232
    %v802 = vunpack.c.l.b16 %v233
    %v803 = vunpack.c.h.b16 %v233
    %v804 = vunpack.c.l.b16 %v234
    %v805 = vunpack.c.h.b16 %v234
    %v806 = vunpack.c.l.b16 %v235
    %v807 = vunpack.c.h.b16 %v235
    %v808 = vunpack.c.l.b16 %v236
    %v809 = vunpack.c.h.b16 %v236
    %v810 = vunpack.c.l.b16 %v237
    %v811 = vunpack.c.h.b16 %v237
    %v812 = vunpack.c.l.b16 %v238
    %v813 = vunpack.c.h.b16 %v238
    %v814 = vunpack.c.l.b16 %v239
    %v815 = vunpack.c.h.b16 %v239
    %v816 = vunpack.c.l.b16 %v240
    %v817 = vunpack.c.h.b16 %v240
    %v818 = vunpack.c.l.b16 %v241
    %v819 = vunpack.c.h.b16 %v241
    %v820 = vunpack.c.l.b16 %v242
    %v821 = vunpack.c.h.b16 %v242
    %v822 = vunpack.c.l.b16 %v243
    %v823 = vunpack.c.h.b16 %v243
    %v824 = vunpack.c.l.b16 %v244
    %v825 = vunpack.c.h.b16 %v244
    %v826 = vunpack.c.l.b16 %v245
    %v827 = vunpack.c.h.b16 %v245
    %v828 = vunpack.c.l.b16 %v246
    %v829 = vunpack.c.h.b16 %v246
    %v830 = vunpack.c.l.b16 %v247
    %v831 = vunpack.c.h.b16 %v247
    %v832 = vunpack.c.l.b16 %v248
    %v833 = vunpack.c.h.b16 %v248
    %v834 = vunpack.c.l.b16 %v249
    %v835 = vunpack.c.h.b16 %v249
    %v836 = vunpack.c.l.b16 %v250
    %v837 = vunpack.c.h.b16 %v250
    %v838 = vunpack.c.l.b16 %v251
    %v839 = vunpack.c.h.b16 %v251
    %v840 = vunpack.c.l.b16 %v252
    %v841 = vunpack.c.h.b16 %v252
    %v842 = vunpack.c.l.b16 %v253
    %v843 = vunpack.c.h.b16 %v253
    %v844 = vunpack.c.l.b16 %v254
    %v845 = vunpack.c.h.b16 %v254
    %v846 = vunpack.c.l.b16 %v255
    %v847 = vunpack.c.h.b16 %v255
    %v848 = vunpack.c.l.b16 %v256
    %v849 = vunpack.c.h.b16 %v256
    %v850 = vunpack.c.l.b16 %v257
    %v851 = vunpack.c.h.b16 %v257
    %v852 = vunpack.c.l.b16 %v258
    %v853 = vunpack.c.h.b16 %v258
    %v854 = vunpack.c.l.b16 %v259
    %v855 = vunpack.c.h.b16 %v259
    %v856 = vunpack.c.l.b16 %v260
    %v857 = vunpack.c.h.b16 %v260
    %v858 = vunpack.c.l.b16 %v261
    %v859 = vunpack.c.h.b16 %v261
    %v860 = vunpack.c.l.b16 %v262
    %v861 = vunpack.c.h.b16 %v262
    %v862 = vunpack.c.l.b16 %v263
    %v863 = vunpack.c.h.b16 %v263
    %v864 = vunpack.c.l.b16 %v264
    %v865 = vunpack.c.h.b16 %v264
    %v866 = vunpack.c.l.b16 %v265
    %v867 = vunpack.c.h.b16 %v265
    %v868 = vunpack.c.l.b16 %v266
    %v869 = vunpack.c.h.b16 %v266
    %v870 = vunpack.c.l.b16 %v267
    %v871 = vunpack.c.h.b16 %v267
    %v872 = vunpack.c.l.b16 %v268
    %v873 = vunpack.c.h.b16 %v268
    %v874 = vunpack.c.l.b16 %v269
    %v875 = vunpack.c.h.b16 %v269
    %v876 = vunpack.c.l.b16 %v270
    %v877 = vunpack.c.h.b16 %v270
    %v878 = vunpack.c.l.b16 %v271
    %v879 = vunpack.c.h.b16 %v271
    %v880 = vunpack.c.l.b16 %v272
    %v881 = vunpack.c.h.b16 %v272
    %v882 = vunpack.c.l.b16 %v273
    %v883 = vunpack.c.h.b16 %v273
    %v884 = vunpack.c.l.b16 %v274
    %v885 = vunpack.c.h.b16 %v274
    %v886 = vunpack.c.l.b16 %v275
    %v887 = vunpack.c.h.b16 %v275
    %v888 = vunpack.c.l.b16 %v276
    %v889 = vunpack.c.h.b16 %v276
    %v890 = vunpack.c.l.b16 %v277
    %v891 = vunpack.c.h.b16 %v277
    %v892 = vunpack.c.l.b16 %v278
    %v893 = vunpack.c.h.b16 %v278
    %v894 = vunpack.c.l.b16 %v279
    %v895 = vunpack.c.h.b16 %v279
    %v896 = vunpack.c.l.b16 %v280
    %v897 = vunpack.c.h.b16 %v280
    %v898 = vunpack.c.l.b16 %v281
    %v899 = vunpack.c.h.b16 %v281
    %v900 = vunpack.c.l.b16 %v282
    %v901 = vunpack.c.h.b16 %v282
    %v902 = vunpack.c.l.b16 %v283
    %v903 = vunpack.c.h.b16 %v283
    %v904 = vunpack.c.l.b16 %v284
    %v905 = vunpack.c.h.b16 %v284
    %v906 = vunpack.c.l.b16 %v285
    %v907 = vunpack.c.h.b16 %v285
    %v908 = vunpack.c.l.b16 %v286
    %v909 = vunpack.c.h.b16 %v286
    %v910 = vunpack.c.l.b16 %v287
    %v911 = vunpack.c.h.b16 %v287
    %v912 = vunpack.c.l.b16 %v288
    %v913 = vunpack.c.h.b16 %v288
    %v914 = vunpack.c.l.b16 %v289
    %v915 = vunpack.c.h.b16 %v289
    %v916 = vunpack.c.l.b16 %v290
    %v917 = vunpack.c.h.b16 %v290
    %v918 = vunpack.c.l.b16 %v291
    %v919 = vunpack.c.h.b16 %v291
    %v920 = vunpack.c.l.b16 %v292
    %v921 = vunpack.c.h.b16 %v292
    %v922 = vunpack.c.l.b16 %v293
    %v923 = vunpack.c.h.b16 %v293
    %v924 = vunpack.c.l.b16 %v294
    %v925 = vunpack.c.h.b16 %v294
    %v926 = vunpack.c.l.b16 %v295
    %v927 = vunpack.c.h.b16 %v295
    %v928 = vunpack.c.l.b16 %v296
    %v929 = vunpack.c.h.b16 %v296
    %v930 = vunpack.c.l.b16 %v297
    %v931 = vunpack.c.h.b16 %v297
    %v932 = vunpack.c.l.b16 %v298
    %v933 = vunpack.c.h.b16 %v298
    %v934 = vunpack.c.l.b16 %v299
    %v935 = vunpack.c.h.b16 %v299
    %v936 = vunpack.c.l.b16 %v300
    %v937 = vunpack.c.h.b16 %v300
    %v938 = vunpack.c.l.b16 %v301
    %v939 = vunpack.c.h.b16 %v301
    %v940 = vunpack.c.l.b16 %v302
    %v941 = vunpack.c.h.b16 %v302
    %v942 = vunpack.c.l.b16 %v303
    %v943 = vunpack.c.h.b16 %v303
    %v944 = vunpack.c.l.b16 %v304
    %v945 = vunpack.c.h.b16 %v304
    %v946 = vunpack.c.l.b16 %v305
    %v947 = vunpack.c.h.b16 %v305
    %v948 = vunpack.c.l.b16 %v306
    %v949 = vunpack.c.h.b16 %v306
    %v950 = vunpack.c.l.b16 %v307
    %v951 = vunpack.c.h.b16 %v307
    %v952 = vunpack.c.l.b16 %v308
    %v953 = vunpack.c.h.b16 %v308
    %v954 = vunpack.c.l.b16 %v309
    %v955 = vunpack.c.h.b16 %v309
    %v956 = vunpack.c.l.b16 %v310
    %v957 = vunpack.c.h.b16 %v310
    %v958 = vunpack.c.l.b16 %v311
    %v959 = vunpack.c.h.b16 %v311
    %v960 = vunpack.c.l.b16 %v312
    %v961 = vunpack.c.h.b16 %v312
    %v962 = vunpack.c.l.b16 %v313
    %v963 = vunpack.c.h.b16 %v313
    %v964 = vunpack.c.l.b16 %v314
    %v965 = vunpack.c.h.b16 %v314
    %v966 = vunpack.c.l.b16 %v315
    %v967 = vunpack.c.h.b16 %v315
    %v968 = vunpack.c.l.b16 %v316
    %v969 = vunpack.c.h.b16 %v316
    %v970 = vunpack.c.l.b16 %v317
    %v971 = vunpack.c.h.b16 %v317
    %v972 = vunpack.c.l.b16 %v318
    %v973 = vunpack.c.h.b16 %v318
    %v974 = vunpack.c.l.b16 %v319
    %v975 = vunpack.c.h.b16 %v319
    %v976 = vunpack.c.l.b16 %v320
    %v977 = vunpack.c.h.b16 %v320
    %v978 = vunpack.c.l.b16 %v321
    %v979 = vunpack.c.h.b16 %v321
    %v980 = vunpack.c.l.b16 %v322
    %v981 = vunpack.c.h.b16 %v322
    %v982 = vunpack.c.l.b16 %v323
    %v983 = vunpack.c.h.b16 %v323
    %v984 = vunpack.c.l.b16 %v324
    %v985 = vunpack.c.h.b16 %v324
    %v986 = vunpack.c.l.b16 %v325
    %v987 = vunpack.c.h.b16 %v325
    %v988 = vunpack.c.l.b16 %v326
    %v989 = vunpack.c.h.b16 %v326
    %v990 = vunpack.c.l.b16 %v327
    %v991 = vunpack.c.h.b16 %v327
    %v992 = vunpack.c.l.b16 %v328
    %v993 = vunpack.c.h.b16 %v328
    %v994 = vunpack.c.l.b16 %v329
    %v995 = vunpack.c.h.b16 %v329
    %v996 = vunpack.c.l.b16 %v330
    %v997 = vunpack.c.h.b16 %v330
    %v998 = vunpack.c.l.b16 %v331
    %v999 = vunpack.c.h.b16 %v331
    %v1000 = vunpack.c.l.b16 %v332
    %v1001 = vunpack.c.h.b16 %v332
    %v1002 = vunpack.c.l.b16 %v333
    %v1003 = vunpack.c.h.b16 %v333
    %v1004 = vunpack.c.l.b16 %v334
    %v1005 = vunpack.c.h.b16 %v334
    %v1006 = vunpack.c.l.b16 %v335
    %v1007 = vunpack.c.h.b16 %v335
    %v1008 = vunpack.c.l.b16 %v336
    %v1009 = vunpack.c.h.b16 %v336
    %v1010 = vunpack.c.l.b16 %v337
    %v1011 = vunpack.c.h.b16 %v337
    %v1012 = vunpack.c.l.b16 %v338
    %v1013 = vunpack.c.h.b16 %v338
    %v1014 = vunpack.c.l.b16 %v339
    %v1015 = vunpack.c.h.b16 %v339
    %v1016 = vunpack.c.l.b16 %v340
    %v1017 = vunpack.c.h.b16 %v340
    %v1018 = vunpack.c.l.b16 %v341
    %v1019 = vunpack.c.h.b16 %v341
    %v1020 = vunpack.c.l.b16 %v342
    %v1021 = vunpack.c.h.b16 %v342
    %v1022 = vunpack.c.l.b16 %v343
    %v1023 = vunpack.c.h.b16 %v343
    %v1024 = vunpack.c.l.b16 %v344
    %v1025 = vunpack.c.h.b16 %v344
    %v1026 = vunpack.c.l.b16 %v345
    %v1027 = vunpack.c.h.b16 %v345
    %v1028 = vunpack.c.l.b16 %v346
    %v1029 = vunpack.c.h.b16 %v346
    %v1030 = vunpack.c.l.b16 %v347
    %v1031 = vunpack.c.h.b16 %v347
    %v1032 = vunpack.c.l.b16 %v348
    %v1033 = vunpack.c.h.b16 %v348
    %v1034 = vunpack.c.l.b16 %v349
    %v1035 = vunpack.c.h.b16 %v349
    %v1036 = vunpack.c.l.b16 %v350
    %v1037 = vunpack.c.h.b16 %v350
    %v1038 = vunpack.c.l.b16 %v351
    %v1039 = vunpack.c.h.b16 %v351
    %v1040 = vunpack.c.l.b16 %v352
    %v1041 = vunpack.c.h.b16 %v352
    %v1042 = vunpack.c.l.b16 %v353
    %v1043 = vunpack.c.h.b16 %v353
    %v1044 = vpack.c.b16 %v620, %v612
    %v1045 = vpack.c.b16 %v621, %v613
    %v1046 = vpack.c.b16 %v622, %v614
    %v1047 = vpack.c.b16 %v623, %v615
    %v1048 = vpack.c.b16 %v624, %v616
    %v1049 = vpack.c.b16 %v625, %v617
    %v1050 = vpack.c.b16 %v626, %v618
    %v1051 = vpack.c.b16 %v627, %v619
    %v1052 = vpack.c.b16 %v636, %v628
    %v1053 = vpack.c.b16 %v637, %v629
    %v1054 = vpack.c.b16 %v638, %v630
    %v1055 = vpack.c.b16 %v639, %v631
    %v1056 = vpack.c.b16 %v640, %v632
    %v1057 = vpack.c.b16 %v641, %v633
    %v1058 = vpack.c.b16 %v642, %v634
    %v1059 = vpack.c.b16 %v643, %v635
    %v1060 = vpack.c.b16 %v652, %v644
    %v1061 = vpack.c.b16 %v653, %v645
    %v1062 = vpack.c.b16 %v654, %v646
    %v1063 = vpack.c.b16 %v655, %v647
    %v1064 = vpack.c.b16 %v656, %v648
    %v1065 = vpack.c.b16 %v657, %v649
    %v1066 = vpack.c.b16 %v658, %v650
    %v1067 = vpack.c.b16 %v659, %v651
    %v1068 = vpack.c.b16 %v668, %v660
    %v1069 = vpack.c.b16 %v669, %v661
    %v1070 = vpack.c.b16 %v670, %v662
    %v1071 = vpack.c.b16 %v671, %v663
    %v1072 = vpack.c.b16 %v672, %v664
    %v1073 = vpack.c.b16 %v673, %v665
    %v1074 = vpack.c.b16 %v674, %v666
    %v1075 = vpack.c.b16 %v675, %v667
    %v1076 = vpack.c.b16 %v684, %v676
    %v1077 = vpack.c.b16 %v685, %v677
    %v1078 = vpack.c.b16 %v686, %v678
    %v1079 = vpack.c.b16 %v687, %v679
    %v1080 = vpack.c.b16 %v688, %v680
    %v1081 = vpack.c.b16 %v689, %v681
    %v1082 = vpack.c.b16 %v690, %v682
    %v1083 = vpack.c.b16 %v691, %v683
    %v1084 = vpack.c.b16 %v700, %v692
    %v1085 = vpack.c.b16 %v701, %v693
    %v1086 = vpack.c.b16 %v702, %v694
    %v1087 = vpack.c.b16 %v703, %v695
    %v1088 = vpack.c.b16 %v704, %v696
    %v1089 = vpack.c.b16 %v705, %v697
    %v1090 = vpack.c.b16 %v706, %v698
    %v1091 = vpack.c.b16 %v707, %v699
    %v1092 = vpack.c.b16 %v716, %v708
    %v1093 = vpack.c.b16 %v717, %v709
    %v1094 = vpack.c.b16 %v718, %v710
    %v1095 = vpack.c.b16 %v719, %v711
    %v1096 = vpack.c.b16 %v720, %v712
    %v1097 = vpack.c.b16 %v721, %v713
    %v1098 = vpack.c.b16 %v722, %v714
    %v1099 = vpack.c.b16 %v723, %v715
    %v1100 = vpack.c.b16 %v732, %v724
    %v1101 = vpack.c.b16 %v733, %v725
    %v1102 = vpack.c.b16 %v734, %v726
    %v1103 = vpack.c.b16 %v735, %v727
    %v1104 = vpack.c.b16 %v736, %v728
    %v1105 = vpack.c.b16 %v737, %v729
    %v1106 = vpack.c.b16 %v738, %v730
    %v1107 = vpack.c.b16 %v739, %v731
    %v1108 = vpack.c.b16 %v748, %v740
    %v1109 = vpack.c.b16 %v749, %v741
    %v1110 = vpack.c.b16 %v750, %v742
    %v1111 = vpack.c.b16 %v751, %v743
    %v1112 = vpack.c.b16 %v752, %v744
    %v1113 = vpack.c.b16 %v753, %v745
    %v1114 = vpack.c.b16 %v754, %v746
    %v1115 = vpack.c.b16 %v755, %v747
    %v1116 = vpack.c.b16 %v764, %v756
    %v1117 = vpack.c.b16 %v765, %v757
    %v1118 = vpack.c.b16 %v766, %v758
    %v1119 = vpack.c.b16 %v767, %v759
    %v1120 = vpack.c.b16 %v768, %v760
    %v1121 = vpack.c.b16 %v769, %v761
    %v1122 = vpack.c.b16 %v770, %v762
    %v1123 = vpack.c.b16 %v771, %v763
    %v1124 = vpack.c.b16 %v780, %v772
    %v1125 = vpack.c.b16 %v781, %v773
    %v1126 = vpack.c.b16 %v782, %v774
    %v1127 = vpack.c.b16 %v783, %v775
    %v1128 = vpack.c.b16 %v784, %v776
    %v1129 = vpack.c.b16 %v785, %v777
    %v1130 = vpack.c.b16 %v786, %v778
    %v1131 = vpack.c.b16 %v787, %v779
    %v1132 = vpack.c.b16 %v796, %v788
    %v1133 = vpack.c.b16 %v797, %v789
    %v1134 = vpack.c.b16 %v798, %v790
    %v1135 = vpack.c.b16 %v799, %v791
    %v1136 = vpack.c.b16 %v800, %v792
    %v1137 = vpack.c.b16 %v801, %v793
    %v1138 = vpack.c.b16 %v802, %v794
    %v1139 = vpack.c.b16 %v803, %v795
    %v1140 = vpack.c.b16 %v812, %v804
    %v1141 = vpack.c.b16 %v813, %v805
    %v1142 = vpack.c.b16 %v814, %v806
    %v1143 = vpack.c.b16 %v815, %v807
    %v1144 = vpack.c.b16 %v816, %v808
    %v1145 = vpack.c.b16 %v817, %v809
    %v1146 = vpack.c.b16 %v818, %v810
    %v1147 = vpack.c.b16 %v819, %v811
    %v1148 = vpack.c.b16 %v828, %v820
    %v1149 = vpack.c.b16 %v829, %v821
    %v1150 = vpack.c.b16 %v830, %v822
    %v1151 = vpack.c.b16 %v831, %v823
    %v1152 = vpack.c.b16 %v832, %v824
    %v1153 = vpack.c.b16 %v833, %v825
    %v1154 = vpack.c.b16 %v834, %v826
    %v1155 = vpack.c.b16 %v835, %v827
    %v1156 = vpack.c.b16 %v844, %v836
    %v1157 = vpack.c.b16 %v845, %v837
    %v1158 = vpack.c.b16 %v846, %v838
    %v1159 = vpack.c.b16 %v847, %v839
    %v1160 = vpack.c.b16 %v848, %v840
    %v1161 = vpack.c.b16 %v849, %v841
    %v1162 = vpack.c.b16 %v850, %v842
    %v1163 = vpack.c.b16 %v851, %v843
    %v1164 = vpack.c.b16 %v860, %v852
    %v1165 = vpack.c.b16 %v861, %v853
    %v1166 = vpack.c.b16 %v862, %v854
    %v1167 = vpack.c.b16 %v863, %v855
    %v1168 = vpack.c.b16 %v864, %v856
    %v1169 = vpack.c.b16 %v865, %v857
    %v1170 = vpack.c.b16 %v866, %v858
    %v1171 = vpack.c.b16 %v867, %v859
    %v1172 = vpack.c.b16 %v876, %v868
    %v1173 = vpack.c.b16 %v877, %v869
    %v1174 = vpack.c.b16 %v878, %v870
    %v1175 = vpack.c.b16 %v879, %v871
    %v1176 = vpack.c.b16 %v880, %v872
    %v1177 = vpack.c.b16 %v881, %v873
    %v1178 = vpack.c.b16 %v882, %v874
    %v1179 = vpack.c.b16 %v883, %v875
    %v1180 = vpack.c.b16 %v892, %v884
    %v1181 = vpack.c.b16 %v893, %v885
    %v1182 = vpack.c.b16 %v894, %v886
    %v1183 = vpack.c.b16 %v895, %v887
    %v1184 = vpack.c.b16 %v896, %v888
    %v1185 = vpack.c.b16 %v897, %v889
    %v1186 = vpack.c.b16 %v898, %v890
    %v1187 = vpack.c.b16 %v899, %v891
    %v1188 = vpack.c.b16 %v908, %v900
    %v1189 = vpack.c.b16 %v909, %v901
    %v1190 = vpack.c.b16 %v910, %v902
    %v1191 = vpack.c.b16 %v911, %v903
    %v1192 = vpack.c.b16 %v912, %v904
    %v1193 = vpack.c.b16 %v913, %v905
    %v1194 = vpack.c.b16 %v914, %v906
    %v1195 = vpack.c.b16 %v915, %v907
    %v1196 = vpack.c.b16 %v924, %v916
    %v1197 = vpack.c.b16 %v925, %v917
    %v1198 = vpack.c.b16 %v926, %v918
    %v1199 = vpack.c.b16 %v927, %v919
    %v1200 = vpack.c.b16 %v928, %v920
    %v1201 = vpack.c.b16 %v929, %v921
    %v1202 = vpack.c.b16 %v930, %v922
    %v1203 = vpack.c.b16 %v931, %v923
    %v1204 = vpack.c.b16 %v940, %v932
    %v1205 = vpack.c.b16 %v941, %v933
    %v1206 = vpack.c.b16 %v942, %v934
    %v1207 = vpack.c.b16 %v943, %v935
    %v1208 = vpack.c.b16 %v944, %v936
    %v1209 = vpack.c.b16 %v945, %v937
    %v1210 = vpack.c.b16 %v946, %v938
    %v1211 = vpack.c.b16 %v947, %v939
    %v1212 = vpack.c.b16 %v956, %v948
    %v1213 = vpack.c.b16 %v957, %v949
    %v1214 = vpack.c.b16 %v958, %v950
    %v1215 = vpack.c.b16 %v959, %v951
    %v1216 = vpack.c.b16 %v960, %v952
    %v1217 = vpack.c.b16 %v961, %v953
    %v1218 = vpack.c.b16 %v962, %v954
    %v1219 = vpack.c.b16 %v963, %v955
    %v1220 = vpack.c.b16 %v972, %v964
    %v1221 = vpack.c.b16 %v973, %v965
    %v1222 = vpack.c.b16 %v974, %v966
    %v1223 = vpack.c.b16 %v975, %v967
    %v1224 = vpack.c.b16 %v976, %v968
    %v1225 = vpack.c.b16 %v977, %v969
    %v1226 = vpack.c.b16 %v978, %v970
    %v1227 = vpack.c.b16 %v979, %v971
    %v1228 = vpack.c.b16 %v988, %v980
    %v1229 = vpack.c.b16 %v989, %v981
    %v1230 = vpack.c.b16 %v990, %v982
    %v1231 = vpack.c.b16 %v991, %v983
    %v1232 = vpack.c.b16 %v992, %v984
    %v1233 = vpack.c.b16 %v993, %v985
    %v1234 = vpack.c.b16 %v994, %v986
    %v1235 = vpack.c.b16 %v995, %v987
    %v1236 = vpack.c.b16 %v1004, %v996
    %v1237 = vpack.c.b16 %v1005, %v997
    %v1238 = vpack.c.b16 %v1006, %v998
    %v1239 = vpack.c.b16 %v1007, %v999
    %v1240 = vpack.c.b16 %v1008, %v1000
    %v1241 = vpack.c.b16 %v1009, %v1001
    %v1242 = vpack.c.b16 %v1010, %v1002
    %v1243 = vpack.c.b16 %v1011, %v1003
    %v1244 = vpack.c.b16 %v1020, %v1012
    %v1245 = vpack.c.b16 %v1021, %v1013
    %v1246 = vpack.c.b16 %v1022, %v1014
    %v1247 = vpack.c.b16 %v1023, %v1015
    %v1248 = vpack.c.b16 %v1024, %v1016
    %v1249 = vpack.c.b16 %v1025, %v1017
    %v1250 = vpack.c.b16 %v1026, %v1018
    %v1251 = vpack.c.b16 %v1027, %v1019
    %v1252 = vpack.c.b16 %v1036, %v1028
    %v1253 = vpack.c.b16 %v1037, %v1029
    %v1254 = vpack.c.b16 %v1038, %v1030
    %v1255 = vpack.c.b16 %v1039, %v1031
    %v1256 = vpack.c.b16 %v1040, %v1032
    %v1257 = vpack.c.b16 %v1041, %v1033
    %v1258 = vpack.c.b16 %v1042, %v1034
    %v1259 = vpack.c.b16 %v1043, %v1035
    %vm1468 = vcmask 367616
    %v1470 = vsel %vm1468, %v137, 0
    %vm1472 = vcmask 1045504
    %vm1473 = vcmask 1046528
    %v1474 = vsel %vm1472, 4294967295, 65535
    %v1475 = vsel %vm1473, %v1474, 0
    %v1477 = vand.u32 %v1252, %v1475
    %v1480 = vand.u32 %v1253, %v1475
    %v1483 = vand.u32 %v1254, %v1475
    %v1486 = vand.u32 %v1255, %v1475
    %v1489 = vand.u32 %v1256, %v1475
    %v1492 = vand.u32 %v1257, %v1475
    %v1495 = vand.u32 %v1258, %v1475
    %v1498 = vand.u32 %v1259, %v1475
    %1500 = vmatprep.subr.bf16.mxu0 %v1045
    %1501 = vmatpush1.bf16.msra.mxu0 %v1044
    %1502 = vmatprep.subr.bf16.mxu0 %v1053
    %1503 = vmatpush1.bf16.msra.mxu0 %v1052
    %1504 = vmatprep.subr.bf16.mxu0 %v1061
    %1505 = vmatpush1.bf16.msra.mxu0 %v1060
    %1506 = vmatprep.subr.bf16.mxu0 %v1069
    %1507 = vmatpush1.bf16.msra.mxu0 %v1068
    %1508 = vmatprep.subr.bf16.mxu0 %v1077
    %1509 = vmatpush1.bf16.msra.mxu0 %v1076
    %1510 = vmatprep.subr.bf16.mxu0 %v1085
    %1511 = vmatpush1.bf16.msra.mxu0 %v1084
    %1512 = vmatprep.subr.bf16.mxu0 %v1093
    %1513 = vmatpush1.bf16.msra.mxu0 %v1092
    %1514 = vmatprep.subr.bf16.mxu0 %v1101
    %1515 = vmatpush1.bf16.msra.mxu0 %v1100
    %1516 = vmatprep.subr.bf16.mxu0 %v1109
    %1517 = vmatpush1.bf16.msra.mxu0 %v1108
    %1518 = vmatprep.subr.bf16.mxu0 %v1117
    %1519 = vmatpush1.bf16.msra.mxu0 %v1116
    %1520 = vmatprep.subr.bf16.mxu0 %v1125
    %1521 = vmatpush1.bf16.msra.mxu0 %v1124
    %1522 = vmatprep.subr.bf16.mxu0 %v1133
    %1523 = vmatpush1.bf16.msra.mxu0 %v1132
    %1524 = vmatprep.subr.bf16.mxu0 %v1141
    %1525 = vmatpush1.bf16.msra.mxu0 %v1140
    %1526 = vmatprep.subr.bf16.mxu0 %v1149
    %1527 = vmatpush1.bf16.msra.mxu0 %v1148
    %1528 = vmatprep.subr.bf16.mxu0 %v1157
    %1529 = vmatpush1.bf16.msra.mxu0 %v1156
    %1530 = vmatprep.subr.bf16.mxu0 %v1165
    %1531 = vmatpush1.bf16.msra.mxu0 %v1164
    %1532 = vmatprep.mubr.bf16.mxu0 %v135
    %1533 = vmatmul.mubr.bf16.gmra.mrb[0].mxu0 %v134
    %v1534 = vpop.f32.mrb[0].mxu0
    %v1535 = vadd.f32 %v359, %v1534
    %v1536 = vpop.f32.mrb[0].mxu0
    %v1537 = vadd.f32 %v363, %v1536
    %v1538 = vpop.f32.mrb[0].mxu0
    %v1539 = vpop.f32.mrb[0].mxu0
    %1540 = vdwg.mxu0
    %1541 = vmatprep.subr.bf16.mxu0 %v1173
    %1542 = vmatpush1.bf16.msra.mxu0 %v1172
    %1543 = vmatprep.subr.bf16.mxu0 %v1181
    %1544 = vmatpush1.bf16.msra.mxu0 %v1180
    %1545 = vmatprep.subr.bf16.mxu0 %v1189
    %1546 = vmatpush1.bf16.msra.mxu0 %v1188
    %1547 = vmatprep.subr.bf16.mxu0 %v1197
    %1548 = vmatpush1.bf16.msra.mxu0 %v1196
    %1549 = vmatprep.subr.bf16.mxu0 %v1205
    %1550 = vmatpush1.bf16.msra.mxu0 %v1204
    %1551 = vmatprep.subr.bf16.mxu0 %v1213
    %1552 = vmatpush1.bf16.msra.mxu0 %v1212
    %1553 = vmatprep.subr.bf16.mxu0 %v1221
    %1554 = vmatpush1.bf16.msra.mxu0 %v1220
    %1555 = vmatprep.subr.bf16.mxu0 %v1229
    %1556 = vmatpush1.bf16.msra.mxu0 %v1228
    %1557 = vmatprep.subr.bf16.mxu0 %v1237
    %1558 = vmatpush1.bf16.msra.mxu0 %v1236
    %1559 = vmatprep.subr.bf16.mxu0 %v1245
    %1560 = vmatpush1.bf16.msra.mxu0 %v1244
    %1561 = vmatprep.subr.bf16.mxu0 %v1480
    %1562 = vmatpush1.bf16.msra.mxu0 %v1477
    %1563 = vmatprep.subr.bf16.mxu0 0
    %1564 = vmatpush1.bf16.msra.mxu0 0
    %1565 = vmatprep.subr.bf16.mxu0 0
    %1566 = vmatpush1.bf16.msra.mxu0 0
    %1567 = vmatprep.subr.bf16.mxu0 0
    %1568 = vmatpush1.bf16.msra.mxu0 0
    %1569 = vmatprep.subr.bf16.mxu0 0
    %1570 = vmatpush1.bf16.msra.mxu0 0
    %1571 = vmatprep.subr.bf16.mxu0 0
    %1572 = vmatpush1.bf16.msra.mxu0 0
    %1573 = vmatprep.mubr.bf16.mxu0 %v1470
    %1574 = vmatmul.mubr.bf16.gmra.mrb[0].mxu0 %v136
    %v1575 = vpop.f32.mrb[0].mxu0
    %v1576 = vadd.f32 %v1535, %v1575
    %v1577 = vpop.f32.mrb[0].mxu0
    %v1578 = vadd.f32 %v1537, %v1577
    %v1579 = vpop.f32.mrb[0].mxu0
    %v1580 = vpop.f32.mrb[0].mxu0
    %1581 = vdwg.mxu0
    %1582 = vmatprep.subr.bf16.mxu0 %v1047
    %1583 = vmatpush1.bf16.msra.mxu0 %v1046
    %1584 = vmatprep.subr.bf16.mxu0 %v1055
    %1585 = vmatpush1.bf16.msra.mxu0 %v1054
    %1586 = vmatprep.subr.bf16.mxu0 %v1063
    %1587 = vmatpush1.bf16.msra.mxu0 %v1062
    %1588 = vmatprep.subr.bf16.mxu0 %v1071
    %1589 = vmatpush1.bf16.msra.mxu0 %v1070
    %1590 = vmatprep.subr.bf16.mxu0 %v1079
    %1591 = vmatpush1.bf16.msra.mxu0 %v1078
    %1592 = vmatprep.subr.bf16.mxu0 %v1087
    %1593 = vmatpush1.bf16.msra.mxu0 %v1086
    %1594 = vmatprep.subr.bf16.mxu0 %v1095
    %1595 = vmatpush1.bf16.msra.mxu0 %v1094
    %1596 = vmatprep.subr.bf16.mxu0 %v1103
    %1597 = vmatpush1.bf16.msra.mxu0 %v1102
    %1598 = vmatprep.subr.bf16.mxu0 %v1111
    %1599 = vmatpush1.bf16.msra.mxu0 %v1110
    %1600 = vmatprep.subr.bf16.mxu0 %v1119
    %1601 = vmatpush1.bf16.msra.mxu0 %v1118
    %1602 = vmatprep.subr.bf16.mxu0 %v1127
    %1603 = vmatpush1.bf16.msra.mxu0 %v1126
    %1604 = vmatprep.subr.bf16.mxu0 %v1135
    %1605 = vmatpush1.bf16.msra.mxu0 %v1134
    %1606 = vmatprep.subr.bf16.mxu0 %v1143
    %1607 = vmatpush1.bf16.msra.mxu0 %v1142
    %1608 = vmatprep.subr.bf16.mxu0 %v1151
    %1609 = vmatpush1.bf16.msra.mxu0 %v1150
    %1610 = vmatprep.subr.bf16.mxu0 %v1159
    %1611 = vmatpush1.bf16.msra.mxu0 %v1158
    %1612 = vmatprep.subr.bf16.mxu0 %v1167
    %1613 = vmatpush1.bf16.msra.mxu0 %v1166
    %1614 = vmatprep.mubr.bf16.mxu0 %v135
    %1615 = vmatmul.mubr.bf16.gmra.mrb[0].mxu0 %v134
    %v1616 = vpop.f32.mrb[0].mxu0
    %v1617 = vadd.f32 %v367, %v1616
    %v1618 = vpop.f32.mrb[0].mxu0
    %v1619 = vadd.f32 %v371, %v1618
    %v1620 = vpop.f32.mrb[0].mxu0
    %v1621 = vpop.f32.mrb[0].mxu0
    %1622 = vdwg.mxu0
    %1623 = vmatprep.subr.bf16.mxu0 %v1175
    %1624 = vmatpush1.bf16.msra.mxu0 %v1174
    %1625 = vmatprep.subr.bf16.mxu0 %v1183
    %1626 = vmatpush1.bf16.msra.mxu0 %v1182
    %1627 = vmatprep.subr.bf16.mxu0 %v1191
    %1628 = vmatpush1.bf16.msra.mxu0 %v1190
    %1629 = vmatprep.subr.bf16.mxu0 %v1199
    %1630 = vmatpush1.bf16.msra.mxu0 %v1198
    %1631 = vmatprep.subr.bf16.mxu0 %v1207
    %1632 = vmatpush1.bf16.msra.mxu0 %v1206
    %1633 = vmatprep.subr.bf16.mxu0 %v1215
    %1634 = vmatpush1.bf16.msra.mxu0 %v1214
    %1635 = vmatprep.subr.bf16.mxu0 %v1223
    %1636 = vmatpush1.bf16.msra.mxu0 %v1222
    %1637 = vmatprep.subr.bf16.mxu0 %v1231
    %1638 = vmatpush1.bf16.msra.mxu0 %v1230
    %1639 = vmatprep.subr.bf16.mxu0 %v1239
    %1640 = vmatpush1.bf16.msra.mxu0 %v1238
    %1641 = vmatprep.subr.bf16.mxu0 %v1247
    %1642 = vmatpush1.bf16.msra.mxu0 %v1246
    %1643 = vmatprep.subr.bf16.mxu0 %v1486
    %1644 = vmatpush1.bf16.msra.mxu0 %v1483
    %1645 = vmatprep.subr.bf16.mxu0 0
    %1646 = vmatpush1.bf16.msra.mxu0 0
    %1647 = vmatprep.subr.bf16.mxu0 0
    %1648 = vmatpush1.bf16.msra.mxu0 0
    %1649 = vmatprep.subr.bf16.mxu0 0
    %1650 = vmatpush1.bf16.msra.mxu0 0
    %1651 = vmatprep.subr.bf16.mxu0 0
    %1652 = vmatpush1.bf16.msra.mxu0 0
    %1653 = vmatprep.subr.bf16.mxu0 0
    %1654 = vmatpush1.bf16.msra.mxu0 0
    %1655 = vmatprep.mubr.bf16.mxu0 %v1470
    %1656 = vmatmul.mubr.bf16.gmra.mrb[0].mxu0 %v136
    %v1657 = vpop.f32.mrb[0].mxu0
    %v1658 = vadd.f32 %v1617, %v1657
    %v1659 = vpop.f32.mrb[0].mxu0
    %v1660 = vadd.f32 %v1619, %v1659
    %v1661 = vpop.f32.mrb[0].mxu0
    %v1662 = vpop.f32.mrb[0].mxu0
    %1663 = vdwg.mxu0
    %1664 = vmatprep.subr.bf16.mxu0 %v1049
    %1665 = vmatpush1.bf16.msra.mxu0 %v1048
    %1666 = vmatprep.subr.bf16.mxu0 %v1057
    %1667 = vmatpush1.bf16.msra.mxu0 %v1056
    %1668 = vmatprep.subr.bf16.mxu0 %v1065
    %1669 = vmatpush1.bf16.msra.mxu0 %v1064
    %1670 = vmatprep.subr.bf16.mxu0 %v1073
    %1671 = vmatpush1.bf16.msra.mxu0 %v1072
    %1672 = vmatprep.subr.bf16.mxu0 %v1081
    %1673 = vmatpush1.bf16.msra.mxu0 %v1080
    %1674 = vmatprep.subr.bf16.mxu0 %v1089
    %1675 = vmatpush1.bf16.msra.mxu0 %v1088
    %1676 = vmatprep.subr.bf16.mxu0 %v1097
    %1677 = vmatpush1.bf16.msra.mxu0 %v1096
    %1678 = vmatprep.subr.bf16.mxu0 %v1105
    %1679 = vmatpush1.bf16.msra.mxu0 %v1104
    %1680 = vmatprep.subr.bf16.mxu0 %v1113
    %1681 = vmatpush1.bf16.msra.mxu0 %v1112
    %1682 = vmatprep.subr.bf16.mxu0 %v1121
    %1683 = vmatpush1.bf16.msra.mxu0 %v1120
    %1684 = vmatprep.subr.bf16.mxu0 %v1129
    %1685 = vmatpush1.bf16.msra.mxu0 %v1128
    %1686 = vmatprep.subr.bf16.mxu0 %v1137
    %1687 = vmatpush1.bf16.msra.mxu0 %v1136
    %1688 = vmatprep.subr.bf16.mxu0 %v1145
    %1689 = vmatpush1.bf16.msra.mxu0 %v1144
    %1690 = vmatprep.subr.bf16.mxu0 %v1153
    %1691 = vmatpush1.bf16.msra.mxu0 %v1152
    %1692 = vmatprep.subr.bf16.mxu0 %v1161
    %1693 = vmatpush1.bf16.msra.mxu0 %v1160
    %1694 = vmatprep.subr.bf16.mxu0 %v1169
    %1695 = vmatpush1.bf16.msra.mxu0 %v1168
    %1696 = vmatprep.mubr.bf16.mxu0 %v135
    %1697 = vmatmul.mubr.bf16.gmra.mrb[0].mxu0 %v134
    %v1698 = vpop.f32.mrb[0].mxu0
    %v1699 = vadd.f32 %v375, %v1698
    %v1700 = vpop.f32.mrb[0].mxu0
    %v1701 = vadd.f32 %v379, %v1700
    %v1702 = vpop.f32.mrb[0].mxu0
    %v1703 = vpop.f32.mrb[0].mxu0
    %1704 = vdwg.mxu0
    %1705 = vmatprep.subr.bf16.mxu0 %v1177
    %1706 = vmatpush1.bf16.msra.mxu0 %v1176
    %1707 = vmatprep.subr.bf16.mxu0 %v1185
    %1708 = vmatpush1.bf16.msra.mxu0 %v1184
    %1709 = vmatprep.subr.bf16.mxu0 %v1193
    %1710 = vmatpush1.bf16.msra.mxu0 %v1192
    %1711 = vmatprep.subr.bf16.mxu0 %v1201
    %1712 = vmatpush1.bf16.msra.mxu0 %v1200
    %1713 = vmatprep.subr.bf16.mxu0 %v1209
    %1714 = vmatpush1.bf16.msra.mxu0 %v1208
    %1715 = vmatprep.subr.bf16.mxu0 %v1217
    %1716 = vmatpush1.bf16.msra.mxu0 %v1216
    %1717 = vmatprep.subr.bf16.mxu0 %v1225
    %1718 = vmatpush1.bf16.msra.mxu0 %v1224
    %1719 = vmatprep.subr.bf16.mxu0 %v1233
    %1720 = vmatpush1.bf16.msra.mxu0 %v1232
    %1721 = vmatprep.subr.bf16.mxu0 %v1241
    %1722 = vmatpush1.bf16.msra.mxu0 %v1240
    %1723 = vmatprep.subr.bf16.mxu0 %v1249
    %1724 = vmatpush1.bf16.msra.mxu0 %v1248
    %1725 = vmatprep.subr.bf16.mxu0 %v1492
    %1726 = vmatpush1.bf16.msra.mxu0 %v1489
    %1727 = vmatprep.subr.bf16.mxu0 0
    %1728 = vmatpush1.bf16.msra.mxu0 0
    %1729 = vmatprep.subr.bf16.mxu0 0
    %1730 = vmatpush1.bf16.msra.mxu0 0
    %1731 = vmatprep.subr.bf16.mxu0 0
    %1732 = vmatpush1.bf16.msra.mxu0 0
    %1733 = vmatprep.subr.bf16.mxu0 0
    %1734 = vmatpush1.bf16.msra.mxu0 0
    %1735 = vmatprep.subr.bf16.mxu0 0
    %1736 = vmatpush1.bf16.msra.mxu0 0
    %1737 = vmatprep.mubr.bf16.mxu0 %v1470
    %1738 = vmatmul.mubr.bf16.gmra.mrb[0].mxu0 %v136
    %v1739 = vpop.f32.mrb[0].mxu0
    %v1740 = vadd.f32 %v1699, %v1739
    %v1741 = vpop.f32.mrb[0].mxu0
    %v1742 = vadd.f32 %v1701, %v1741
    %v1743 = vpop.f32.mrb[0].mxu0
    %v1744 = vpop.f32.mrb[0].mxu0
    %1745 = vdwg.mxu0
    %1746 = vmatprep.subr.bf16.mxu0 %v1051
    %1747 = vmatpush1.bf16.msra.mxu0 %v1050
    %1748 = vmatprep.subr.bf16.mxu0 %v1059
    %1749 = vmatpush1.bf16.msra.mxu0 %v1058
    %1750 = vmatprep.subr.bf16.mxu0 %v1067
    %1751 = vmatpush1.bf16.msra.mxu0 %v1066
    %1752 = vmatprep.subr.bf16.mxu0 %v1075
    %1753 = vmatpush1.bf16.msra.mxu0 %v1074
    %1754 = vmatprep.subr.bf16.mxu0 %v1083
    %1755 = vmatpush1.bf16.msra.mxu0 %v1082
    %1756 = vmatprep.subr.bf16.mxu0 %v1091
    %1757 = vmatpush1.bf16.msra.mxu0 %v1090
    %1758 = vmatprep.subr.bf16.mxu0 %v1099
    %1759 = vmatpush1.bf16.msra.mxu0 %v1098
    %1760 = vmatprep.subr.bf16.mxu0 %v1107
    %1761 = vmatpush1.bf16.msra.mxu0 %v1106
    %1762 = vmatprep.subr.bf16.mxu0 %v1115
    %1763 = vmatpush1.bf16.msra.mxu0 %v1114
    %1764 = vmatprep.subr.bf16.mxu0 %v1123
    %1765 = vmatpush1.bf16.msra.mxu0 %v1122
    %1766 = vmatprep.subr.bf16.mxu0 %v1131
    %1767 = vmatpush1.bf16.msra.mxu0 %v1130
    %1768 = vmatprep.subr.bf16.mxu0 %v1139
    %1769 = vmatpush1.bf16.msra.mxu0 %v1138
    %1770 = vmatprep.subr.bf16.mxu0 %v1147
    %1771 = vmatpush1.bf16.msra.mxu0 %v1146
    %1772 = vmatprep.subr.bf16.mxu0 %v1155
    %1773 = vmatpush1.bf16.msra.mxu0 %v1154
    %1774 = vmatprep.subr.bf16.mxu0 %v1163
    %1775 = vmatpush1.bf16.msra.mxu0 %v1162
    %1776 = vmatprep.subr.bf16.mxu0 %v1171
    %1777 = vmatpush1.bf16.msra.mxu0 %v1170
    %1778 = vmatprep.mubr.bf16.mxu0 %v135
    %1779 = vmatmul.mubr.bf16.gmra.mrb[0].mxu0 %v134
    %v1780 = vpop.f32.mrb[0].mxu0
    %v1781 = vadd.f32 %v383, %v1780
    %v1782 = vpop.f32.mrb[0].mxu0
    %v1783 = vadd.f32 %v387, %v1782
    %v1784 = vpop.f32.mrb[0].mxu0
    %v1785 = vpop.f32.mrb[0].mxu0
    %1786 = vdwg.mxu0
    %1787 = vmatprep.subr.bf16.mxu0 %v1179
    %1788 = vmatpush1.bf16.msra.mxu0 %v1178
    %1789 = vmatprep.subr.bf16.mxu0 %v1187
    %1790 = vmatpush1.bf16.msra.mxu0 %v1186
    %1791 = vmatprep.subr.bf16.mxu0 %v1195
    %1792 = vmatpush1.bf16.msra.mxu0 %v1194
    %1793 = vmatprep.subr.bf16.mxu0 %v1203
    %1794 = vmatpush1.bf16.msra.mxu0 %v1202
    %1795 = vmatprep.subr.bf16.mxu0 %v1211
    %1796 = vmatpush1.bf16.msra.mxu0 %v1210
    %1797 = vmatprep.subr.bf16.mxu0 %v1219
    %1798 = vmatpush1.bf16.msra.mxu0 %v1218
    %1799 = vmatprep.subr.bf16.mxu0 %v1227
    %1800 = vmatpush1.bf16.msra.mxu0 %v1226
    %1801 = vmatprep.subr.bf16.mxu0 %v1235
    %1802 = vmatpush1.bf16.msra.mxu0 %v1234
    %1803 = vmatprep.subr.bf16.mxu0 %v1243
    %1804 = vmatpush1.bf16.msra.mxu0 %v1242
    %1805 = vmatprep.subr.bf16.mxu0 %v1251
    %1806 = vmatpush1.bf16.msra.mxu0 %v1250
    %1807 = vmatprep.subr.bf16.mxu0 %v1498
    %1808 = vmatpush1.bf16.msra.mxu0 %v1495
    %1809 = vmatprep.subr.bf16.mxu0 0
    %1810 = vmatpush1.bf16.msra.mxu0 0
    %1811 = vmatprep.subr.bf16.mxu0 0
    %1812 = vmatpush1.bf16.msra.mxu0 0
    %1813 = vmatprep.subr.bf16.mxu0 0
    %1814 = vmatpush1.bf16.msra.mxu0 0
    %1815 = vmatprep.subr.bf16.mxu0 0
    %1816 = vmatpush1.bf16.msra.mxu0 0
    %1817 = vmatprep.subr.bf16.mxu0 0
    %1818 = vmatpush1.bf16.msra.mxu0 0
    %1819 = vmatprep.mubr.bf16.mxu0 %v1470
    %1820 = vmatmul.mubr.bf16.gmra.mrb[0].mxu0 %v136
    %v1821 = vpop.f32.mrb[0].mxu0
    %v1822 = vadd.f32 %v1781, %v1821
    %v1823 = vpop.f32.mrb[0].mxu0
    %v1824 = vadd.f32 %v1783, %v1823
    %v1825 = vpop.f32.mrb[0].mxu0
    %v1826 = vpop.f32.mrb[0].mxu0
    %1827 = vdwg.mxu0
    %v1828 = vmax.f32 %v1576, 0.0
    %v1829 = vmax.f32 %v1578, 0.0
    %v1830 = vmax.f32 %v1658, 0.0
    %v1831 = vmax.f32 %v1660, 0.0
    %v1832 = vmax.f32 %v1740, 0.0
    %v1833 = vmax.f32 %v1742, 0.0
    %v1834 = vmax.f32 %v1822, 0.0
    %v1835 = vmax.f32 %v1824, 0.0
    %v1836 = vpack.c.bf16 %v1828, %v1828
    %v1837 = vpack.c.bf16 %v1829, %v1829
    %v1838 = vpack.c.bf16 %v1830, %v1830
    %v1839 = vpack.c.bf16 %v1831, %v1831
    %v1840 = vpack.c.bf16 %v1832, %v1832
    %v1841 = vpack.c.bf16 %v1833, %v1833
    %v1842 = vpack.c.bf16 %v1834, %v1834
    %v1843 = vpack.c.bf16 %v1835, %v1835
    %v1844 = vld [vmem:[#allocation7] sm:$0xff]
    %v1845 = vld [vmem:[#allocation7 + $0x8] sm:$0xff]
    %v1846 = vld [vmem:[#allocation7 + $0x10] sm:$0xff]
    %v1847 = vld [vmem:[#allocation7 + $0x18] sm:$0xff]
    %v1848 = vld [vmem:[#allocation7 + $0x20] sm:$0xff]
    %v1849 = vld [vmem:[#allocation7 + $0x28] sm:$0xff]
    %v1850 = vld [vmem:[#allocation7 + $0x30] sm:$0xff]
    %v1851 = vld [vmem:[#allocation7 + $0x38] sm:$0xff]
    %v1852 = vld [vmem:[#allocation7 + $0x40] sm:$0xff]
    %v1853 = vld [vmem:[#allocation7 + $0x48] sm:$0xff]
    %v1854 = vld [vmem:[#allocation7 + $0x50] sm:$0xff]
    %v1855 = vld [vmem:[#allocation7 + $0x58] sm:$0xff]
    %v1856 = vld [vmem:[#allocation7 + $0x60] sm:$0xff]
    %v1857 = vld [vmem:[#allocation7 + $0x68] sm:$0xff]
    %v1858 = vld [vmem:[#allocation7 + $0x70] sm:$0xff]
    %v1859 = vld [vmem:[#allocation7 + $0x78] sm:$0xff]
    %v1860 = vld [vmem:[#allocation7 + $0x80] sm:$0xff]
    %v1861 = vld [vmem:[#allocation7 + $0x88] sm:$0xff]
    %v1862 = vld [vmem:[#allocation7 + $0x90] sm:$0xff]
    %v1863 = vld [vmem:[#allocation7 + $0x98] sm:$0xff]
    %v1864 = vld [vmem:[#allocation7 + $0xa0] sm:$0xff]
    %v1865 = vld [vmem:[#allocation7 + $0xa8] sm:$0xff]
    %v1866 = vld [vmem:[#allocation7 + $0xb0] sm:$0xff]
    %v1867 = vld [vmem:[#allocation7 + $0xb8] sm:$0xff]
    %v1868 = vld [vmem:[#allocation7 + $0xc0] sm:$0xff]
    %v1869 = vld [vmem:[#allocation7 + $0xc8] sm:$0xff]
    %v1870 = vld [vmem:[#allocation7 + $0xd0] sm:$0xff]
    %v1871 = vld [vmem:[#allocation7 + $0xd8] sm:$0xff]
    %v1872 = vld [vmem:[#allocation7 + $0xe0] sm:$0xff]
    %v1873 = vld [vmem:[#allocation7 + $0xe8] sm:$0xff]
    %v1874 = vld [vmem:[#allocation7 + $0xf0] sm:$0xff]
    %v1875 = vld [vmem:[#allocation7 + $0xf8] sm:$0xff]
    %v1876 = vld [vmem:[#allocation7 + $0x100] sm:$0xff]
    %v1877 = vld [vmem:[#allocation7 + $0x108] sm:$0xff]
    %v1878 = vld [vmem:[#allocation7 + $0x110] sm:$0xff]
    %v1879 = vld [vmem:[#allocation7 + $0x118] sm:$0xff]
    %v1880 = vld [vmem:[#allocation7 + $0x120] sm:$0xff]
    %v1881 = vld [vmem:[#allocation7 + $0x128] sm:$0xff]
    %v1882 = vld [vmem:[#allocation7 + $0x130] sm:$0xff]
    %v1883 = vld [vmem:[#allocation7 + $0x138] sm:$0xff]
    %v1884 = vld [vmem:[#allocation7 + $0x140] sm:$0xff]
    %v1885 = vld [vmem:[#allocation7 + $0x148] sm:$0xff]
    %v1886 = vld [vmem:[#allocation7 + $0x150] sm:$0xff]
    %v1887 = vld [vmem:[#allocation7 + $0x158] sm:$0xff]
    %v1888 = vld [vmem:[#allocation7 + $0x160] sm:$0xff]
    %v1889 = vld [vmem:[#allocation7 + $0x168] sm:$0xff]
    %v1890 = vld [vmem:[#allocation7 + $0x170] sm:$0xff]
    %v1891 = vld [vmem:[#allocation7 + $0x178] sm:$0xff]
    %v1892 = vld [vmem:[#allocation7 + $0x180] sm:$0xff]
    %v1893 = vld [vmem:[#allocation7 + $0x188] sm:$0xff]
    %v1894 = vld [vmem:[#allocation7 + $0x190] sm:$0xff]
    %v1895 = vld [vmem:[#allocation7 + $0x198] sm:$0xff]
    %v1896 = vld [vmem:[#allocation7 + $0x1a0] sm:$0xff]
    %v1897 = vld [vmem:[#allocation7 + $0x1a8] sm:$0xff]
    %v1898 = vld [vmem:[#allocation7 + $0x1b0] sm:$0xff]
    %v1899 = vld [vmem:[#allocation7 + $0x1b8] sm:$0xff]
    %v1900 = vld [vmem:[#allocation7 + $0x1c0] sm:$0xff]
    %v1901 = vld [vmem:[#allocation7 + $0x1c8] sm:$0xff]
    %v1902 = vld [vmem:[#allocation7 + $0x1d0] sm:$0xff]
    %v1903 = vld [vmem:[#allocation7 + $0x1d8] sm:$0xff]
    %v1904 = vld [vmem:[#allocation7 + $0x1e0] sm:$0xff]
    %v1905 = vld [vmem:[#allocation7 + $0x1e8] sm:$0xff]
    %v1906 = vld [vmem:[#allocation7 + $0x1f0] sm:$0xff]
    %v1907 = vld [vmem:[#allocation7 + $0x1f8] sm:$0xff]
    %v1908 = vld [vmem:[#allocation7 + $0x200] sm:$0xff]
    %v1909 = vld [vmem:[#allocation7 + $0x208] sm:$0xff]
    %v1910 = vld [vmem:[#allocation7 + $0x210] sm:$0xff]
    %v1911 = vld [vmem:[#allocation7 + $0x218] sm:$0xff]
    %v1912 = vld [vmem:[#allocation7 + $0x220] sm:$0xff]
    %v1913 = vld [vmem:[#allocation7 + $0x228] sm:$0xff]
    %v1914 = vld [vmem:[#allocation7 + $0x230] sm:$0xff]
    %v1915 = vld [vmem:[#allocation7 + $0x238] sm:$0xff]
    %v1916 = vld [vmem:[#allocation7 + $0x240] sm:$0xff]
    %v1917 = vld [vmem:[#allocation7 + $0x248] sm:$0xff]
    %v1918 = vld [vmem:[#allocation7 + $0x250] sm:$0xff]
    %v1919 = vld [vmem:[#allocation7 + $0x258] sm:$0xff]
    %v1920 = vld [vmem:[#allocation7 + $0x260] sm:$0xff]
    %v1921 = vld [vmem:[#allocation7 + $0x268] sm:$0xff]
    %v1922 = vld [vmem:[#allocation7 + $0x270] sm:$0xff]
    %v1923 = vld [vmem:[#allocation7 + $0x278] sm:$0xff]
    %v1924 = vld [vmem:[#allocation7 + $0x280] sm:$0xff]
    %v1925 = vld [vmem:[#allocation7 + $0x288] sm:$0xff]
    %v1926 = vld [vmem:[#allocation7 + $0x290] sm:$0xff]
    %v1927 = vld [vmem:[#allocation7 + $0x298] sm:$0xff]
    %v1928 = vld [vmem:[#allocation7 + $0x2a0] sm:$0xff]
    %v1929 = vld [vmem:[#allocation7 + $0x2a8] sm:$0xff]
    %v1930 = vld [vmem:[#allocation7 + $0x2b0] sm:$0xff]
    %v1931 = vld [vmem:[#allocation7 + $0x2b8] sm:$0xff]
    %v1932 = vld [vmem:[#allocation7 + $0x2c0] sm:$0xff]
    %v1933 = vld [vmem:[#allocation7 + $0x2c8] sm:$0xff]
    %v1934 = vld [vmem:[#allocation7 + $0x2d0] sm:$0xff]
    %v1935 = vld [vmem:[#allocation7 + $0x2d8] sm:$0xff]
    %v1936 = vld [vmem:[#allocation7 + $0x2e0] sm:$0xff]
    %v1937 = vld [vmem:[#allocation7 + $0x2e8] sm:$0xff]
    %v1938 = vld [vmem:[#allocation7 + $0x2f0] sm:$0xff]
    %v1939 = vld [vmem:[#allocation7 + $0x2f8] sm:$0xff]
    %v1940 = vld [vmem:[#allocation7 + $0x300] sm:$0xff]
    %v1941 = vld [vmem:[#allocation7 + $0x308] sm:$0xff]
    %v1942 = vld [vmem:[#allocation7 + $0x310] sm:$0xff]
    %v1943 = vld [vmem:[#allocation7 + $0x318] sm:$0xff]
    %v1944 = vld [vmem:[#allocation7 + $0x320] sm:$0xff]
    %v1945 = vld [vmem:[#allocation7 + $0x328] sm:$0xff]
    %v1946 = vld [vmem:[#allocation7 + $0x330] sm:$0xff]
    %v1947 = vld [vmem:[#allocation7 + $0x338] sm:$0xff]
    %v1948 = vld [vmem:[#allocation7 + $0x340] sm:$0xff]
    %v1949 = vld [vmem:[#allocation7 + $0x348] sm:$0xff]
    %v1950 = vld [vmem:[#allocation7 + $0x350] sm:$0xff]
    %v1951 = vld [vmem:[#allocation7 + $0x358] sm:$0xff]
    %v1952 = vld [vmem:[#allocation7 + $0x360] sm:$0xff]
    %v1953 = vld [vmem:[#allocation7 + $0x368] sm:$0xff]
    %v1954 = vld [vmem:[#allocation7 + $0x370] sm:$0xff]
    %v1955 = vld [vmem:[#allocation7 + $0x378] sm:$0xff]
    %v1956 = vld [vmem:[#allocation7 + $0x380] sm:$0xff]
    %v1957 = vld [vmem:[#allocation7 + $0x388] sm:$0xff]
    %v1958 = vld [vmem:[#allocation7 + $0x390] sm:$0xff]
    %v1959 = vld [vmem:[#allocation7 + $0x398] sm:$0xff]
    %v1960 = vld [vmem:[#allocation7 + $0x3a0] sm:$0xff]
    %v1961 = vld [vmem:[#allocation7 + $0x3a8] sm:$0xff]
    %v1962 = vld [vmem:[#allocation7 + $0x3b0] sm:$0xff]
    %v1963 = vld [vmem:[#allocation7 + $0x3b8] sm:$0xff]
    %v1964 = vld [vmem:[#allocation7 + $0x3c0] sm:$0xff]
    %v1965 = vld [vmem:[#allocation7 + $0x3c8] sm:$0xff]
    %v1966 = vld [vmem:[#allocation7 + $0x3d0] sm:$0xff]
    %v1967 = vld [vmem:[#allocation7 + $0x3d8] sm:$0xff]
    %v1968 = vld [vmem:[#allocation7 + $0x3e0] sm:$0xff]
    %v1969 = vld [vmem:[#allocation7 + $0x3e8] sm:$0xff]
    %v1970 = vld [vmem:[#allocation7 + $0x3f0] sm:$0xff]
    %v1971 = vld [vmem:[#allocation7 + $0x3f8] sm:$0xff]
    %v1972 = vld [vmem:[#allocation7 + $0x400] sm:$0xff]
    %v1973 = vld [vmem:[#allocation7 + $0x408] sm:$0xff]
    %v1974 = vld [vmem:[#allocation7 + $0x410] sm:$0xff]
    %v1975 = vld [vmem:[#allocation7 + $0x418] sm:$0xff]
    %v1976 = vld [vmem:[#allocation7 + $0x420] sm:$0xff]
    %v1977 = vld [vmem:[#allocation7 + $0x428] sm:$0xff]
    %v1978 = vld [vmem:[#allocation7 + $0x430] sm:$0xff]
    %v1979 = vld [vmem:[#allocation7 + $0x438] sm:$0xff]
    %v1980 = vld [vmem:[#allocation7 + $0x440] sm:$0xff]
    %v1981 = vld [vmem:[#allocation7 + $0x448] sm:$0xff]
    %v1982 = vld [vmem:[#allocation7 + $0x450] sm:$0xff]
    %v1983 = vld [vmem:[#allocation7 + $0x458] sm:$0xff]
    %v1984 = vld [vmem:[#allocation7 + $0x460] sm:$0xff]
    %v1985 = vld [vmem:[#allocation7 + $0x468] sm:$0xff]
    %v1986 = vld [vmem:[#allocation7 + $0x470] sm:$0xff]
    %v1987 = vld [vmem:[#allocation7 + $0x478] sm:$0xff]
    %v1988 = vld [vmem:[#allocation7 + $0x480] sm:$0xff]
    %v1989 = vld [vmem:[#allocation7 + $0x488] sm:$0xff]
    %v1990 = vld [vmem:[#allocation7 + $0x490] sm:$0xff]
    %v1991 = vld [vmem:[#allocation7 + $0x498] sm:$0xff]
    %v1992 = vld [vmem:[#allocation7 + $0x4a0] sm:$0xff]
    %v1993 = vld [vmem:[#allocation7 + $0x4a8] sm:$0xff]
    %v1994 = vld [vmem:[#allocation7 + $0x4b0] sm:$0xff]
    %v1995 = vld [vmem:[#allocation7 + $0x4b8] sm:$0xff]
    %v1996 = vld [vmem:[#allocation7 + $0x4c0] sm:$0xff]
    %v1997 = vld [vmem:[#allocation7 + $0x4c8] sm:$0xff]
    %v1998 = vld [vmem:[#allocation7 + $0x4d0] sm:$0xff]
    %v1999 = vld [vmem:[#allocation7 + $0x4d8] sm:$0xff]
    %v2000 = vld [vmem:[#allocation7 + $0x4e0] sm:$0xff]
    %v2001 = vld [vmem:[#allocation7 + $0x4e8] sm:$0xff]
    %v2002 = vld [vmem:[#allocation7 + $0x4f0] sm:$0xff]
    %v2003 = vld [vmem:[#allocation7 + $0x4f8] sm:$0xff]
    %v2004 = vld [vmem:[#allocation7 + $0x500] sm:$0xff]
    %v2005 = vld [vmem:[#allocation7 + $0x508] sm:$0xff]
    %v2006 = vld [vmem:[#allocation7 + $0x510] sm:$0xff]
    %v2007 = vld [vmem:[#allocation7 + $0x518] sm:$0xff]
    %v2008 = vld [vmem:[#allocation7 + $0x520] sm:$0xff]
    %v2009 = vld [vmem:[#allocation7 + $0x528] sm:$0xff]
    %v2010 = vld [vmem:[#allocation7 + $0x530] sm:$0xff]
    %v2011 = vld [vmem:[#allocation7 + $0x538] sm:$0xff]
    %v2012 = vld [vmem:[#allocation7 + $0x540] sm:$0xff]
    %v2013 = vld [vmem:[#allocation7 + $0x548] sm:$0xff]
    %v2014 = vld [vmem:[#allocation7 + $0x550] sm:$0xff]
    %v2015 = vld [vmem:[#allocation7 + $0x558] sm:$0xff]
    %v2016 = vld [vmem:[#allocation7 + $0x560] sm:$0xff]
    %v2017 = vld [vmem:[#allocation7 + $0x568] sm:$0xff]
    %v2018 = vld [vmem:[#allocation7 + $0x570] sm:$0xff]
    %v2019 = vld [vmem:[#allocation7 + $0x578] sm:$0xff]
    %v2020 = vld [vmem:[#allocation7 + $0x580] sm:$0xff]
    %v2021 = vld [vmem:[#allocation7 + $0x588] sm:$0xff]
    %v2022 = vld [vmem:[#allocation7 + $0x590] sm:$0xff]
    %v2023 = vld [vmem:[#allocation7 + $0x598] sm:$0xff]
    %v2024 = vld [vmem:[#allocation7 + $0x5a0] sm:$0xff]
    %v2025 = vld [vmem:[#allocation7 + $0x5a8] sm:$0xff]
    %v2026 = vld [vmem:[#allocation7 + $0x5b0] sm:$0xff]
    %v2027 = vld [vmem:[#allocation7 + $0x5b8] sm:$0xff]
    %v2028 = vld [vmem:[#allocation7 + $0x5c0] sm:$0xff]
    %v2029 = vld [vmem:[#allocation7 + $0x5c8] sm:$0xff]
    %v2030 = vld [vmem:[#allocation7 + $0x5d0] sm:$0xff]
    %v2031 = vld [vmem:[#allocation7 + $0x5d8] sm:$0xff]
    %v2032 = vld [vmem:[#allocation7 + $0x5e0] sm:$0xff]
    %v2033 = vld [vmem:[#allocation7 + $0x5e8] sm:$0xff]
    %v2034 = vld [vmem:[#allocation7 + $0x5f0] sm:$0xff]
    %v2035 = vld [vmem:[#allocation7 + $0x5f8] sm:$0xff]
    %v2036 = vld [vmem:[#allocation7 + $0x600] sm:$0xff]
    %v2037 = vld [vmem:[#allocation7 + $0x608] sm:$0xff]
    %v2038 = vld [vmem:[#allocation7 + $0x610] sm:$0xff]
    %v2039 = vld [vmem:[#allocation7 + $0x618] sm:$0xff]
    %v2040 = vld [vmem:[#allocation7 + $0x620] sm:$0xff]
    %v2041 = vld [vmem:[#allocation7 + $0x628] sm:$0xff]
    %v2042 = vld [vmem:[#allocation7 + $0x630] sm:$0xff]
    %v2043 = vld [vmem:[#allocation7 + $0x638] sm:$0xff]
    %v2044 = vld [vmem:[#allocation7 + $0x640] sm:$0xff]
    %v2045 = vld [vmem:[#allocation7 + $0x648] sm:$0xff]
    %v2046 = vld [vmem:[#allocation7 + $0x650] sm:$0xff]
    %v2047 = vld [vmem:[#allocation7 + $0x658] sm:$0xff]
    %v2048 = vld [vmem:[#allocation7 + $0x660] sm:$0xff]
    %v2049 = vld [vmem:[#allocation7 + $0x668] sm:$0xff]
    %v2050 = vld [vmem:[#allocation7 + $0x670] sm:$0xff]
    %v2051 = vld [vmem:[#allocation7 + $0x678] sm:$0xff]
    %v2052 = vld [vmem:[#allocation7 + $0x680] sm:$0xff]
    %v2053 = vld [vmem:[#allocation7 + $0x688] sm:$0xff]
    %v2054 = vld [vmem:[#allocation7 + $0x690] sm:$0xff]
    %v2055 = vld [vmem:[#allocation7 + $0x698] sm:$0xff]
    %v2056 = vld [vmem:[#allocation7 + $0x6a0] sm:$0xff]
    %v2057 = vld [vmem:[#allocation7 + $0x6a8] sm:$0xff]
    %v2058 = vld [vmem:[#allocation7 + $0x6b0] sm:$0xff]
    %v2059 = vld [vmem:[#allocation7 + $0x6b8] sm:$0xff]
    %v2060 = vld [vmem:[#allocation7 + $0x6c0] sm:$0xff]
    %v2061 = vld [vmem:[#allocation7 + $0x6c8] sm:$0xff]
    %v2062 = vld [vmem:[#allocation7 + $0x6d0] sm:$0xff]
    %v2063 = vld [vmem:[#allocation7 + $0x6d8] sm:$0xff]
    %v2064 = vld [vmem:[#allocation7 + $0x6e0] sm:$0xff]
    %v2065 = vld [vmem:[#allocation7 + $0x6e8] sm:$0xff]
    %v2066 = vld [vmem:[#allocation7 + $0x6f0] sm:$0xff]
    %v2067 = vld [vmem:[#allocation7 + $0x6f8] sm:$0xff]
    %v2068 = vld [vmem:[#allocation7 + $0x700] sm:$0xff]
    %v2069 = vld [vmem:[#allocation7 + $0x708] sm:$0xff]
    %v2070 = vld [vmem:[#allocation7 + $0x710] sm:$0xff]
    %v2071 = vld [vmem:[#allocation7 + $0x718] sm:$0xff]
    %v2072 = vld [vmem:[#allocation7 + $0x720] sm:$0xff]
    %v2073 = vld [vmem:[#allocation7 + $0x728] sm:$0xff]
    %v2074 = vld [vmem:[#allocation7 + $0x730] sm:$0xff]
    %v2075 = vld [vmem:[#allocation7 + $0x738] sm:$0xff]
    %v2076 = vld [vmem:[#allocation7 + $0x740] sm:$0xff]
    %v2077 = vld [vmem:[#allocation7 + $0x748] sm:$0xff]
    %v2078 = vld [vmem:[#allocation7 + $0x750] sm:$0xff]
    %v2079 = vld [vmem:[#allocation7 + $0x758] sm:$0xff]
    %v2080 = vld [vmem:[#allocation7 + $0x760] sm:$0xff]
    %v2081 = vld [vmem:[#allocation7 + $0x768] sm:$0xff]
    %v2082 = vld [vmem:[#allocation7 + $0x770] sm:$0xff]
    %v2083 = vld [vmem:[#allocation7 + $0x778] sm:$0xff]
    %v2084 = vld [vmem:[#allocation7 + $0x780] sm:$0xff]
    %v2085 = vld [vmem:[#allocation7 + $0x788] sm:$0xff]
    %v2086 = vld [vmem:[#allocation7 + $0x790] sm:$0xff]
    %v2087 = vld [vmem:[#allocation7 + $0x798] sm:$0xff]
    %v2088 = vld [vmem:[#allocation7 + $0x7a0] sm:$0xff]
    %v2089 = vld [vmem:[#allocation7 + $0x7a8] sm:$0xff]
    %v2090 = vld [vmem:[#allocation7 + $0x7b0] sm:$0xff]
    %v2091 = vld [vmem:[#allocation7 + $0x7b8] sm:$0xff]
    %v2092 = vld [vmem:[#allocation7 + $0x7c0] sm:$0xff]
    %v2093 = vld [vmem:[#allocation7 + $0x7c8] sm:$0xff]
    %v2094 = vld [vmem:[#allocation7 + $0x7d0] sm:$0xff]
    %v2095 = vld [vmem:[#allocation7 + $0x7d8] sm:$0xff]
    %v2096 = vld [vmem:[#allocation7 + $0x7e0] sm:$0xff]
    %v2097 = vld [vmem:[#allocation7 + $0x7e8] sm:$0xff]
    %v2098 = vld [vmem:[#allocation7 + $0x7f0] sm:$0xff]
    %v2099 = vld [vmem:[#allocation7 + $0x7f8] sm:$0xff]
    %v2100 = vld [vmem:[%s4] sm:$0xf]
    %v2102 = vlaneseq
    %v2103 = vshrl.u32 %v2102, 7
    %v2104 = vsub.s32 0, %v2103
    %v2105 = vrot.slane %v2100, %v2104
    %v2106 = vlaneseq
    %v2107 = vshrl.u32 %v2106, 7
    %v2108 = vsub.s32 1, %v2107
    %v2109 = vrot.slane %v2100, %v2108
    %v2110 = vlaneseq
    %v2111 = vshrl.u32 %v2110, 7
    %v2112 = vsub.s32 2, %v2111
    %v2113 = vrot.slane %v2100, %v2112
    %v2114 = vlaneseq
    %v2115 = vshrl.u32 %v2114, 7
    %v2116 = vsub.s32 3, %v2115
    %v2117 = vrot.slane %v2100, %v2116
    %v2378 = vunpack.c.l.b16 %v1844
    %v2379 = vunpack.c.h.b16 %v1844
    %v2380 = vunpack.c.l.b16 %v1845
    %v2381 = vunpack.c.h.b16 %v1845
    %v2382 = vunpack.c.l.b16 %v1846
    %v2383 = vunpack.c.h.b16 %v1846
    %v2384 = vunpack.c.l.b16 %v1847
    %v2385 = vunpack.c.h.b16 %v1847
    %v2386 = vunpack.c.l.b16 %v1848
    %v2387 = vunpack.c.h.b16 %v1848
    %v2388 = vunpack.c.l.b16 %v1849
    %v2389 = vunpack.c.h.b16 %v1849
    %v2390 = vunpack.c.l.b16 %v1850
    %v2391 = vunpack.c.h.b16 %v1850
    %v2392 = vunpack.c.l.b16 %v1851
    %v2393 = vunpack.c.h.b16 %v1851
    %v2394 = vunpack.c.l.b16 %v1852
    %v2395 = vunpack.c.h.b16 %v1852
    %v2396 = vunpack.c.l.b16 %v1853
    %v2397 = vunpack.c.h.b16 %v1853
    %v2398 = vunpack.c.l.b16 %v1854
    %v2399 = vunpack.c.h.b16 %v1854
    %v2400 = vunpack.c.l.b16 %v1855
    %v2401 = vunpack.c.h.b16 %v1855
    %v2402 = vunpack.c.l.b16 %v1856
    %v2403 = vunpack.c.h.b16 %v1856
    %v2404 = vunpack.c.l.b16 %v1857
    %v2405 = vunpack.c.h.b16 %v1857
    %v2406 = vunpack.c.l.b16 %v1858
    %v2407 = vunpack.c.h.b16 %v1858
    %v2408 = vunpack.c.l.b16 %v1859
    %v2409 = vunpack.c.h.b16 %v1859
    %v2410 = vunpack.c.l.b16 %v1860
    %v2411 = vunpack.c.h.b16 %v1860
    %v2412 = vunpack.c.l.b16 %v1861
    %v2413 = vunpack.c.h.b16 %v1861
    %v2414 = vunpack.c.l.b16 %v1862
    %v2415 = vunpack.c.h.b16 %v1862
    %v2416 = vunpack.c.l.b16 %v1863
    %v2417 = vunpack.c.h.b16 %v1863
    %v2418 = vunpack.c.l.b16 %v1864
    %v2419 = vunpack.c.h.b16 %v1864
    %v2420 = vunpack.c.l.b16 %v1865
    %v2421 = vunpack.c.h.b16 %v1865
    %v2422 = vunpack.c.l.b16 %v1866
    %v2423 = vunpack.c.h.b16 %v1866
    %v2424 = vunpack.c.l.b16 %v1867
    %v2425 = vunpack.c.h.b16 %v1867
    %v2426 = vunpack.c.l.b16 %v1868
    %v2427 = vunpack.c.h.b16 %v1868
    %v2428 = vunpack.c.l.b16 %v1869
    %v2429 = vunpack.c.h.b16 %v1869
    %v2430 = vunpack.c.l.b16 %v1870
    %v2431 = vunpack.c.h.b16 %v1870
    %v2432 = vunpack.c.l.b16 %v1871
    %v2433 = vunpack.c.h.b16 %v1871
    %v2434 = vunpack.c.l.b16 %v1872
    %v2435 = vunpack.c.h.b16 %v1872
    %v2436 = vunpack.c.l.b16 %v1873
    %v2437 = vunpack.c.h.b16 %v1873
    %v2438 = vunpack.c.l.b16 %v1874
    %v2439 = vunpack.c.h.b16 %v1874
    %v2440 = vunpack.c.l.b16 %v1875
    %v2441 = vunpack.c.h.b16 %v1875
    %v2442 = vunpack.c.l.b16 %v1876
    %v2443 = vunpack.c.h.b16 %v1876
    %v2444 = vunpack.c.l.b16 %v1877
    %v2445 = vunpack.c.h.b16 %v1877
    %v2446 = vunpack.c.l.b16 %v1878
    %v2447 = vunpack.c.h.b16 %v1878
    %v2448 = vunpack.c.l.b16 %v1879
    %v2449 = vunpack.c.h.b16 %v1879
    %v2450 = vunpack.c.l.b16 %v1880
    %v2451 = vunpack.c.h.b16 %v1880
    %v2452 = vunpack.c.l.b16 %v1881
    %v2453 = vunpack.c.h.b16 %v1881
    %v2454 = vunpack.c.l.b16 %v1882
    %v2455 = vunpack.c.h.b16 %v1882
    %v2456 = vunpack.c.l.b16 %v1883
    %v2457 = vunpack.c.h.b16 %v1883
    %v2458 = vunpack.c.l.b16 %v1884
    %v2459 = vunpack.c.h.b16 %v1884
    %v2460 = vunpack.c.l.b16 %v1885
    %v2461 = vunpack.c.h.b16 %v1885
    %v2462 = vunpack.c.l.b16 %v1886
    %v2463 = vunpack.c.h.b16 %v1886
    %v2464 = vunpack.c.l.b16 %v1887
    %v2465 = vunpack.c.h.b16 %v1887
    %v2466 = vunpack.c.l.b16 %v1888
    %v2467 = vunpack.c.h.b16 %v1888
    %v2468 = vunpack.c.l.b16 %v1889
    %v2469 = vunpack.c.h.b16 %v1889
    %v2470 = vunpack.c.l.b16 %v1890
    %v2471 = vunpack.c.h.b16 %v1890
    %v2472 = vunpack.c.l.b16 %v1891
    %v2473 = vunpack.c.h.b16 %v1891
    %v2474 = vunpack.c.l.b16 %v1892
    %v2475 = vunpack.c.h.b16 %v1892
    %v2476 = vunpack.c.l.b16 %v1893
    %v2477 = vunpack.c.h.b16 %v1893
    %v2478 = vunpack.c.l.b16 %v1894
    %v2479 = vunpack.c.h.b16 %v1894
    %v2480 = vunpack.c.l.b16 %v1895
    %v2481 = vunpack.c.h.b16 %v1895
    %v2482 = vunpack.c.l.b16 %v1896
    %v2483 = vunpack.c.h.b16 %v1896
    %v2484 = vunpack.c.l.b16 %v1897
    %v2485 = vunpack.c.h.b16 %v1897
    %v2486 = vunpack.c.l.b16 %v1898
    %v2487 = vunpack.c.h.b16 %v1898
    %v2488 = vunpack.c.l.b16 %v1899
    %v2489 = vunpack.c.h.b16 %v1899
    %v2490 = vunpack.c.l.b16 %v1900
    %v2491 = vunpack.c.h.b16 %v1900
    %v2492 = vunpack.c.l.b16 %v1901
    %v2493 = vunpack.c.h.b16 %v1901
    %v2494 = vunpack.c.l.b16 %v1902
    %v2495 = vunpack.c.h.b16 %v1902
    %v2496 = vunpack.c.l.b16 %v1903
    %v2497 = vunpack.c.h.b16 %v1903
    %v2498 = vunpack.c.l.b16 %v1904
    %v2499 = vunpack.c.h.b16 %v1904
    %v2500 = vunpack.c.l.b16 %v1905
    %v2501 = vunpack.c.h.b16 %v1905
    %v2502 = vunpack.c.l.b16 %v1906
    %v2503 = vunpack.c.h.b16 %v1906
    %v2504 = vunpack.c.l.b16 %v1907
    %v2505 = vunpack.c.h.b16 %v1907
    %v2506 = vunpack.c.l.b16 %v1908
    %v2507 = vunpack.c.h.b16 %v1908
    %v2508 = vunpack.c.l.b16 %v1909
    %v2509 = vunpack.c.h.b16 %v1909
    %v2510 = vunpack.c.l.b16 %v1910
    %v2511 = vunpack.c.h.b16 %v1910
    %v2512 = vunpack.c.l.b16 %v1911
    %v2513 = vunpack.c.h.b16 %v1911
    %v2514 = vunpack.c.l.b16 %v1912
    %v2515 = vunpack.c.h.b16 %v1912
    %v2516 = vunpack.c.l.b16 %v1913
    %v2517 = vunpack.c.h.b16 %v1913
    %v2518 = vunpack.c.l.b16 %v1914
    %v2519 = vunpack.c.h.b16 %v1914
    %v2520 = vunpack.c.l.b16 %v1915
    %v2521 = vunpack.c.h.b16 %v1915
    %v2522 = vunpack.c.l.b16 %v1916
    %v2523 = vunpack.c.h.b16 %v1916
    %v2524 = vunpack.c.l.b16 %v1917
    %v2525 = vunpack.c.h.b16 %v1917
    %v2526 = vunpack.c.l.b16 %v1918
    %v2527 = vunpack.c.h.b16 %v1918
    %v2528 = vunpack.c.l.b16 %v1919
    %v2529 = vunpack.c.h.b16 %v1919
    %v2530 = vunpack.c.l.b16 %v1920
    %v2531 = vunpack.c.h.b16 %v1920
    %v2532 = vunpack.c.l.b16 %v1921
    %v2533 = vunpack.c.h.b16 %v1921
    %v2534 = vunpack.c.l.b16 %v1922
    %v2535 = vunpack.c.h.b16 %v1922
    %v2536 = vunpack.c.l.b16 %v1923
    %v2537 = vunpack.c.h.b16 %v1923
    %v2538 = vunpack.c.l.b16 %v1924
    %v2539 = vunpack.c.h.b16 %v1924
    %v2540 = vunpack.c.l.b16 %v1925
    %v2541 = vunpack.c.h.b16 %v1925
    %v2542 = vunpack.c.l.b16 %v1926
    %v2543 = vunpack.c.h.b16 %v1926
    %v2544 = vunpack.c.l.b16 %v1927
    %v2545 = vunpack.c.h.b16 %v1927
    %v2546 = vunpack.c.l.b16 %v1928
    %v2547 = vunpack.c.h.b16 %v1928
    %v2548 = vunpack.c.l.b16 %v1929
    %v2549 = vunpack.c.h.b16 %v1929
    %v2550 = vunpack.c.l.b16 %v1930
    %v2551 = vunpack.c.h.b16 %v1930
    %v2552 = vunpack.c.l.b16 %v1931
    %v2553 = vunpack.c.h.b16 %v1931
    %v2554 = vunpack.c.l.b16 %v1932
    %v2555 = vunpack.c.h.b16 %v1932
    %v2556 = vunpack.c.l.b16 %v1933
    %v2557 = vunpack.c.h.b16 %v1933
    %v2558 = vunpack.c.l.b16 %v1934
    %v2559 = vunpack.c.h.b16 %v1934
    %v2560 = vunpack.c.l.b16 %v1935
    %v2561 = vunpack.c.h.b16 %v1935
    %v2562 = vunpack.c.l.b16 %v1936
    %v2563 = vunpack.c.h.b16 %v1936
    %v2564 = vunpack.c.l.b16 %v1937
    %v2565 = vunpack.c.h.b16 %v1937
    %v2566 = vunpack.c.l.b16 %v1938
    %v2567 = vunpack.c.h.b16 %v1938
    %v2568 = vunpack.c.l.b16 %v1939
    %v2569 = vunpack.c.h.b16 %v1939
    %v2570 = vunpack.c.l.b16 %v1940
    %v2571 = vunpack.c.h.b16 %v1940
    %v2572 = vunpack.c.l.b16 %v1941
    %v2573 = vunpack.c.h.b16 %v1941
    %v2574 = vunpack.c.l.b16 %v1942
    %v2575 = vunpack.c.h.b16 %v1942
    %v2576 = vunpack.c.l.b16 %v1943
    %v2577 = vunpack.c.h.b16 %v1943
    %v2578 = vunpack.c.l.b16 %v1944
    %v2579 = vunpack.c.h.b16 %v1944
    %v2580 = vunpack.c.l.b16 %v1945
    %v2581 = vunpack.c.h.b16 %v1945
    %v2582 = vunpack.c.l.b16 %v1946
    %v2583 = vunpack.c.h.b16 %v1946
    %v2584 = vunpack.c.l.b16 %v1947
    %v2585 = vunpack.c.h.b16 %v1947
    %v2586 = vunpack.c.l.b16 %v1948
    %v2587 = vunpack.c.h.b16 %v1948
    %v2588 = vunpack.c.l.b16 %v1949
    %v2589 = vunpack.c.h.b16 %v1949
    %v2590 = vunpack.c.l.b16 %v1950
    %v2591 = vunpack.c.h.b16 %v1950
    %v2592 = vunpack.c.l.b16 %v1951
    %v2593 = vunpack.c.h.b16 %v1951
    %v2594 = vunpack.c.l.b16 %v1952
    %v2595 = vunpack.c.h.b16 %v1952
    %v2596 = vunpack.c.l.b16 %v1953
    %v2597 = vunpack.c.h.b16 %v1953
    %v2598 = vunpack.c.l.b16 %v1954
    %v2599 = vunpack.c.h.b16 %v1954
    %v2600 = vunpack.c.l.b16 %v1955
    %v2601 = vunpack.c.h.b16 %v1955
    %v2602 = vunpack.c.l.b16 %v1956
    %v2603 = vunpack.c.h.b16 %v1956
    %v2604 = vunpack.c.l.b16 %v1957
    %v2605 = vunpack.c.h.b16 %v1957
    %v2606 = vunpack.c.l.b16 %v1958
    %v2607 = vunpack.c.h.b16 %v1958
    %v2608 = vunpack.c.l.b16 %v1959
    %v2609 = vunpack.c.h.b16 %v1959
    %v2610 = vunpack.c.l.b16 %v1960
    %v2611 = vunpack.c.h.b16 %v1960
    %v2612 = vunpack.c.l.b16 %v1961
    %v2613 = vunpack.c.h.b16 %v1961
    %v2614 = vunpack.c.l.b16 %v1962
    %v2615 = vunpack.c.h.b16 %v1962
    %v2616 = vunpack.c.l.b16 %v1963
    %v2617 = vunpack.c.h.b16 %v1963
    %v2618 = vunpack.c.l.b16 %v1964
    %v2619 = vunpack.c.h.b16 %v1964
    %v2620 = vunpack.c.l.b16 %v1965
    %v2621 = vunpack.c.h.b16 %v1965
    %v2622 = vunpack.c.l.b16 %v1966
    %v2623 = vunpack.c.h.b16 %v1966
    %v2624 = vunpack.c.l.b16 %v1967
    %v2625 = vunpack.c.h.b16 %v1967
    %v2626 = vunpack.c.l.b16 %v1968
    %v2627 = vunpack.c.h.b16 %v1968
    %v2628 = vunpack.c.l.b16 %v1969
    %v2629 = vunpack.c.h.b16 %v1969
    %v2630 = vunpack.c.l.b16 %v1970
    %v2631 = vunpack.c.h.b16 %v1970
    %v2632 = vunpack.c.l.b16 %v1971
    %v2633 = vunpack.c.h.b16 %v1971
    %v2634 = vunpack.c.l.b16 %v1972
    %v2635 = vunpack.c.h.b16 %v1972
    %v2636 = vunpack.c.l.b16 %v1973
    %v2637 = vunpack.c.h.b16 %v1973
    %v2638 = vunpack.c.l.b16 %v1974
    %v2639 = vunpack.c.h.b16 %v1974
    %v2640 = vunpack.c.l.b16 %v1975
    %v2641 = vunpack.c.h.b16 %v1975
    %v2642 = vunpack.c.l.b16 %v1976
    %v2643 = vunpack.c.h.b16 %v1976
    %v2644 = vunpack.c.l.b16 %v1977
    %v2645 = vunpack.c.h.b16 %v1977
    %v2646 = vunpack.c.l.b16 %v1978
    %v2647 = vunpack.c.h.b16 %v1978
    %v2648 = vunpack.c.l.b16 %v1979
    %v2649 = vunpack.c.h.b16 %v1979
    %v2650 = vunpack.c.l.b16 %v1980
    %v2651 = vunpack.c.h.b16 %v1980
    %v2652 = vunpack.c.l.b16 %v1981
    %v2653 = vunpack.c.h.b16 %v1981
    %v2654 = vunpack.c.l.b16 %v1982
    %v2655 = vunpack.c.h.b16 %v1982
    %v2656 = vunpack.c.l.b16 %v1983
    %v2657 = vunpack.c.h.b16 %v1983
    %v2658 = vunpack.c.l.b16 %v1984
    %v2659 = vunpack.c.h.b16 %v1984
    %v2660 = vunpack.c.l.b16 %v1985
    %v2661 = vunpack.c.h.b16 %v1985
    %v2662 = vunpack.c.l.b16 %v1986
    %v2663 = vunpack.c.h.b16 %v1986
    %v2664 = vunpack.c.l.b16 %v1987
    %v2665 = vunpack.c.h.b16 %v1987
    %v2666 = vunpack.c.l.b16 %v1988
    %v2667 = vunpack.c.h.b16 %v1988
    %v2668 = vunpack.c.l.b16 %v1989
    %v2669 = vunpack.c.h.b16 %v1989
    %v2670 = vunpack.c.l.b16 %v1990
    %v2671 = vunpack.c.h.b16 %v1990
    %v2672 = vunpack.c.l.b16 %v1991
    %v2673 = vunpack.c.h.b16 %v1991
    %v2674 = vunpack.c.l.b16 %v1992
    %v2675 = vunpack.c.h.b16 %v1992
    %v2676 = vunpack.c.l.b16 %v1993
    %v2677 = vunpack.c.h.b16 %v1993
    %v2678 = vunpack.c.l.b16 %v1994
    %v2679 = vunpack.c.h.b16 %v1994
    %v2680 = vunpack.c.l.b16 %v1995
    %v2681 = vunpack.c.h.b16 %v1995
    %v2682 = vunpack.c.l.b16 %v1996
    %v2683 = vunpack.c.h.b16 %v1996
    %v2684 = vunpack.c.l.b16 %v1997
    %v2685 = vunpack.c.h.b16 %v1997
    %v2686 = vunpack.c.l.b16 %v1998
    %v2687 = vunpack.c.h.b16 %v1998
    %v2688 = vunpack.c.l.b16 %v1999
    %v2689 = vunpack.c.h.b16 %v1999
    %v2690 = vunpack.c.l.b16 %v2000
    %v2691 = vunpack.c.h.b16 %v2000
    %v2692 = vunpack.c.l.b16 %v2001
    %v2693 = vunpack.c.h.b16 %v2001
    %v2694 = vunpack.c.l.b16 %v2002
    %v2695 = vunpack.c.h.b16 %v2002
    %v2696 = vunpack.c.l.b16 %v2003
    %v2697 = vunpack.c.h.b16 %v2003
    %v2698 = vunpack.c.l.b16 %v2004
    %v2699 = vunpack.c.h.b16 %v2004
    %v2700 = vunpack.c.l.b16 %v2005
    %v2701 = vunpack.c.h.b16 %v2005
    %v2702 = vunpack.c.l.b16 %v2006
    %v2703 = vunpack.c.h.b16 %v2006
    %v2704 = vunpack.c.l.b16 %v2007
    %v2705 = vunpack.c.h.b16 %v2007
    %v2706 = vunpack.c.l.b16 %v2008
    %v2707 = vunpack.c.h.b16 %v2008
    %v2708 = vunpack.c.l.b16 %v2009
    %v2709 = vunpack.c.h.b16 %v2009
    %v2710 = vunpack.c.l.b16 %v2010
    %v2711 = vunpack.c.h.b16 %v2010
    %v2712 = vunpack.c.l.b16 %v2011
    %v2713 = vunpack.c.h.b16 %v2011
    %v2714 = vunpack.c.l.b16 %v2012
    %v2715 = vunpack.c.h.b16 %v2012
    %v2716 = vunpack.c.l.b16 %v2013
    %v2717 = vunpack.c.h.b16 %v2013
    %v2718 = vunpack.c.l.b16 %v2014
    %v2719 = vunpack.c.h.b16 %v2014
    %v2720 = vunpack.c.l.b16 %v2015
    %v2721 = vunpack.c.h.b16 %v2015
    %v2722 = vunpack.c.l.b16 %v2016
    %v2723 = vunpack.c.h.b16 %v2016
    %v2724 = vunpack.c.l.b16 %v2017
    %v2725 = vunpack.c.h.b16 %v2017
    %v2726 = vunpack.c.l.b16 %v2018
    %v2727 = vunpack.c.h.b16 %v2018
    %v2728 = vunpack.c.l.b16 %v2019
    %v2729 = vunpack.c.h.b16 %v2019
    %v2730 = vunpack.c.l.b16 %v2020
    %v2731 = vunpack.c.h.b16 %v2020
    %v2732 = vunpack.c.l.b16 %v2021
    %v2733 = vunpack.c.h.b16 %v2021
    %v2734 = vunpack.c.l.b16 %v2022
    %v2735 = vunpack.c.h.b16 %v2022
    %v2736 = vunpack.c.l.b16 %v2023
    %v2737 = vunpack.c.h.b16 %v2023
    %v2738 = vunpack.c.l.b16 %v2024
    %v2739 = vunpack.c.h.b16 %v2024
    %v2740 = vunpack.c.l.b16 %v2025
    %v2741 = vunpack.c.h.b16 %v2025
    %v2742 = vunpack.c.l.b16 %v2026
    %v2743 = vunpack.c.h.b16 %v2026
    %v2744 = vunpack.c.l.b16 %v2027
    %v2745 = vunpack.c.h.b16 %v2027
    %v2746 = vunpack.c.l.b16 %v2028
    %v2747 = vunpack.c.h.b16 %v2028
    %v2748 = vunpack.c.l.b16 %v2029
    %v2749 = vunpack.c.h.b16 %v2029
    %v2750 = vunpack.c.l.b16 %v2030
    %v2751 = vunpack.c.h.b16 %v2030
    %v2752 = vunpack.c.l.b16 %v2031
    %v2753 = vunpack.c.h.b16 %v2031
    %v2754 = vunpack.c.l.b16 %v2032
    %v2755 = vunpack.c.h.b16 %v2032
    %v2756 = vunpack.c.l.b16 %v2033
    %v2757 = vunpack.c.h.b16 %v2033
    %v2758 = vunpack.c.l.b16 %v2034
    %v2759 = vunpack.c.h.b16 %v2034
    %v2760 = vunpack.c.l.b16 %v2035
    %v2761 = vunpack.c.h.b16 %v2035
    %v2762 = vunpack.c.l.b16 %v2036
    %v2763 = vunpack.c.h.b16 %v2036
    %v2764 = vunpack.c.l.b16 %v2037
    %v2765 = vunpack.c.h.b16 %v2037
    %v2766 = vunpack.c.l.b16 %v2038
    %v2767 = vunpack.c.h.b16 %v2038
    %v2768 = vunpack.c.l.b16 %v2039
    %v2769 = vunpack.c.h.b16 %v2039
    %v2770 = vunpack.c.l.b16 %v2040
    %v2771 = vunpack.c.h.b16 %v2040
    %v2772 = vunpack.c.l.b16 %v2041
    %v2773 = vunpack.c.h.b16 %v2041
    %v2774 = vunpack.c.l.b16 %v2042
    %v2775 = vunpack.c.h.b16 %v2042
    %v2776 = vunpack.c.l.b16 %v2043
    %v2777 = vunpack.c.h.b16 %v2043
    %v2778 = vunpack.c.l.b16 %v2044
    %v2779 = vunpack.c.h.b16 %v2044
    %v2780 = vunpack.c.l.b16 %v2045
    %v2781 = vunpack.c.h.b16 %v2045
    %v2782 = vunpack.c.l.b16 %v2046
    %v2783 = vunpack.c.h.b16 %v2046
    %v2784 = vunpack.c.l.b16 %v2047
    %v2785 = vunpack.c.h.b16 %v2047
    %v2786 = vunpack.c.l.b16 %v2048
    %v2787 = vunpack.c.h.b16 %v2048
    %v2788 = vunpack.c.l.b16 %v2049
    %v2789 = vunpack.c.h.b16 %v2049
    %v2790 = vunpack.c.l.b16 %v2050
    %v2791 = vunpack.c.h.b16 %v2050
    %v2792 = vunpack.c.l.b16 %v2051
    %v2793 = vunpack.c.h.b16 %v2051
    %v2794 = vunpack.c.l.b16 %v2052
    %v2795 = vunpack.c.h.b16 %v2052
    %v2796 = vunpack.c.l.b16 %v2053
    %v2797 = vunpack.c.h.b16 %v2053
    %v2798 = vunpack.c.l.b16 %v2054
    %v2799 = vunpack.c.h.b16 %v2054
    %v2800 = vunpack.c.l.b16 %v2055
    %v2801 = vunpack.c.h.b16 %v2055
    %v2802 = vunpack.c.l.b16 %v2056
    %v2803 = vunpack.c.h.b16 %v2056
    %v2804 = vunpack.c.l.b16 %v2057
    %v2805 = vunpack.c.h.b16 %v2057
    %v2806 = vunpack.c.l.b16 %v2058
    %v2807 = vunpack.c.h.b16 %v2058
    %v2808 = vunpack.c.l.b16 %v2059
    %v2809 = vunpack.c.h.b16 %v2059
    %v2810 = vunpack.c.l.b16 %v2060
    %v2811 = vunpack.c.h.b16 %v2060
    %v2812 = vunpack.c.l.b16 %v2061
    %v2813 = vunpack.c.h.b16 %v2061
    %v2814 = vunpack.c.l.b16 %v2062
    %v2815 = vunpack.c.h.b16 %v2062
    %v2816 = vunpack.c.l.b16 %v2063
    %v2817 = vunpack.c.h.b16 %v2063
    %v2818 = vunpack.c.l.b16 %v2064
    %v2819 = vunpack.c.h.b16 %v2064
    %v2820 = vunpack.c.l.b16 %v2065
    %v2821 = vunpack.c.h.b16 %v2065
    %v2822 = vunpack.c.l.b16 %v2066
    %v2823 = vunpack.c.h.b16 %v2066
    %v2824 = vunpack.c.l.b16 %v2067
    %v2825 = vunpack.c.h.b16 %v2067
    %v2826 = vunpack.c.l.b16 %v2068
    %v2827 = vunpack.c.h.b16 %v2068
    %v2828 = vunpack.c.l.b16 %v2069
    %v2829 = vunpack.c.h.b16 %v2069
    %v2830 = vunpack.c.l.b16 %v2070
    %v2831 = vunpack.c.h.b16 %v2070
    %v2832 = vunpack.c.l.b16 %v2071
    %v2833 = vunpack.c.h.b16 %v2071
    %v2834 = vunpack.c.l.b16 %v2072
    %v2835 = vunpack.c.h.b16 %v2072
    %v2836 = vunpack.c.l.b16 %v2073
    %v2837 = vunpack.c.h.b16 %v2073
    %v2838 = vunpack.c.l.b16 %v2074
    %v2839 = vunpack.c.h.b16 %v2074
    %v2840 = vunpack.c.l.b16 %v2075
    %v2841 = vunpack.c.h.b16 %v2075
    %v2842 = vunpack.c.l.b16 %v2076
    %v2843 = vunpack.c.h.b16 %v2076
    %v2844 = vunpack.c.l.b16 %v2077
    %v2845 = vunpack.c.h.b16 %v2077
    %v2846 = vunpack.c.l.b16 %v2078
    %v2847 = vunpack.c.h.b16 %v2078
    %v2848 = vunpack.c.l.b16 %v2079
    %v2849 = vunpack.c.h.b16 %v2079
    %v2850 = vunpack.c.l.b16 %v2080
    %v2851 = vunpack.c.h.b16 %v2080
    %v2852 = vunpack.c.l.b16 %v2081
    %v2853 = vunpack.c.h.b16 %v2081
    %v2854 = vunpack.c.l.b16 %v2082
    %v2855 = vunpack.c.h.b16 %v2082
    %v2856 = vunpack.c.l.b16 %v2083
    %v2857 = vunpack.c.h.b16 %v2083
    %v2858 = vunpack.c.l.b16 %v2084
    %v2859 = vunpack.c.h.b16 %v2084
    %v2860 = vunpack.c.l.b16 %v2085
    %v2861 = vunpack.c.h.b16 %v2085
    %v2862 = vunpack.c.l.b16 %v2086
    %v2863 = vunpack.c.h.b16 %v2086
    %v2864 = vunpack.c.l.b16 %v2087
    %v2865 = vunpack.c.h.b16 %v2087
    %v2866 = vunpack.c.l.b16 %v2088
    %v2867 = vunpack.c.h.b16 %v2088
    %v2868 = vunpack.c.l.b16 %v2089
    %v2869 = vunpack.c.h.b16 %v2089
    %v2870 = vunpack.c.l.b16 %v2090
    %v2871 = vunpack.c.h.b16 %v2090
    %v2872 = vunpack.c.l.b16 %v2091
    %v2873 = vunpack.c.h.b16 %v2091
    %v2874 = vunpack.c.l.b16 %v2092
    %v2875 = vunpack.c.h.b16 %v2092
    %v2876 = vunpack.c.l.b16 %v2093
    %v2877 = vunpack.c.h.b16 %v2093
    %v2878 = vunpack.c.l.b16 %v2094
    %v2879 = vunpack.c.h.b16 %v2094
    %v2880 = vunpack.c.l.b16 %v2095
    %v2881 = vunpack.c.h.b16 %v2095
    %v2882 = vunpack.c.l.b16 %v2096
    %v2883 = vunpack.c.h.b16 %v2096
    %v2884 = vunpack.c.l.b16 %v2097
    %v2885 = vunpack.c.h.b16 %v2097
    %v2886 = vunpack.c.l.b16 %v2098
    %v2887 = vunpack.c.h.b16 %v2098
    %v2888 = vunpack.c.l.b16 %v2099
    %v2889 = vunpack.c.h.b16 %v2099
    %v2890 = vpack.c.b16 %v2382, %v2378
    %v2891 = vpack.c.b16 %v2383, %v2379
    %v2892 = vpack.c.b16 %v2384, %v2380
    %v2893 = vpack.c.b16 %v2385, %v2381
    %v2894 = vpack.c.b16 %v2390, %v2386
    %v2895 = vpack.c.b16 %v2391, %v2387
    %v2896 = vpack.c.b16 %v2392, %v2388
    %v2897 = vpack.c.b16 %v2393, %v2389
    %v2898 = vpack.c.b16 %v2398, %v2394
    %v2899 = vpack.c.b16 %v2399, %v2395
    %v2900 = vpack.c.b16 %v2400, %v2396
    %v2901 = vpack.c.b16 %v2401, %v2397
    %v2902 = vpack.c.b16 %v2406, %v2402
    %v2903 = vpack.c.b16 %v2407, %v2403
    %v2904 = vpack.c.b16 %v2408, %v2404
    %v2905 = vpack.c.b16 %v2409, %v2405
    %v2906 = vpack.c.b16 %v2414, %v2410
    %v2907 = vpack.c.b16 %v2415, %v2411
    %v2908 = vpack.c.b16 %v2416, %v2412
    %v2909 = vpack.c.b16 %v2417, %v2413
    %v2910 = vpack.c.b16 %v2422, %v2418
    %v2911 = vpack.c.b16 %v2423, %v2419
    %v2912 = vpack.c.b16 %v2424, %v2420
    %v2913 = vpack.c.b16 %v2425, %v2421
    %v2914 = vpack.c.b16 %v2430, %v2426
    %v2915 = vpack.c.b16 %v2431, %v2427
    %v2916 = vpack.c.b16 %v2432, %v2428
    %v2917 = vpack.c.b16 %v2433, %v2429
    %v2918 = vpack.c.b16 %v2438, %v2434
    %v2919 = vpack.c.b16 %v2439, %v2435
    %v2920 = vpack.c.b16 %v2440, %v2436
    %v2921 = vpack.c.b16 %v2441, %v2437
    %v2922 = vpack.c.b16 %v2446, %v2442
    %v2923 = vpack.c.b16 %v2447, %v2443
    %v2924 = vpack.c.b16 %v2448, %v2444
    %v2925 = vpack.c.b16 %v2449, %v2445
    %v2926 = vpack.c.b16 %v2454, %v2450
    %v2927 = vpack.c.b16 %v2455, %v2451
    %v2928 = vpack.c.b16 %v2456, %v2452
    %v2929 = vpack.c.b16 %v2457, %v2453
    %v2930 = vpack.c.b16 %v2462, %v2458
    %v2931 = vpack.c.b16 %v2463, %v2459
    %v2932 = vpack.c.b16 %v2464, %v2460
    %v2933 = vpack.c.b16 %v2465, %v2461
    %v2934 = vpack.c.b16 %v2470, %v2466
    %v2935 = vpack.c.b16 %v2471, %v2467
    %v2936 = vpack.c.b16 %v2472, %v2468
    %v2937 = vpack.c.b16 %v2473, %v2469
    %v2938 = vpack.c.b16 %v2478, %v2474
    %v2939 = vpack.c.b16 %v2479, %v2475
    %v2940 = vpack.c.b16 %v2480, %v2476
    %v2941 = vpack.c.b16 %v2481, %v2477
    %v2942 = vpack.c.b16 %v2486, %v2482
    %v2943 = vpack.c.b16 %v2487, %v2483
    %v2944 = vpack.c.b16 %v2488, %v2484
    %v2945 = vpack.c.b16 %v2489, %v2485
    %v2946 = vpack.c.b16 %v2494, %v2490
    %v2947 = vpack.c.b16 %v2495, %v2491
    %v2948 = vpack.c.b16 %v2496, %v2492
    %v2949 = vpack.c.b16 %v2497, %v2493
    %v2950 = vpack.c.b16 %v2502, %v2498
    %v2951 = vpack.c.b16 %v2503, %v2499
    %v2952 = vpack.c.b16 %v2504, %v2500
    %v2953 = vpack.c.b16 %v2505, %v2501
    %v2954 = vpack.c.b16 %v2510, %v2506
    %v2955 = vpack.c.b16 %v2511, %v2507
    %v2956 = vpack.c.b16 %v2512, %v2508
    %v2957 = vpack.c.b16 %v2513, %v2509
    %v2958 = vpack.c.b16 %v2518, %v2514
    %v2959 = vpack.c.b16 %v2519, %v2515
    %v2960 = vpack.c.b16 %v2520, %v2516
    %v2961 = vpack.c.b16 %v2521, %v2517
    %v2962 = vpack.c.b16 %v2526, %v2522
    %v2963 = vpack.c.b16 %v2527, %v2523
    %v2964 = vpack.c.b16 %v2528, %v2524
    %v2965 = vpack.c.b16 %v2529, %v2525
    %v2966 = vpack.c.b16 %v2534, %v2530
    %v2967 = vpack.c.b16 %v2535, %v2531
    %v2968 = vpack.c.b16 %v2536, %v2532
    %v2969 = vpack.c.b16 %v2537, %v2533
    %v2970 = vpack.c.b16 %v2542, %v2538
    %v2971 = vpack.c.b16 %v2543, %v2539
    %v2972 = vpack.c.b16 %v2544, %v2540
    %v2973 = vpack.c.b16 %v2545, %v2541
    %v2974 = vpack.c.b16 %v2550, %v2546
    %v2975 = vpack.c.b16 %v2551, %v2547
    %v2976 = vpack.c.b16 %v2552, %v2548
    %v2977 = vpack.c.b16 %v2553, %v2549
    %v2978 = vpack.c.b16 %v2558, %v2554
    %v2979 = vpack.c.b16 %v2559, %v2555
    %v2980 = vpack.c.b16 %v2560, %v2556
    %v2981 = vpack.c.b16 %v2561, %v2557
    %v2982 = vpack.c.b16 %v2566, %v2562
    %v2983 = vpack.c.b16 %v2567, %v2563
    %v2984 = vpack.c.b16 %v2568, %v2564
    %v2985 = vpack.c.b16 %v2569, %v2565
    %v2986 = vpack.c.b16 %v2574, %v2570
    %v2987 = vpack.c.b16 %v2575, %v2571
    %v2988 = vpack.c.b16 %v2576, %v2572
    %v2989 = vpack.c.b16 %v2577, %v2573
    %v2990 = vpack.c.b16 %v2582, %v2578
    %v2991 = vpack.c.b16 %v2583, %v2579
    %v2992 = vpack.c.b16 %v2584, %v2580
    %v2993 = vpack.c.b16 %v2585, %v2581
    %v2994 = vpack.c.b16 %v2590, %v2586
    %v2995 = vpack.c.b16 %v2591, %v2587
    %v2996 = vpack.c.b16 %v2592, %v2588
    %v2997 = vpack.c.b16 %v2593, %v2589
    %v2998 = vpack.c.b16 %v2598, %v2594
    %v2999 = vpack.c.b16 %v2599, %v2595
    %v3000 = vpack.c.b16 %v2600, %v2596
    %v3001 = vpack.c.b16 %v2601, %v2597
    %v3002 = vpack.c.b16 %v2606, %v2602
    %v3003 = vpack.c.b16 %v2607, %v2603
    %v3004 = vpack.c.b16 %v2608, %v2604
    %v3005 = vpack.c.b16 %v2609, %v2605
    %v3006 = vpack.c.b16 %v2614, %v2610
    %v3007 = vpack.c.b16 %v2615, %v2611
    %v3008 = vpack.c.b16 %v2616, %v2612
    %v3009 = vpack.c.b16 %v2617, %v2613
    %v3010 = vpack.c.b16 %v2622, %v2618
    %v3011 = vpack.c.b16 %v2623, %v2619
    %v3012 = vpack.c.b16 %v2624, %v2620
    %v3013 = vpack.c.b16 %v2625, %v2621
    %v3014 = vpack.c.b16 %v2630, %v2626
    %v3015 = vpack.c.b16 %v2631, %v2627
    %v3016 = vpack.c.b16 %v2632, %v2628
    %v3017 = vpack.c.b16 %v2633, %v2629
    %v3018 = vpack.c.b16 %v2638, %v2634
    %v3019 = vpack.c.b16 %v2639, %v2635
    %v3020 = vpack.c.b16 %v2640, %v2636
    %v3021 = vpack.c.b16 %v2641, %v2637
    %v3022 = vpack.c.b16 %v2646, %v2642
    %v3023 = vpack.c.b16 %v2647, %v2643
    %v3024 = vpack.c.b16 %v2648, %v2644
    %v3025 = vpack.c.b16 %v2649, %v2645
    %v3026 = vpack.c.b16 %v2654, %v2650
    %v3027 = vpack.c.b16 %v2655, %v2651
    %v3028 = vpack.c.b16 %v2656, %v2652
    %v3029 = vpack.c.b16 %v2657, %v2653
    %v3030 = vpack.c.b16 %v2662, %v2658
    %v3031 = vpack.c.b16 %v2663, %v2659
    %v3032 = vpack.c.b16 %v2664, %v2660
    %v3033 = vpack.c.b16 %v2665, %v2661
    %v3034 = vpack.c.b16 %v2670, %v2666
    %v3035 = vpack.c.b16 %v2671, %v2667
    %v3036 = vpack.c.b16 %v2672, %v2668
    %v3037 = vpack.c.b16 %v2673, %v2669
    %v3038 = vpack.c.b16 %v2678, %v2674
    %v3039 = vpack.c.b16 %v2679, %v2675
    %v3040 = vpack.c.b16 %v2680, %v2676
    %v3041 = vpack.c.b16 %v2681, %v2677
    %v3042 = vpack.c.b16 %v2686, %v2682
    %v3043 = vpack.c.b16 %v2687, %v2683
    %v3044 = vpack.c.b16 %v2688, %v2684
    %v3045 = vpack.c.b16 %v2689, %v2685
    %v3046 = vpack.c.b16 %v2694, %v2690
    %v3047 = vpack.c.b16 %v2695, %v2691
    %v3048 = vpack.c.b16 %v2696, %v2692
    %v3049 = vpack.c.b16 %v2697, %v2693
    %v3050 = vpack.c.b16 %v2702, %v2698
    %v3051 = vpack.c.b16 %v2703, %v2699
    %v3052 = vpack.c.b16 %v2704, %v2700
    %v3053 = vpack.c.b16 %v2705, %v2701
    %v3054 = vpack.c.b16 %v2710, %v2706
    %v3055 = vpack.c.b16 %v2711, %v2707
    %v3056 = vpack.c.b16 %v2712, %v2708
    %v3057 = vpack.c.b16 %v2713, %v2709
    %v3058 = vpack.c.b16 %v2718, %v2714
    %v3059 = vpack.c.b16 %v2719, %v2715
    %v3060 = vpack.c.b16 %v2720, %v2716
    %v3061 = vpack.c.b16 %v2721, %v2717
    %v3062 = vpack.c.b16 %v2726, %v2722
    %v3063 = vpack.c.b16 %v2727, %v2723
    %v3064 = vpack.c.b16 %v2728, %v2724
    %v3065 = vpack.c.b16 %v2729, %v2725
    %v3066 = vpack.c.b16 %v2734, %v2730
    %v3067 = vpack.c.b16 %v2735, %v2731
    %v3068 = vpack.c.b16 %v2736, %v2732
    %v3069 = vpack.c.b16 %v2737, %v2733
    %v3070 = vpack.c.b16 %v2742, %v2738
    %v3071 = vpack.c.b16 %v2743, %v2739
    %v3072 = vpack.c.b16 %v2744, %v2740
    %v3073 = vpack.c.b16 %v2745, %v2741
    %v3074 = vpack.c.b16 %v2750, %v2746
    %v3075 = vpack.c.b16 %v2751, %v2747
    %v3076 = vpack.c.b16 %v2752, %v2748
    %v3077 = vpack.c.b16 %v2753, %v2749
    %v3078 = vpack.c.b16 %v2758, %v2754
    %v3079 = vpack.c.b16 %v2759, %v2755
    %v3080 = vpack.c.b16 %v2760, %v2756
    %v3081 = vpack.c.b16 %v2761, %v2757
    %v3082 = vpack.c.b16 %v2766, %v2762
    %v3083 = vpack.c.b16 %v2767, %v2763
    %v3084 = vpack.c.b16 %v2768, %v2764
    %v3085 = vpack.c.b16 %v2769, %v2765
    %v3086 = vpack.c.b16 %v2774, %v2770
    %v3087 = vpack.c.b16 %v2775, %v2771
    %v3088 = vpack.c.b16 %v2776, %v2772
    %v3089 = vpack.c.b16 %v2777, %v2773
    %v3090 = vpack.c.b16 %v2782, %v2778
    %v3091 = vpack.c.b16 %v2783, %v2779
    %v3092 = vpack.c.b16 %v2784, %v2780
    %v3093 = vpack.c.b16 %v2785, %v2781
    %v3094 = vpack.c.b16 %v2790, %v2786
    %v3095 = vpack.c.b16 %v2791, %v2787
    %v3096 = vpack.c.b16 %v2792, %v2788
    %v3097 = vpack.c.b16 %v2793, %v2789
    %v3098 = vpack.c.b16 %v2798, %v2794
    %v3099 = vpack.c.b16 %v2799, %v2795
    %v3100 = vpack.c.b16 %v2800, %v2796
    %v3101 = vpack.c.b16 %v2801, %v2797
    %v3102 = vpack.c.b16 %v2806, %v2802
    %v3103 = vpack.c.b16 %v2807, %v2803
    %v3104 = vpack.c.b16 %v2808, %v2804
    %v3105 = vpack.c.b16 %v2809, %v2805
    %v3106 = vpack.c.b16 %v2814, %v2810
    %v3107 = vpack.c.b16 %v2815, %v2811
    %v3108 = vpack.c.b16 %v2816, %v2812
    %v3109 = vpack.c.b16 %v2817, %v2813
    %v3110 = vpack.c.b16 %v2822, %v2818
    %v3111 = vpack.c.b16 %v2823, %v2819
    %v3112 = vpack.c.b16 %v2824, %v2820
    %v3113 = vpack.c.b16 %v2825, %v2821
    %v3114 = vpack.c.b16 %v2830, %v2826
    %v3115 = vpack.c.b16 %v2831, %v2827
    %v3116 = vpack.c.b16 %v2832, %v2828
    %v3117 = vpack.c.b16 %v2833, %v2829
    %v3118 = vpack.c.b16 %v2838, %v2834
    %v3119 = vpack.c.b16 %v2839, %v2835
    %v3120 = vpack.c.b16 %v2840, %v2836
    %v3121 = vpack.c.b16 %v2841, %v2837
    %v3122 = vpack.c.b16 %v2846, %v2842
    %v3123 = vpack.c.b16 %v2847, %v2843
    %v3124 = vpack.c.b16 %v2848, %v2844
    %v3125 = vpack.c.b16 %v2849, %v2845
    %v3126 = vpack.c.b16 %v2854, %v2850
    %v3127 = vpack.c.b16 %v2855, %v2851
    %v3128 = vpack.c.b16 %v2856, %v2852
    %v3129 = vpack.c.b16 %v2857, %v2853
    %v3130 = vpack.c.b16 %v2862, %v2858
    %v3131 = vpack.c.b16 %v2863, %v2859
    %v3132 = vpack.c.b16 %v2864, %v2860
    %v3133 = vpack.c.b16 %v2865, %v2861
    %v3134 = vpack.c.b16 %v2870, %v2866
    %v3135 = vpack.c.b16 %v2871, %v2867
    %v3136 = vpack.c.b16 %v2872, %v2868
    %v3137 = vpack.c.b16 %v2873, %v2869
    %v3138 = vpack.c.b16 %v2878, %v2874
    %v3139 = vpack.c.b16 %v2879, %v2875
    %v3140 = vpack.c.b16 %v2880, %v2876
    %v3141 = vpack.c.b16 %v2881, %v2877
    %v3142 = vpack.c.b16 %v2886, %v2882
    %v3143 = vpack.c.b16 %v2887, %v2883
    %v3144 = vpack.c.b16 %v2888, %v2884
    %v3145 = vpack.c.b16 %v2889, %v2885
    %3402 = vmatprep.subr.bf16.mxu0 %v2891
    %3403 = vmatpush1.bf16.msra.mxu0 %v2890
    %3404 = vmatprep.subr.bf16.mxu0 %v2895
    %3405 = vmatpush1.bf16.msra.mxu0 %v2894
    %3406 = vmatprep.subr.bf16.mxu0 %v2899
    %3407 = vmatpush1.bf16.msra.mxu0 %v2898
    %3408 = vmatprep.subr.bf16.mxu0 %v2903
    %3409 = vmatpush1.bf16.msra.mxu0 %v2902
    %3410 = vmatprep.subr.bf16.mxu0 %v2907
    %3411 = vmatpush1.bf16.msra.mxu0 %v2906
    %3412 = vmatprep.subr.bf16.mxu0 %v2911
    %3413 = vmatpush1.bf16.msra.mxu0 %v2910
    %3414 = vmatprep.subr.bf16.mxu0 %v2915
    %3415 = vmatpush1.bf16.msra.mxu0 %v2914
    %3416 = vmatprep.subr.bf16.mxu0 %v2919
    %3417 = vmatpush1.bf16.msra.mxu0 %v2918
    %3418 = vmatprep.subr.bf16.mxu0 %v2923
    %3419 = vmatpush1.bf16.msra.mxu0 %v2922
    %3420 = vmatprep.subr.bf16.mxu0 %v2927
    %3421 = vmatpush1.bf16.msra.mxu0 %v2926
    %3422 = vmatprep.subr.bf16.mxu0 %v2931
    %3423 = vmatpush1.bf16.msra.mxu0 %v2930
    %3424 = vmatprep.subr.bf16.mxu0 %v2935
    %3425 = vmatpush1.bf16.msra.mxu0 %v2934
    %3426 = vmatprep.subr.bf16.mxu0 %v2939
    %3427 = vmatpush1.bf16.msra.mxu0 %v2938
    %3428 = vmatprep.subr.bf16.mxu0 %v2943
    %3429 = vmatpush1.bf16.msra.mxu0 %v2942
    %3430 = vmatprep.subr.bf16.mxu0 %v2947
    %3431 = vmatpush1.bf16.msra.mxu0 %v2946
    %3432 = vmatprep.subr.bf16.mxu0 %v2951
    %3433 = vmatpush1.bf16.msra.mxu0 %v2950
    %3434 = vmatprep.mubr.bf16.mxu0 %v1837
    %3435 = vmatmul.mubr.bf16.gmra.mrb[0].mxu0 %v1836
    %v3436 = vpop.f32.mrb[0].mxu0
    %v3437 = vadd.f32 %v2105, %v3436
    %v3438 = vpop.f32.mrb[0].mxu0
    %v3439 = vadd.f32 %v2109, %v3438
    %v3440 = vpop.f32.mrb[0].mxu0
    %v3441 = vpop.f32.mrb[0].mxu0
    %3442 = vdwg.mxu0
    %3443 = vmatprep.subr.bf16.mxu0 %v2955
    %3444 = vmatpush1.bf16.msra.mxu0 %v2954
    %3445 = vmatprep.subr.bf16.mxu0 %v2959
    %3446 = vmatpush1.bf16.msra.mxu0 %v2958
    %3447 = vmatprep.subr.bf16.mxu0 %v2963
    %3448 = vmatpush1.bf16.msra.mxu0 %v2962
    %3449 = vmatprep.subr.bf16.mxu0 %v2967
    %3450 = vmatpush1.bf16.msra.mxu0 %v2966
    %3451 = vmatprep.subr.bf16.mxu0 %v2971
    %3452 = vmatpush1.bf16.msra.mxu0 %v2970
    %3453 = vmatprep.subr.bf16.mxu0 %v2975
    %3454 = vmatpush1.bf16.msra.mxu0 %v2974
    %3455 = vmatprep.subr.bf16.mxu0 %v2979
    %3456 = vmatpush1.bf16.msra.mxu0 %v2978
    %3457 = vmatprep.subr.bf16.mxu0 %v2983
    %3458 = vmatpush1.bf16.msra.mxu0 %v2982
    %3459 = vmatprep.subr.bf16.mxu0 %v2987
    %3460 = vmatpush1.bf16.msra.mxu0 %v2986
    %3461 = vmatprep.subr.bf16.mxu0 %v2991
    %3462 = vmatpush1.bf16.msra.mxu0 %v2990
    %3463 = vmatprep.subr.bf16.mxu0 %v2995
    %3464 = vmatpush1.bf16.msra.mxu0 %v2994
    %3465 = vmatprep.subr.bf16.mxu0 %v2999
    %3466 = vmatpush1.bf16.msra.mxu0 %v2998
    %3467 = vmatprep.subr.bf16.mxu0 %v3003
    %3468 = vmatpush1.bf16.msra.mxu0 %v3002
    %3469 = vmatprep.subr.bf16.mxu0 %v3007
    %3470 = vmatpush1.bf16.msra.mxu0 %v3006
    %3471 = vmatprep.subr.bf16.mxu0 %v3011
    %3472 = vmatpush1.bf16.msra.mxu0 %v3010
    %3473 = vmatprep.subr.bf16.mxu0 %v3015
    %3474 = vmatpush1.bf16.msra.mxu0 %v3014
    %3475 = vmatprep.mubr.bf16.mxu0 %v1839
    %3476 = vmatmul.mubr.bf16.gmra.mrb[0].mxu0 %v1838
    %v3477 = vpop.f32.mrb[0].mxu0
    %v3478 = vadd.f32 %v3437, %v3477
    %v3479 = vpop.f32.mrb[0].mxu0
    %v3480 = vadd.f32 %v3439, %v3479
    %v3481 = vpop.f32.mrb[0].mxu0
    %v3482 = vpop.f32.mrb[0].mxu0
    %3483 = vdwg.mxu0
    %3484 = vmatprep.subr.bf16.mxu0 %v3019
    %3485 = vmatpush1.bf16.msra.mxu0 %v3018
    %3486 = vmatprep.subr.bf16.mxu0 %v3023
    %3487 = vmatpush1.bf16.msra.mxu0 %v3022
    %3488 = vmatprep.subr.bf16.mxu0 %v3027
    %3489 = vmatpush1.bf16.msra.mxu0 %v3026
    %3490 = vmatprep.subr.bf16.mxu0 %v3031
    %3491 = vmatpush1.bf16.msra.mxu0 %v3030
    %3492 = vmatprep.subr.bf16.mxu0 %v3035
    %3493 = vmatpush1.bf16.msra.mxu0 %v3034
    %3494 = vmatprep.subr.bf16.mxu0 %v3039
    %3495 = vmatpush1.bf16.msra.mxu0 %v3038
    %3496 = vmatprep.subr.bf16.mxu0 %v3043
    %3497 = vmatpush1.bf16.msra.mxu0 %v3042
    %3498 = vmatprep.subr.bf16.mxu0 %v3047
    %3499 = vmatpush1.bf16.msra.mxu0 %v3046
    %3500 = vmatprep.subr.bf16.mxu0 %v3051
    %3501 = vmatpush1.bf16.msra.mxu0 %v3050
    %3502 = vmatprep.subr.bf16.mxu0 %v3055
    %3503 = vmatpush1.bf16.msra.mxu0 %v3054
    %3504 = vmatprep.subr.bf16.mxu0 %v3059
    %3505 = vmatpush1.bf16.msra.mxu0 %v3058
    %3506 = vmatprep.subr.bf16.mxu0 %v3063
    %3507 = vmatpush1.bf16.msra.mxu0 %v3062
    %3508 = vmatprep.subr.bf16.mxu0 %v3067
    %3509 = vmatpush1.bf16.msra.mxu0 %v3066
    %3510 = vmatprep.subr.bf16.mxu0 %v3071
    %3511 = vmatpush1.bf16.msra.mxu0 %v3070
    %3512 = vmatprep.subr.bf16.mxu0 %v3075
    %3513 = vmatpush1.bf16.msra.mxu0 %v3074
    %3514 = vmatprep.subr.bf16.mxu0 %v3079
    %3515 = vmatpush1.bf16.msra.mxu0 %v3078
    %3516 = vmatprep.mubr.bf16.mxu0 %v1841
    %3517 = vmatmul.mubr.bf16.gmra.mrb[0].mxu0 %v1840
    %v3518 = vpop.f32.mrb[0].mxu0
    %v3519 = vadd.f32 %v3478, %v3518
    %v3520 = vpop.f32.mrb[0].mxu0
    %v3521 = vadd.f32 %v3480, %v3520
    %v3522 = vpop.f32.mrb[0].mxu0
    %v3523 = vpop.f32.mrb[0].mxu0
    %3524 = vdwg.mxu0
    %3525 = vmatprep.subr.bf16.mxu0 %v3083
    %3526 = vmatpush1.bf16.msra.mxu0 %v3082
    %3527 = vmatprep.subr.bf16.mxu0 %v3087
    %3528 = vmatpush1.bf16.msra.mxu0 %v3086
    %3529 = vmatprep.subr.bf16.mxu0 %v3091
    %3530 = vmatpush1.bf16.msra.mxu0 %v3090
    %3531 = vmatprep.subr.bf16.mxu0 %v3095
    %3532 = vmatpush1.bf16.msra.mxu0 %v3094
    %3533 = vmatprep.subr.bf16.mxu0 %v3099
    %3534 = vmatpush1.bf16.msra.mxu0 %v3098
    %3535 = vmatprep.subr.bf16.mxu0 %v3103
    %3536 = vmatpush1.bf16.msra.mxu0 %v3102
    %3537 = vmatprep.subr.bf16.mxu0 %v3107
    %3538 = vmatpush1.bf16.msra.mxu0 %v3106
    %3539 = vmatprep.subr.bf16.mxu0 %v3111
    %3540 = vmatpush1.bf16.msra.mxu0 %v3110
    %3541 = vmatprep.subr.bf16.mxu0 %v3115
    %3542 = vmatpush1.bf16.msra.mxu0 %v3114
    %3543 = vmatprep.subr.bf16.mxu0 %v3119
    %3544 = vmatpush1.bf16.msra.mxu0 %v3118
    %3545 = vmatprep.subr.bf16.mxu0 %v3123
    %3546 = vmatpush1.bf16.msra.mxu0 %v3122
    %3547 = vmatprep.subr.bf16.mxu0 %v3127
    %3548 = vmatpush1.bf16.msra.mxu0 %v3126
    %3549 = vmatprep.subr.bf16.mxu0 %v3131
    %3550 = vmatpush1.bf16.msra.mxu0 %v3130
    %3551 = vmatprep.subr.bf16.mxu0 %v3135
    %3552 = vmatpush1.bf16.msra.mxu0 %v3134
    %3553 = vmatprep.subr.bf16.mxu0 %v3139
    %3554 = vmatpush1.bf16.msra.mxu0 %v3138
    %3555 = vmatprep.subr.bf16.mxu0 %v3143
    %3556 = vmatpush1.bf16.msra.mxu0 %v3142
    %3557 = vmatprep.mubr.bf16.mxu0 %v1843
    %3558 = vmatmul.mubr.bf16.gmra.mrb[0].mxu0 %v1842
    %v3559 = vpop.f32.mrb[0].mxu0
    %v3560 = vadd.f32 %v3519, %v3559
    %v3561 = vpop.f32.mrb[0].mxu0
    %v3562 = vadd.f32 %v3521, %v3561
    %v3563 = vpop.f32.mrb[0].mxu0
    %v3564 = vpop.f32.mrb[0].mxu0
    %3565 = vdwg.mxu0
    %3566 = vmatprep.subr.bf16.mxu0 %v2893
    %3567 = vmatpush1.bf16.msra.mxu0 %v2892
    %3568 = vmatprep.subr.bf16.mxu0 %v2897
    %3569 = vmatpush1.bf16.msra.mxu0 %v2896
    %3570 = vmatprep.subr.bf16.mxu0 %v2901
    %3571 = vmatpush1.bf16.msra.mxu0 %v2900
    %3572 = vmatprep.subr.bf16.mxu0 %v2905
    %3573 = vmatpush1.bf16.msra.mxu0 %v2904
    %3574 = vmatprep.subr.bf16.mxu0 %v2909
    %3575 = vmatpush1.bf16.msra.mxu0 %v2908
    %3576 = vmatprep.subr.bf16.mxu0 %v2913
    %3577 = vmatpush1.bf16.msra.mxu0 %v2912
    %3578 = vmatprep.subr.bf16.mxu0 %v2917
    %3579 = vmatpush1.bf16.msra.mxu0 %v2916
    %3580 = vmatprep.subr.bf16.mxu0 %v2921
    %3581 = vmatpush1.bf16.msra.mxu0 %v2920
    %3582 = vmatprep.subr.bf16.mxu0 %v2925
    %3583 = vmatpush1.bf16.msra.mxu0 %v2924
    %3584 = vmatprep.subr.bf16.mxu0 %v2929
    %3585 = vmatpush1.bf16.msra.mxu0 %v2928
    %3586 = vmatprep.subr.bf16.mxu0 %v2933
    %3587 = vmatpush1.bf16.msra.mxu0 %v2932
    %3588 = vmatprep.subr.bf16.mxu0 %v2937
    %3589 = vmatpush1.bf16.msra.mxu0 %v2936
    %3590 = vmatprep.subr.bf16.mxu0 %v2941
    %3591 = vmatpush1.bf16.msra.mxu0 %v2940
    %3592 = vmatprep.subr.bf16.mxu0 %v2945
    %3593 = vmatpush1.bf16.msra.mxu0 %v2944
    %3594 = vmatprep.subr.bf16.mxu0 %v2949
    %3595 = vmatpush1.bf16.msra.mxu0 %v2948
    %3596 = vmatprep.subr.bf16.mxu0 %v2953
    %3597 = vmatpush1.bf16.msra.mxu0 %v2952
    %3598 = vmatprep.mubr.bf16.mxu0 %v1837
    %3599 = vmatmul.mubr.bf16.gmra.mrb[0].mxu0 %v1836
    %v3600 = vpop.f32.mrb[0].mxu0
    %v3601 = vadd.f32 %v2113, %v3600
    %v3602 = vpop.f32.mrb[0].mxu0
    %v3603 = vadd.f32 %v2117, %v3602
    %v3604 = vpop.f32.mrb[0].mxu0
    %v3605 = vpop.f32.mrb[0].mxu0
    %3606 = vdwg.mxu0
    %3607 = vmatprep.subr.bf16.mxu0 %v2957
    %3608 = vmatpush1.bf16.msra.mxu0 %v2956
    %3609 = vmatprep.subr.bf16.mxu0 %v2961
    %3610 = vmatpush1.bf16.msra.mxu0 %v2960
    %3611 = vmatprep.subr.bf16.mxu0 %v2965
    %3612 = vmatpush1.bf16.msra.mxu0 %v2964
    %3613 = vmatprep.subr.bf16.mxu0 %v2969
    %3614 = vmatpush1.bf16.msra.mxu0 %v2968
    %3615 = vmatprep.subr.bf16.mxu0 %v2973
    %3616 = vmatpush1.bf16.msra.mxu0 %v2972
    %3617 = vmatprep.subr.bf16.mxu0 %v2977
    %3618 = vmatpush1.bf16.msra.mxu0 %v2976
    %3619 = vmatprep.subr.bf16.mxu0 %v2981
    %3620 = vmatpush1.bf16.msra.mxu0 %v2980
    %3621 = vmatprep.subr.bf16.mxu0 %v2985
    %3622 = vmatpush1.bf16.msra.mxu0 %v2984
    %3623 = vmatprep.subr.bf16.mxu0 %v2989
    %3624 = vmatpush1.bf16.msra.mxu0 %v2988
    %3625 = vmatprep.subr.bf16.mxu0 %v2993
    %3626 = vmatpush1.bf16.msra.mxu0 %v2992
    %3627 = vmatprep.subr.bf16.mxu0 %v2997
    %3628 = vmatpush1.bf16.msra.mxu0 %v2996
    %3629 = vmatprep.subr.bf16.mxu0 %v3001
    %3630 = vmatpush1.bf16.msra.mxu0 %v3000
    %3631 = vmatprep.subr.bf16.mxu0 %v3005
    %3632 = vmatpush1.bf16.msra.mxu0 %v3004
    %3633 = vmatprep.subr.bf16.mxu0 %v3009
    %3634 = vmatpush1.bf16.msra.mxu0 %v3008
    %3635 = vmatprep.subr.bf16.mxu0 %v3013
    %3636 = vmatpush1.bf16.msra.mxu0 %v3012
    %3637 = vmatprep.subr.bf16.mxu0 %v3017
    %3638 = vmatpush1.bf16.msra.mxu0 %v3016
    %3639 = vmatprep.mubr.bf16.mxu0 %v1839
    %3640 = vmatmul.mubr.bf16.gmra.mrb[0].mxu0 %v1838
    %v3641 = vpop.f32.mrb[0].mxu0
    %v3642 = vadd.f32 %v3601, %v3641
    %v3643 = vpop.f32.mrb[0].mxu0
    %v3644 = vadd.f32 %v3603, %v3643
    %v3645 = vpop.f32.mrb[0].mxu0
    %v3646 = vpop.f32.mrb[0].mxu0
    %3647 = vdwg.mxu0
    %3648 = vmatprep.subr.bf16.mxu0 %v3021
    %3649 = vmatpush1.bf16.msra.mxu0 %v3020
    %3650 = vmatprep.subr.bf16.mxu0 %v3025
    %3651 = vmatpush1.bf16.msra.mxu0 %v3024
    %3652 = vmatprep.subr.bf16.mxu0 %v3029
    %3653 = vmatpush1.bf16.msra.mxu0 %v3028
    %3654 = vmatprep.subr.bf16.mxu0 %v3033
    %3655 = vmatpush1.bf16.msra.mxu0 %v3032
    %3656 = vmatprep.subr.bf16.mxu0 %v3037
    %3657 = vmatpush1.bf16.msra.mxu0 %v3036
    %3658 = vmatprep.subr.bf16.mxu0 %v3041
    %3659 = vmatpush1.bf16.msra.mxu0 %v3040
    %3660 = vmatprep.subr.bf16.mxu0 %v3045
    %3661 = vmatpush1.bf16.msra.mxu0 %v3044
    %3662 = vmatprep.subr.bf16.mxu0 %v3049
    %3663 = vmatpush1.bf16.msra.mxu0 %v3048
    %3664 = vmatprep.subr.bf16.mxu0 %v3053
    %3665 = vmatpush1.bf16.msra.mxu0 %v3052
    %3666 = vmatprep.subr.bf16.mxu0 %v3057
    %3667 = vmatpush1.bf16.msra.mxu0 %v3056
    %3668 = vmatprep.subr.bf16.mxu0 %v3061
    %3669 = vmatpush1.bf16.msra.mxu0 %v3060
    %3670 = vmatprep.subr.bf16.mxu0 %v3065
    %3671 = vmatpush1.bf16.msra.mxu0 %v3064
    %3672 = vmatprep.subr.bf16.mxu0 %v3069
    %3673 = vmatpush1.bf16.msra.mxu0 %v3068
    %3674 = vmatprep.subr.bf16.mxu0 %v3073
    %3675 = vmatpush1.bf16.msra.mxu0 %v3072
    %3676 = vmatprep.subr.bf16.mxu0 %v3077
    %3677 = vmatpush1.bf16.msra.mxu0 %v3076
    %3678 = vmatprep.subr.bf16.mxu0 %v3081
    %3679 = vmatpush1.bf16.msra.mxu0 %v3080
    %3680 = vmatprep.mubr.bf16.mxu0 %v1841
    %3681 = vmatmul.mubr.bf16.gmra.mrb[0].mxu0 %v1840
    %v3682 = vpop.f32.mrb[0].mxu0
    %v3683 = vadd.f32 %v3642, %v3682
    %v3684 = vpop.f32.mrb[0].mxu0
    %v3685 = vadd.f32 %v3644, %v3684
    %v3686 = vpop.f32.mrb[0].mxu0
    %v3687 = vpop.f32.mrb[0].mxu0
    %3688 = vdwg.mxu0
    %3689 = vmatprep.subr.bf16.mxu0 %v3085
    %3690 = vmatpush1.bf16.msra.mxu0 %v3084
    %3691 = vmatprep.subr.bf16.mxu0 %v3089
    %3692 = vmatpush1.bf16.msra.mxu0 %v3088
    %3693 = vmatprep.subr.bf16.mxu0 %v3093
    %3694 = vmatpush1.bf16.msra.mxu0 %v3092
    %3695 = vmatprep.subr.bf16.mxu0 %v3097
    %3696 = vmatpush1.bf16.msra.mxu0 %v3096
    %3697 = vmatprep.subr.bf16.mxu0 %v3101
    %3698 = vmatpush1.bf16.msra.mxu0 %v3100
    %3699 = vmatprep.subr.bf16.mxu0 %v3105
    %3700 = vmatpush1.bf16.msra.mxu0 %v3104
    %3701 = vmatprep.subr.bf16.mxu0 %v3109
    %3702 = vmatpush1.bf16.msra.mxu0 %v3108
    %3703 = vmatprep.subr.bf16.mxu0 %v3113
    %3704 = vmatpush1.bf16.msra.mxu0 %v3112
    %3705 = vmatprep.subr.bf16.mxu0 %v3117
    %3706 = vmatpush1.bf16.msra.mxu0 %v3116
    %3707 = vmatprep.subr.bf16.mxu0 %v3121
    %3708 = vmatpush1.bf16.msra.mxu0 %v3120
    %3709 = vmatprep.subr.bf16.mxu0 %v3125
    %3710 = vmatpush1.bf16.msra.mxu0 %v3124
    %3711 = vmatprep.subr.bf16.mxu0 %v3129
    %3712 = vmatpush1.bf16.msra.mxu0 %v3128
    %3713 = vmatprep.subr.bf16.mxu0 %v3133
    %3714 = vmatpush1.bf16.msra.mxu0 %v3132
    %3715 = vmatprep.subr.bf16.mxu0 %v3137
    %3716 = vmatpush1.bf16.msra.mxu0 %v3136
    %3717 = vmatprep.subr.bf16.mxu0 %v3141
    %3718 = vmatpush1.bf16.msra.mxu0 %v3140
    %3719 = vmatprep.subr.bf16.mxu0 %v3145
    %3720 = vmatpush1.bf16.msra.mxu0 %v3144
    %3721 = vmatprep.mubr.bf16.mxu0 %v1843
    %3722 = vmatmul.mubr.bf16.gmra.mrb[0].mxu0 %v1842
    %v3723 = vpop.f32.mrb[0].mxu0
    %v3724 = vadd.f32 %v3683, %v3723
    %v3725 = vpop.f32.mrb[0].mxu0
    %v3726 = vadd.f32 %v3685, %v3725
    %v3727 = vpop.f32.mrb[0].mxu0
    %v3728 = vpop.f32.mrb[0].mxu0
    %3729 = vdwg.mxu0
    %v3730 = vmax.f32 %v3560, 0.0
    %v3731 = vmax.f32 %v3562, 0.0
    %v3732 = vmax.f32 %v3724, 0.0
    %v3733 = vmax.f32 %v3726, 0.0
    %v3734 = vpack.c.bf16 %v3730, %v3730
    %v3735 = vpack.c.bf16 %v3731, %v3731
    %v3736 = vpack.c.bf16 %v3732, %v3732
    %v3737 = vpack.c.bf16 %v3733, %v3733
    %v3738 = vld [vmem:[#allocation9] sm:$0xf]
    %v3739 = vld [vmem:[#allocation9 + $0x4] sm:$0xf]
    %v3740 = vld [vmem:[#allocation9 + $0x8] sm:$0xf]
    %v3741 = vld [vmem:[#allocation9 + $0xc] sm:$0xf]
    %v3742 = vld [vmem:[#allocation9 + $0x10] sm:$0xf]
    %v3743 = vld [vmem:[#allocation9 + $0x14] sm:$0xf]
    %v3744 = vld [vmem:[#allocation9 + $0x18] sm:$0xf]
    %v3745 = vld [vmem:[#allocation9 + $0x1c] sm:$0xf]
    %v3746 = vld [vmem:[#allocation9 + $0x20] sm:$0xf]
    %v3747 = vld [vmem:[#allocation9 + $0x24] sm:$0xf]
    %v3748 = vld [vmem:[#allocation9 + $0x28] sm:$0xf]
    %v3749 = vld [vmem:[#allocation9 + $0x2c] sm:$0xf]
    %v3750 = vld [vmem:[#allocation9 + $0x30] sm:$0xf]
    %v3751 = vld [vmem:[#allocation9 + $0x34] sm:$0xf]
    %v3752 = vld [vmem:[#allocation9 + $0x38] sm:$0xf]
    %v3753 = vld [vmem:[#allocation9 + $0x3c] sm:$0xf]
    %v3754 = vld [vmem:[#allocation9 + $0x40] sm:$0xf]
    %v3755 = vld [vmem:[#allocation9 + $0x44] sm:$0xf]
    %v3756 = vld [vmem:[#allocation9 + $0x48] sm:$0xf]
    %v3757 = vld [vmem:[#allocation9 + $0x4c] sm:$0xf]
    %v3758 = vld [vmem:[#allocation9 + $0x50] sm:$0xf]
    %v3759 = vld [vmem:[#allocation9 + $0x54] sm:$0xf]
    %v3760 = vld [vmem:[#allocation9 + $0x58] sm:$0xf]
    %v3761 = vld [vmem:[#allocation9 + $0x5c] sm:$0xf]
    %v3762 = vld [vmem:[#allocation9 + $0x60] sm:$0xf]
    %v3763 = vld [vmem:[#allocation9 + $0x64] sm:$0xf]
    %v3764 = vld [vmem:[#allocation9 + $0x68] sm:$0xf]
    %v3765 = vld [vmem:[#allocation9 + $0x6c] sm:$0xf]
    %v3766 = vld [vmem:[#allocation9 + $0x70] sm:$0xf]
    %v3767 = vld [vmem:[#allocation9 + $0x74] sm:$0xf]
    %v3768 = vld [vmem:[#allocation9 + $0x78] sm:$0xf]
    %v3769 = vld [vmem:[#allocation9 + $0x7c] sm:$0xf]
    %v3770 = vld [vmem:[#allocation9 + $0x80] sm:$0xf]
    %v3771 = vld [vmem:[#allocation9 + $0x84] sm:$0xf]
    %v3772 = vld [vmem:[#allocation9 + $0x88] sm:$0xf]
    %v3773 = vld [vmem:[#allocation9 + $0x8c] sm:$0xf]
    %v3774 = vld [vmem:[#allocation9 + $0x90] sm:$0xf]
    %v3775 = vld [vmem:[#allocation9 + $0x94] sm:$0xf]
    %v3776 = vld [vmem:[#allocation9 + $0x98] sm:$0xf]
    %v3777 = vld [vmem:[#allocation9 + $0x9c] sm:$0xf]
    %v3778 = vld [vmem:[#allocation9 + $0xa0] sm:$0xf]
    %v3779 = vld [vmem:[#allocation9 + $0xa4] sm:$0xf]
    %v3780 = vld [vmem:[#allocation9 + $0xa8] sm:$0xf]
    %v3781 = vld [vmem:[#allocation9 + $0xac] sm:$0xf]
    %v3782 = vld [vmem:[#allocation9 + $0xb0] sm:$0xf]
    %v3783 = vld [vmem:[#allocation9 + $0xb4] sm:$0xf]
    %v3784 = vld [vmem:[#allocation9 + $0xb8] sm:$0xf]
    %v3785 = vld [vmem:[#allocation9 + $0xbc] sm:$0xf]
    %v3786 = vld [vmem:[#allocation9 + $0xc0] sm:$0xf]
    %v3787 = vld [vmem:[#allocation9 + $0xc4] sm:$0xf]
    %v3788 = vld [vmem:[#allocation9 + $0xc8] sm:$0xf]
    %v3789 = vld [vmem:[#allocation9 + $0xcc] sm:$0xf]
    %v3790 = vld [vmem:[#allocation9 + $0xd0] sm:$0xf]
    %v3791 = vld [vmem:[#allocation9 + $0xd4] sm:$0xf]
    %v3792 = vld [vmem:[#allocation9 + $0xd8] sm:$0xf]
    %v3793 = vld [vmem:[#allocation9 + $0xdc] sm:$0xf]
    %v3794 = vld [vmem:[#allocation9 + $0xe0] sm:$0xf]
    %v3795 = vld [vmem:[#allocation9 + $0xe4] sm:$0xf]
    %v3796 = vld [vmem:[#allocation9 + $0xe8] sm:$0xf]
    %v3797 = vld [vmem:[#allocation9 + $0xec] sm:$0xf]
    %v3798 = vld [vmem:[#allocation9 + $0xf0] sm:$0xf]
    %v3799 = vld [vmem:[#allocation9 + $0xf4] sm:$0xf]
    %v3800 = vld [vmem:[#allocation9 + $0xf8] sm:$0xf]
    %v3801 = vld [vmem:[#allocation9 + $0xfc] sm:$0xf]
    %v3802 = vld [vmem:[%s6] sm:$0x1]
    %v3804 = vlaneseq
    %v3805 = vshrl.u32 %v3804, 7
    %v3806 = vsub.s32 0, %v3805
    %v3807 = vrot.slane %v3802, %v3806
    %v3873 = vunpack.c.l.b16 %v3738
    %v3874 = vunpack.c.l.b16 %v3739
    %v3875 = vunpack.c.l.b16 %v3740
    %v3876 = vunpack.c.l.b16 %v3741
    %v3877 = vunpack.c.l.b16 %v3742
    %v3878 = vunpack.c.l.b16 %v3743
    %v3879 = vunpack.c.l.b16 %v3744
    %v3880 = vunpack.c.l.b16 %v3745
    %v3881 = vunpack.c.l.b16 %v3746
    %v3882 = vunpack.c.l.b16 %v3747
    %v3883 = vunpack.c.l.b16 %v3748
    %v3884 = vunpack.c.l.b16 %v3749
    %v3885 = vunpack.c.l.b16 %v3750
    %v3886 = vunpack.c.l.b16 %v3751
    %v3887 = vunpack.c.l.b16 %v3752
    %v3888 = vunpack.c.l.b16 %v3753
    %v3889 = vunpack.c.l.b16 %v3754
    %v3890 = vunpack.c.l.b16 %v3755
    %v3891 = vunpack.c.l.b16 %v3756
    %v3892 = vunpack.c.l.b16 %v3757
    %v3893 = vunpack.c.l.b16 %v3758
    %v3894 = vunpack.c.l.b16 %v3759
    %v3895 = vunpack.c.l.b16 %v3760
    %v3896 = vunpack.c.l.b16 %v3761
    %v3897 = vunpack.c.l.b16 %v3762
    %v3898 = vunpack.c.l.b16 %v3763
    %v3899 = vunpack.c.l.b16 %v3764
    %v3900 = vunpack.c.l.b16 %v3765
    %v3901 = vunpack.c.l.b16 %v3766
    %v3902 = vunpack.c.l.b16 %v3767
    %v3903 = vunpack.c.l.b16 %v3768
    %v3904 = vunpack.c.l.b16 %v3769
    %v3905 = vunpack.c.l.b16 %v3770
    %v3906 = vunpack.c.l.b16 %v3771
    %v3907 = vunpack.c.l.b16 %v3772
    %v3908 = vunpack.c.l.b16 %v3773
    %v3909 = vunpack.c.l.b16 %v3774
    %v3910 = vunpack.c.l.b16 %v3775
    %v3911 = vunpack.c.l.b16 %v3776
    %v3912 = vunpack.c.l.b16 %v3777
    %v3913 = vunpack.c.l.b16 %v3778
    %v3914 = vunpack.c.l.b16 %v3779
    %v3915 = vunpack.c.l.b16 %v3780
    %v3916 = vunpack.c.l.b16 %v3781
    %v3917 = vunpack.c.l.b16 %v3782
    %v3918 = vunpack.c.l.b16 %v3783
    %v3919 = vunpack.c.l.b16 %v3784
    %v3920 = vunpack.c.l.b16 %v3785
    %v3921 = vunpack.c.l.b16 %v3786
    %v3922 = vunpack.c.l.b16 %v3787
    %v3923 = vunpack.c.l.b16 %v3788
    %v3924 = vunpack.c.l.b16 %v3789
    %v3925 = vunpack.c.l.b16 %v3790
    %v3926 = vunpack.c.l.b16 %v3791
    %v3927 = vunpack.c.l.b16 %v3792
    %v3928 = vunpack.c.l.b16 %v3793
    %v3929 = vunpack.c.l.b16 %v3794
    %v3930 = vunpack.c.l.b16 %v3795
    %v3931 = vunpack.c.l.b16 %v3796
    %v3932 = vunpack.c.l.b16 %v3797
    %v3933 = vunpack.c.l.b16 %v3798
    %v3934 = vunpack.c.l.b16 %v3799
    %v3935 = vunpack.c.l.b16 %v3800
    %v3936 = vunpack.c.l.b16 %v3801
    %v3937 = vpack.c.b16 %v3874, %v3873
    %v3938 = vpack.c.b16 %v3876, %v3875
    %v3939 = vpack.c.b16 %v3878, %v3877
    %v3940 = vpack.c.b16 %v3880, %v3879
    %v3941 = vpack.c.b16 %v3882, %v3881
    %v3942 = vpack.c.b16 %v3884, %v3883
    %v3943 = vpack.c.b16 %v3886, %v3885
    %v3944 = vpack.c.b16 %v3888, %v3887
    %v3945 = vpack.c.b16 %v3890, %v3889
    %v3946 = vpack.c.b16 %v3892, %v3891
    %v3947 = vpack.c.b16 %v3894, %v3893
    %v3948 = vpack.c.b16 %v3896, %v3895
    %v3949 = vpack.c.b16 %v3898, %v3897
    %v3950 = vpack.c.b16 %v3900, %v3899
    %v3951 = vpack.c.b16 %v3902, %v3901
    %v3952 = vpack.c.b16 %v3904, %v3903
    %v3953 = vpack.c.b16 %v3906, %v3905
    %v3954 = vpack.c.b16 %v3908, %v3907
    %v3955 = vpack.c.b16 %v3910, %v3909
    %v3956 = vpack.c.b16 %v3912, %v3911
    %v3957 = vpack.c.b16 %v3914, %v3913
    %v3958 = vpack.c.b16 %v3916, %v3915
    %v3959 = vpack.c.b16 %v3918, %v3917
    %v3960 = vpack.c.b16 %v3920, %v3919
    %v3961 = vpack.c.b16 %v3922, %v3921
    %v3962 = vpack.c.b16 %v3924, %v3923
    %v3963 = vpack.c.b16 %v3926, %v3925
    %v3964 = vpack.c.b16 %v3928, %v3927
    %v3965 = vpack.c.b16 %v3930, %v3929
    %v3966 = vpack.c.b16 %v3932, %v3931
    %v3967 = vpack.c.b16 %v3934, %v3933
    %v3968 = vpack.c.b16 %v3936, %v3935
    %4001 = vmatprep.subr.bf16.mxu0 0
    %4002 = vmatpush1.bf16.msra.mxu0 %v3937
    %4003 = vmatprep.subr.bf16.mxu0 0
    %4004 = vmatpush1.bf16.msra.mxu0 %v3938
    %4005 = vmatprep.subr.bf16.mxu0 0
    %4006 = vmatpush1.bf16.msra.mxu0 %v3939
    %4007 = vmatprep.subr.bf16.mxu0 0
    %4008 = vmatpush1.bf16.msra.mxu0 %v3940
    %4009 = vmatprep.subr.bf16.mxu0 0
    %4010 = vmatpush1.bf16.msra.mxu0 %v3941
    %4011 = vmatprep.subr.bf16.mxu0 0
    %4012 = vmatpush1.bf16.msra.mxu0 %v3942
    %4013 = vmatprep.subr.bf16.mxu0 0
    %4014 = vmatpush1.bf16.msra.mxu0 %v3943
    %4015 = vmatprep.subr.bf16.mxu0 0
    %4016 = vmatpush1.bf16.msra.mxu0 %v3944
    %4017 = vmatprep.subr.bf16.mxu0 0
    %4018 = vmatpush1.bf16.msra.mxu0 %v3945
    %4019 = vmatprep.subr.bf16.mxu0 0
    %4020 = vmatpush1.bf16.msra.mxu0 %v3946
    %4021 = vmatprep.subr.bf16.mxu0 0
    %4022 = vmatpush1.bf16.msra.mxu0 %v3947
    %4023 = vmatprep.subr.bf16.mxu0 0
    %4024 = vmatpush1.bf16.msra.mxu0 %v3948
    %4025 = vmatprep.subr.bf16.mxu0 0
    %4026 = vmatpush1.bf16.msra.mxu0 %v3949
    %4027 = vmatprep.subr.bf16.mxu0 0
    %4028 = vmatpush1.bf16.msra.mxu0 %v3950
    %4029 = vmatprep.subr.bf16.mxu0 0
    %4030 = vmatpush1.bf16.msra.mxu0 %v3951
    %4031 = vmatprep.subr.bf16.mxu0 0
    %4032 = vmatpush1.bf16.msra.mxu0 %v3952
    %4033 = vmatprep.mubr.bf16.mxu0 %v3735
    %4034 = vmatmul.mubr.bf16.gmra.mrb[0].mxu0 %v3734
    %v4035 = vpop.f32.mrb[0].mxu0
    %v4036 = vadd.f32 %v3807, %v4035
    %v4037 = vpop.f32.mrb[0].mxu0
    %v4038 = vpop.f32.mrb[0].mxu0
    %v4039 = vpop.f32.mrb[0].mxu0
    %4040 = vdwg.mxu0
    %4041 = vmatprep.subr.bf16.mxu0 0
    %4042 = vmatpush1.bf16.msra.mxu0 %v3953
    %4043 = vmatprep.subr.bf16.mxu0 0
    %4044 = vmatpush1.bf16.msra.mxu0 %v3954
    %4045 = vmatprep.subr.bf16.mxu0 0
    %4046 = vmatpush1.bf16.msra.mxu0 %v3955
    %4047 = vmatprep.subr.bf16.mxu0 0
    %4048 = vmatpush1.bf16.msra.mxu0 %v3956
    %4049 = vmatprep.subr.bf16.mxu0 0
    %4050 = vmatpush1.bf16.msra.mxu0 %v3957
    %4051 = vmatprep.subr.bf16.mxu0 0
    %4052 = vmatpush1.bf16.msra.mxu0 %v3958
    %4053 = vmatprep.subr.bf16.mxu0 0
    %4054 = vmatpush1.bf16.msra.mxu0 %v3959
    %4055 = vmatprep.subr.bf16.mxu0 0
    %4056 = vmatpush1.bf16.msra.mxu0 %v3960
    %4057 = vmatprep.subr.bf16.mxu0 0
    %4058 = vmatpush1.bf16.msra.mxu0 %v3961
    %4059 = vmatprep.subr.bf16.mxu0 0
    %4060 = vmatpush1.bf16.msra.mxu0 %v3962
    %4061 = vmatprep.subr.bf16.mxu0 0
    %4062 = vmatpush1.bf16.msra.mxu0 %v3963
    %4063 = vmatprep.subr.bf16.mxu0 0
    %4064 = vmatpush1.bf16.msra.mxu0 %v3964
    %4065 = vmatprep.subr.bf16.mxu0 0
    %4066 = vmatpush1.bf16.msra.mxu0 %v3965
    %4067 = vmatprep.subr.bf16.mxu0 0
    %4068 = vmatpush1.bf16.msra.mxu0 %v3966
    %4069 = vmatprep.subr.bf16.mxu0 0
    %4070 = vmatpush1.bf16.msra.mxu0 %v3967
    %4071 = vmatprep.subr.bf16.mxu0 0
    %4072 = vmatpush1.bf16.msra.mxu0 %v3968
    %4073 = vmatprep.mubr.bf16.mxu0 %v3737
    %4074 = vmatmul.mubr.bf16.gmra.mrb[0].mxu0 %v3736
    %v4075 = vpop.f32.mrb[0].mxu0
    %v4076 = vadd.f32 %v4036, %v4075
    %v4077 = vpop.f32.mrb[0].mxu0
    %v4078 = vpop.f32.mrb[0].mxu0
    %v4079 = vpop.f32.mrb[0].mxu0
    %4080 = vdwg.mxu0
    %v4081 = vmax.f32 %v4076, 0.0
    %v4082 = vpack.c.bf16 %v4081, %v4081
    %v4083 = vld [vmem:[#allocation10] sm:$0xf]
    %v4084 = vld [vmem:[#allocation10 + $0x4] sm:$0xf]
    %v4085 = vld [vmem:[#allocation10 + $0x8] sm:$0xf]
    %v4086 = vld [vmem:[#allocation10 + $0xc] sm:$0xf]
    %v4087 = vld [vmem:[#allocation10 + $0x10] sm:$0xf]
    %v4088 = vld [vmem:[#allocation10 + $0x14] sm:$0xf]
    %v4089 = vld [vmem:[#allocation10 + $0x18] sm:$0xf]
    %v4090 = vld [vmem:[#allocation10 + $0x1c] sm:$0xf]
    %v4091 = vld [vmem:[#allocation10 + $0x20] sm:$0xf]
    %v4092 = vld [vmem:[#allocation10 + $0x24] sm:$0xf]
    %v4093 = vld [vmem:[#allocation10 + $0x28] sm:$0xf]
    %v4094 = vld [vmem:[#allocation10 + $0x2c] sm:$0xf]
    %v4095 = vld [vmem:[#allocation10 + $0x30] sm:$0xf]
    %v4096 = vld [vmem:[#allocation10 + $0x34] sm:$0xf]
    %v4097 = vld [vmem:[#allocation10 + $0x38] sm:$0xf]
    %v4098 = vld [vmem:[#allocation10 + $0x3c] sm:$0xf]
    %v4099 = vld [vmem:[%s8] sm:$0x1]
    %v4101 = vlaneseq
    %v4102 = vshrl.u32 %v4101, 7
    %v4103 = vsub.s32 0, %v4102
    %v4104 = vrot.slane %v4099, %v4103
    %v4122 = vunpack.c.l.b16 %v4083
    %v4123 = vunpack.c.l.b16 %v4084
    %v4124 = vunpack.c.l.b16 %v4085
    %v4125 = vunpack.c.l.b16 %v4086
    %v4126 = vunpack.c.l.b16 %v4087
    %v4127 = vunpack.c.l.b16 %v4088
    %v4128 = vunpack.c.l.b16 %v4089
    %v4129 = vunpack.c.l.b16 %v4090
    %v4130 = vunpack.c.l.b16 %v4091
    %v4131 = vunpack.c.l.b16 %v4092
    %v4132 = vunpack.c.l.b16 %v4093
    %v4133 = vunpack.c.l.b16 %v4094
    %v4134 = vunpack.c.l.b16 %v4095
    %v4135 = vunpack.c.l.b16 %v4096
    %v4136 = vunpack.c.l.b16 %v4097
    %v4137 = vunpack.c.l.b16 %v4098
    %v4138 = vpack.c.b16 %v4123, %v4122
    %v4139 = vpack.c.b16 %v4125, %v4124
    %v4140 = vpack.c.b16 %v4127, %v4126
    %v4141 = vpack.c.b16 %v4129, %v4128
    %v4142 = vpack.c.b16 %v4131, %v4130
    %v4143 = vpack.c.b16 %v4133, %v4132
    %v4144 = vpack.c.b16 %v4135, %v4134
    %v4145 = vpack.c.b16 %v4137, %v4136
    %4154 = vmatprep.subr.bf16.mxu0 0
    %4155 = vmatpush1.bf16.msra.mxu0 %v4138
    %4156 = vmatprep.subr.bf16.mxu0 0
    %4157 = vmatpush1.bf16.msra.mxu0 %v4139
    %4158 = vmatprep.subr.bf16.mxu0 0
    %4159 = vmatpush1.bf16.msra.mxu0 %v4140
    %4160 = vmatprep.subr.bf16.mxu0 0
    %4161 = vmatpush1.bf16.msra.mxu0 %v4141
    %4162 = vmatprep.subr.bf16.mxu0 0
    %4163 = vmatpush1.bf16.msra.mxu0 %v4142
    %4164 = vmatprep.subr.bf16.mxu0 0
    %4165 = vmatpush1.bf16.msra.mxu0 %v4143
    %4166 = vmatprep.subr.bf16.mxu0 0
    %4167 = vmatpush1.bf16.msra.mxu0 %v4144
    %4168 = vmatprep.subr.bf16.mxu0 0
    %4169 = vmatpush1.bf16.msra.mxu0 %v4145
    %4170 = vmatprep.subr.bf16.mxu0 0
    %4171 = vmatpush1.bf16.msra.mxu0 0
    %4172 = vmatprep.subr.bf16.mxu0 0
    %4173 = vmatpush1.bf16.msra.mxu0 0
    %4174 = vmatprep.subr.bf16.mxu0 0
    %4175 = vmatpush1.bf16.msra.mxu0 0
    %4176 = vmatprep.subr.bf16.mxu0 0
    %4177 = vmatpush1.bf16.msra.mxu0 0
    %4178 = vmatprep.subr.bf16.mxu0 0
    %4179 = vmatpush1.bf16.msra.mxu0 0
    %4180 = vmatprep.subr.bf16.mxu0 0
    %4181 = vmatpush1.bf16.msra.mxu0 0
    %4182 = vmatprep.subr.bf16.mxu0 0
    %4183 = vmatpush1.bf16.msra.mxu0 0
    %4184 = vmatprep.subr.bf16.mxu0 0
    %4185 = vmatpush1.bf16.msra.mxu0 0
    %4186 = vmatprep.mubr.bf16.mxu0 0
    %4187 = vmatmul.mubr.bf16.gmra.mrb[0].mxu0 %v4082
    %v4188 = vpop.f32.mrb[0].mxu0
    %v4189 = vadd.f32 %v4104, %v4188
    %v4190 = vpop.f32.mrb[0].mxu0
    %v4191 = vpop.f32.mrb[0].mxu0
    %v4192 = vpop.f32.mrb[0].mxu0
    %4193 = vdwg.mxu0
    %v4194 = vpack.c.bf16 %v4189, %v4189
    %4195 = vst [vmem:[%s9] sm:$0x1] %v4194
    // Predicated region
    $region62: #{classifier_forward.1} parent=1 // pred_check
      _
    $region63: #{classifier_forward.1} parent=1 // pred_check_branch
      %4197 = sbr.rel (0) target = $region65
    $region64: #{classifier_forward.1} parent=1 // pred_region
      _
    $region65: #{classifier_forward.1} parent=1 // pred_fallthru
      _
    // Predicated region
    $region66: #{classifier_forward.1} parent=1 // pred_check
      _
    $region67: #{classifier_forward.1} parent=1 // pred_check_branch
      %4199 = sbr.rel (0) target = $region69
    $region68: #{classifier_forward.1} parent=1 // pred_region
      _
    $region69: #{classifier_forward.1} parent=1 // pred_fallthru
      _
    %4200 = vsyncpa [#allocation3], 1
    %4201 = vsyncpa [#allocation5], 1
    %4202 = vsyncpa [#allocation8], 1
    %4203 = vsyncpa [#allocation11], 1

</llo_original>
